<compile_context>
chip_gen: v7x
topology: tpu7x:2x2x1
jax: 0.10.0
libtpu: 0.0.40
codegen_flags: <defaults>
</compile_context>

<pallas_src>
import jax
import jax.numpy as jnp
from jax import lax
from jax.experimental import pallas as pl
from jax.experimental.pallas import tpu as pltpu


def _down_kernel(x_ref, w1_ref, s1_ref, b1_ref, w2_ref, s2_ref, b2_ref,
                 o_ref, f_ref, g_ref):
    """One batch element: fused maxpool(2) -> conv3x3+BN+ReLU -> conv3x3+BN+ReLU.

    x_ref : (1, 2H, W, 2*Cin) bf16 raw input; horizontal pixel pairs packed in lanes
    w1_ref: (9, Cin, Cmid)   bf16, tap-major (ky*3+kx)
    s1_ref, b1_ref : (1, Cmid) f32 folded-BN scale/shift (conv bias included)
    w2_ref: (9, Cmid, Cout)  bf16
    s2_ref, b2_ref : (1, Cout) f32
    o_ref : (1, H*(W+2), Cout)  flat output (2 garbage cols per row, stripped outside)
    f_ref : (ROWS, Cin)  f32 scratch = zero-padded pooled input, (H+2, W+2) flattened
    g_ref : (ROWS, Cmid) f32 scratch = zero-padded conv1 activation
    """
    H = x_ref.shape[1] // 2
    W = x_ref.shape[2]
    Cin = x_ref.shape[3] // 2
    Cmid = w1_ref.shape[2]
    Cout = w2_ref.shape[2]
    P = W + 2                 # padded row length (= flat row stride)
    M = H * P                 # matmul M dimension (includes 2 garbage cols per row)
    rows = f_ref.shape[0]     # (H+2)*P + small tail pad

    # ---------------- fused MaxPool2d(2) (VPU, bf16) ----------------
    xw = x_ref[0]                                            # (2H, W, 2*Cin)
    hmax = jnp.maximum(xw[:, :, :Cin], xw[:, :, Cin:])       # horizontal pair max
    hmax = hmax.reshape(H, 2, W, Cin)                        # leading-dim split (free)
    pooled = jnp.maximum(hmax[:, 0], hmax[:, 1]).astype(jnp.float32)   # (H, W, Cin)

    # ------- stage pooled input: 1 bulk zero fill + H contiguous row stores -------
    f_ref[...] = jnp.zeros((rows, Cin), jnp.float32)
    for h in range(H):
        f_ref[pl.ds((h + 1) * P + 1, W), :] = pooled[h]      # interior data row h

    # ---------------- conv1: 9 contiguous shifted loads + 9 MXU matmuls ----------------
    acc1 = jnp.zeros((M, Cmid), jnp.float32)
    for k in range(9):
        off = (k // 3) * P + (k % 3)
        patch = f_ref[pl.ds(off, M), :].astype(jnp.bfloat16)
        acc1 = acc1 + jnp.dot(patch, w1_ref[k],
                              preferred_element_type=jnp.float32)

    # folded BatchNorm (inference) + ReLU, with the 2 garbage columns per row zeroed
    # in the same sweep so the bulk shifted store below also writes the row borders.
    colmask = ((lax.broadcasted_iota(jnp.int32, (M, 1), 0) % P) < W).astype(jnp.float32)
    y1 = jnp.maximum(acc1 * s1_ref[...] + b1_ref[...], 0.0) * colmask

    # ------- stage conv1 activation: prefix zeros + ONE bulk store + tail zeros -------
    g_ref[pl.ds(0, P + 1), :] = jnp.zeros((P + 1, Cmid), jnp.float32)
    g_ref[pl.ds(P + 1, M), :] = y1                           # valid cols -> interior,
    tail = rows - (P + 1 + M)                                # masked cols -> row borders
    g_ref[pl.ds(P + 1 + M, tail), :] = jnp.zeros((tail, Cmid), jnp.float32)

    # ---------------- conv2 ----------------
    acc2 = jnp.zeros((M, Cout), jnp.float32)
    for k in range(9):
        off = (k // 3) * P + (k % 3)
        patch = g_ref[pl.ds(off, M), :].astype(jnp.bfloat16)
        acc2 = acc2 + jnp.dot(patch, w2_ref[k],
                              preferred_element_type=jnp.float32)
    y2 = jnp.maximum(acc2 * s2_ref[...] + b2_ref[...], 0.0)

    o_ref[...] = y2.reshape(1, M, Cout).astype(o_ref.dtype)


def down_pallas(x_nchw, params):
    """Down.forward: NCHW in -> NCHW out (kernel runs channels-last)."""
    w1, s1, b1, w2, s2, b2 = params           # HWIO f32 weights, (1,C) f32 scale/shift
    B, Cin, H2, W2 = x_nchw.shape
    H, W = H2 // 2, W2 // 2
    Cmid = w1.shape[3]
    Cout = w2.shape[3]
    P = W + 2
    M = H * P
    rows = (H + 2) * P + 8                    # small tail pad so tap loads stay in-bounds

    # kernel-format params: tap-major, bf16 for the MXU
    w1k = w1.reshape(9, Cin, Cmid).astype(jnp.bfloat16)
    w2k = w2.reshape(9, Cmid, Cout).astype(jnp.bfloat16)

    # NCHW -> NHWC (one materialized copy; the bf16 convert fuses into it and halves
    # the kernel's input DMA), then a FREE row-major reshape that packs the horizontal
    # 2x2-pool partner pixel into the lane dimension.
    x = jnp.transpose(x_nchw, (0, 2, 3, 1)).astype(jnp.bfloat16)
    x = x.reshape(B, 2 * H, W, 2 * Cin)

    out_flat = pl.pallas_call(
        _down_kernel,
        out_shape=jax.ShapeDtypeStruct((B, M, Cout), x_nchw.dtype),
        grid=(B,),
        in_specs=[
            pl.BlockSpec((1, 2 * H, W, 2 * Cin), lambda b: (b, 0, 0, 0)),
            pl.BlockSpec((9, Cin, Cmid), lambda b: (0, 0, 0)),
            pl.BlockSpec((1, Cmid), lambda b: (0, 0)),
            pl.BlockSpec((1, Cmid), lambda b: (0, 0)),
            pl.BlockSpec((9, Cmid, Cout), lambda b: (0, 0, 0)),
            pl.BlockSpec((1, Cout), lambda b: (0, 0)),
            pl.BlockSpec((1, Cout), lambda b: (0, 0)),
        ],
        out_specs=pl.BlockSpec((1, M, Cout), lambda b: (b, 0, 0)),
        scratch_shapes=[
            pltpu.VMEM((rows, Cin), jnp.float32),
            pltpu.VMEM((rows, Cmid), jnp.float32),
        ],
        compiler_params=pltpu.CompilerParams(
            dimension_semantics=("parallel",),
            vmem_limit_bytes=64 * 1024 * 1024),
    )(x, w1k, s1, b1, w2k, s2, b2)

    # strip the 2 garbage columns per row, back to NCHW
    out = out_flat.reshape(B, H, P, Cout)[:, :, :W, :]
    return jnp.transpose(out, (0, 3, 1, 2))


def init_params(key, in_channels, out_channels, eps=1e-5):
    """Deterministic synthetic parameters; BN folded into (scale, shift)."""
    ks = jax.random.split(key, 8)
    w1 = 0.1 * jax.random.normal(ks[0], (3, 3, in_channels, out_channels), jnp.float32)
    cb1 = 0.05 * jax.random.normal(ks[1], (out_channels,), jnp.float32)
    g1 = 1.0 + 0.1 * jax.random.normal(ks[2], (out_channels,), jnp.float32)
    be1 = 0.05 * jax.random.normal(ks[3], (out_channels,), jnp.float32)
    w2 = 0.1 * jax.random.normal(ks[4], (3, 3, out_channels, out_channels), jnp.float32)
    cb2 = 0.05 * jax.random.normal(ks[5], (out_channels,), jnp.float32)
    g2 = 1.0 + 0.1 * jax.random.normal(ks[6], (out_channels,), jnp.float32)
    be2 = 0.05 * jax.random.normal(ks[7], (out_channels,), jnp.float32)

    # TODO(synk): BatchNorm implemented in inference mode (running_mean=0, running_var=1);
    # training-mode batch statistics / running-stat updates are not reproduced.
    rm1 = jnp.zeros((out_channels,), jnp.float32)
    rv1 = jnp.ones((out_channels,), jnp.float32)
    rm2 = jnp.zeros((out_channels,), jnp.float32)
    rv2 = jnp.ones((out_channels,), jnp.float32)

    s1 = g1 / jnp.sqrt(rv1 + eps)
    sh1 = (cb1 - rm1) * s1 + be1
    s2 = g2 / jnp.sqrt(rv2 + eps)
    sh2 = (cb2 - rm2) * s2 + be2
    return (w1, s1.reshape(1, -1), sh1.reshape(1, -1),
            w2, s2.reshape(1, -1), sh2.reshape(1, -1))


def down_reference(x_nchw, params):
    """Pure-JAX f32 reference for correctness checking."""
    w1, s1, b1, w2, s2, b2 = params
    x = jnp.transpose(x_nchw, (0, 2, 3, 1))
    B, H2, W2, C = x.shape
    pooled = jnp.max(x.reshape(B, H2 // 2, 2, W2 // 2, 2, C), axis=(2, 4))
    dn = ("NHWC", "HWIO", "NHWC")
    y = lax.conv_general_dilated(pooled, w1, (1, 1), "SAME", dimension_numbers=dn)
    y = jnp.maximum(y * s1.reshape(1, 1, 1, -1) + b1.reshape(1, 1, 1, -1), 0.0)
    y = lax.conv_general_dilated(y, w2, (1, 1), "SAME", dimension_numbers=dn)
    y = jnp.maximum(y * s2.reshape(1, 1, 1, -1) + b2.reshape(1, 1, 1, -1), 0.0)
    return jnp.transpose(y, (0, 3, 1, 2))


if __name__ == "__main__":
    key = jax.random.PRNGKey(0)
    kx, kp = jax.random.split(key)

    in_channels, out_channels = 4, 8
    x = jax.random.normal(kx, (2, in_channels, 16, 16), jnp.float32)  # NCHW
    params = init_params(kp, in_channels, out_channels)

    out = jax.jit(down_pallas)(x, params)
    out = jax.block_until_ready(out)

    assert out.shape == (2, out_channels, 8, 8), out.shape
    ref = down_reference(x, params)
    err = float(jnp.max(jnp.abs(out - ref)))
    # bf16 MXU inputs with f32 accumulation -> slightly looser tolerance than all-f32
    assert err < 5e-2, f"max abs error vs reference too large: {err}"

    print("KERNEL_OK")
</pallas_src>

<mosaic_0001>
module attributes {stable_mosaic.version = 11 : i64} {
  func.func @_down_kernel(%arg0: i32, %arg1: memref<1x16x8x8xbf16, #tpu.memory_space<vmem>>, %arg2: memref<9x4x8xbf16, #tpu.memory_space<vmem>>, %arg3: memref<1x8xf32, #tpu.memory_space<vmem>>, %arg4: memref<1x8xf32, #tpu.memory_space<vmem>>, %arg5: memref<9x8x8xbf16, #tpu.memory_space<vmem>>, %arg6: memref<1x8xf32, #tpu.memory_space<vmem>>, %arg7: memref<1x8xf32, #tpu.memory_space<vmem>>, %arg8: memref<1x80x8xf32, #tpu.memory_space<vmem>>, %arg9: memref<108x4xf32, #tpu.memory_space<vmem>>, %arg10: memref<108x8xf32, #tpu.memory_space<vmem>>) attributes {dimension_semantics = [#tpu.dimension_semantics<parallel>], iteration_bounds = array<i64: 2>, scalar_prefetch = 0 : i64, scratch_operands = 2 : i64, tpu.core_type = #tpu.core_type<tc>, window_params = [{transform_indices = @transform_0, window_bounds = array<i64: 1, 16, 8, 8>}, {pipeline_mode = #tpu.pipeline_mode<synchronous>, transform_indices = @transform_1, window_bounds = array<i64: 9, 4, 8>}, {pipeline_mode = #tpu.pipeline_mode<synchronous>, transform_indices = @transform_2, window_bounds = array<i64: 1, 8>}, {pipeline_mode = #tpu.pipeline_mode<synchronous>, transform_indices = @transform_3, window_bounds = array<i64: 1, 8>}, {pipeline_mode = #tpu.pipeline_mode<synchronous>, transform_indices = @transform_4, window_bounds = array<i64: 9, 8, 8>}, {pipeline_mode = #tpu.pipeline_mode<synchronous>, transform_indices = @transform_5, window_bounds = array<i64: 1, 8>}, {pipeline_mode = #tpu.pipeline_mode<synchronous>, transform_indices = @transform_6, window_bounds = array<i64: 1, 8>}, {transform_indices = @transform_7, window_bounds = array<i64: 1, 80, 8>}]} {
    %c0 = arith.constant 0 : index
    %c0_0 = arith.constant 0 : index
    %c0_1 = arith.constant 0 : index
    %c0_2 = arith.constant 0 : index
    %0 = vector.load %arg1[%c0, %c0_0, %c0_1, %c0_2] : memref<1x16x8x8xbf16, #tpu.memory_space<vmem>>, vector<1x16x8x8xbf16>
    %1 = vector.shape_cast %0 : vector<1x16x8x8xbf16> to vector<16x8x8xbf16>
    %2 = vector.extract_strided_slice %1 {offsets = [0, 0, 0], sizes = [16, 8, 4], strides = [1, 1, 1]} : vector<16x8x8xbf16> to vector<16x8x4xbf16>
    %3 = vector.extract_strided_slice %1 {offsets = [0, 0, 4], sizes = [16, 8, 4], strides = [1, 1, 1]} : vector<16x8x8xbf16> to vector<16x8x4xbf16>
    %4 = arith.maximumf %2, %3 : vector<16x8x4xbf16>
    %5 = vector.shape_cast %4 : vector<16x8x4xbf16> to vector<8x2x8x4xbf16>
    %6 = vector.extract_strided_slice %5 {offsets = [0, 0, 0, 0], sizes = [8, 1, 8, 4], strides = [1, 1, 1, 1]} : vector<8x2x8x4xbf16> to vector<8x1x8x4xbf16>
    %7 = vector.shape_cast %6 : vector<8x1x8x4xbf16> to vector<8x8x4xbf16>
    %8 = vector.extract_strided_slice %5 {offsets = [0, 1, 0, 0], sizes = [8, 1, 8, 4], strides = [1, 1, 1, 1]} : vector<8x2x8x4xbf16> to vector<8x1x8x4xbf16>
    %9 = vector.shape_cast %8 : vector<8x1x8x4xbf16> to vector<8x8x4xbf16>
    %10 = arith.maximumf %7, %9 : vector<8x8x4xbf16>
    %11 = arith.extf %10 : vector<8x8x4xbf16> to vector<8x8x4xf32>
    %cst = arith.constant 0.000000e+00 : f32
    %12 = vector.broadcast %cst : f32 to vector<108x4xf32>
    %c0_3 = arith.constant 0 : index
    %c0_4 = arith.constant 0 : index
    %13 = vector.load %arg9[%c0_3, %c0_4] : memref<108x4xf32, #tpu.memory_space<vmem>>, vector<108x4xf32>
    tpu.vector_store %arg9[%c0_3, %c0_4], %12 {strides = array<i32>} : memref<108x4xf32, #tpu.memory_space<vmem>>, vector<108x4xf32>,
    %14 = vector.extract_strided_slice %11 {offsets = [0, 0, 0], sizes = [1, 8, 4], strides = [1, 1, 1]} : vector<8x8x4xf32> to vector<1x8x4xf32>
    %15 = vector.shape_cast %14 : vector<1x8x4xf32> to vector<8x4xf32>
    %c11 = arith.constant 11 : index
    %c0_5 = arith.constant 0 : index
    %16 = vector.load %arg9[%c11, %c0_5] : memref<108x4xf32, #tpu.memory_space<vmem>>, vector<8x4xf32>
    tpu.vector_store %arg9[%c11, %c0_5], %15 {strides = array<i32>} : memref<108x4xf32, #tpu.memory_space<vmem>>, vector<8x4xf32>,
    %17 = vector.extract_strided_slice %11 {offsets = [1, 0, 0], sizes = [1, 8, 4], strides = [1, 1, 1]} : vector<8x8x4xf32> to vector<1x8x4xf32>
    %18 = vector.shape_cast %17 : vector<1x8x4xf32> to vector<8x4xf32>
    %c21 = arith.constant 21 : index
    %c0_6 = arith.constant 0 : index
    %19 = vector.load %arg9[%c21, %c0_6] : memref<108x4xf32, #tpu.memory_space<vmem>>, vector<8x4xf32>
    tpu.vector_store %arg9[%c21, %c0_6], %18 {strides = array<i32>} : memref<108x4xf32, #tpu.memory_space<vmem>>, vector<8x4xf32>,
    %20 = vector.extract_strided_slice %11 {offsets = [2, 0, 0], sizes = [1, 8, 4], strides = [1, 1, 1]} : vector<8x8x4xf32> to vector<1x8x4xf32>
    %21 = vector.shape_cast %20 : vector<1x8x4xf32> to vector<8x4xf32>
    %c31 = arith.constant 31 : index
    %c0_7 = arith.constant 0 : index
    %22 = vector.load %arg9[%c31, %c0_7] : memref<108x4xf32, #tpu.memory_space<vmem>>, vector<8x4xf32>
    tpu.vector_store %arg9[%c31, %c0_7], %21 {strides = array<i32>} : memref<108x4xf32, #tpu.memory_space<vmem>>, vector<8x4xf32>,
    %23 = vector.extract_strided_slice %11 {offsets = [3, 0, 0], sizes = [1, 8, 4], strides = [1, 1, 1]} : vector<8x8x4xf32> to vector<1x8x4xf32>
    %24 = vector.shape_cast %23 : vector<1x8x4xf32> to vector<8x4xf32>
    %c41 = arith.constant 41 : index
    %c0_8 = arith.constant 0 : index
    %25 = vector.load %arg9[%c41, %c0_8] : memref<108x4xf32, #tpu.memory_space<vmem>>, vector<8x4xf32>
    tpu.vector_store %arg9[%c41, %c0_8], %24 {strides = array<i32>} : memref<108x4xf32, #tpu.memory_space<vmem>>, vector<8x4xf32>,
    %26 = vector.extract_strided_slice %11 {offsets = [4, 0, 0], sizes = [1, 8, 4], strides = [1, 1, 1]} : vector<8x8x4xf32> to vector<1x8x4xf32>
    %27 = vector.shape_cast %26 : vector<1x8x4xf32> to vector<8x4xf32>
    %c51 = arith.constant 51 : index
    %c0_9 = arith.constant 0 : index
    %28 = vector.load %arg9[%c51, %c0_9] : memref<108x4xf32, #tpu.memory_space<vmem>>, vector<8x4xf32>
    tpu.vector_store %arg9[%c51, %c0_9], %27 {strides = array<i32>} : memref<108x4xf32, #tpu.memory_space<vmem>>, vector<8x4xf32>,
    %29 = vector.extract_strided_slice %11 {offsets = [5, 0, 0], sizes = [1, 8, 4], strides = [1, 1, 1]} : vector<8x8x4xf32> to vector<1x8x4xf32>
    %30 = vector.shape_cast %29 : vector<1x8x4xf32> to vector<8x4xf32>
    %c61 = arith.constant 61 : index
    %c0_10 = arith.constant 0 : index
    %31 = vector.load %arg9[%c61, %c0_10] : memref<108x4xf32, #tpu.memory_space<vmem>>, vector<8x4xf32>
    tpu.vector_store %arg9[%c61, %c0_10], %30 {strides = array<i32>} : memref<108x4xf32, #tpu.memory_space<vmem>>, vector<8x4xf32>,
    %32 = vector.extract_strided_slice %11 {offsets = [6, 0, 0], sizes = [1, 8, 4], strides = [1, 1, 1]} : vector<8x8x4xf32> to vector<1x8x4xf32>
    %33 = vector.shape_cast %32 : vector<1x8x4xf32> to vector<8x4xf32>
    %c71 = arith.constant 71 : index
    %c0_11 = arith.constant 0 : index
    %34 = vector.load %arg9[%c71, %c0_11] : memref<108x4xf32, #tpu.memory_space<vmem>>, vector<8x4xf32>
    tpu.vector_store %arg9[%c71, %c0_11], %33 {strides = array<i32>} : memref<108x4xf32, #tpu.memory_space<vmem>>, vector<8x4xf32>,
    %35 = vector.extract_strided_slice %11 {offsets = [7, 0, 0], sizes = [1, 8, 4], strides = [1, 1, 1]} : vector<8x8x4xf32> to vector<1x8x4xf32>
    %36 = vector.shape_cast %35 : vector<1x8x4xf32> to vector<8x4xf32>
    %c81 = arith.constant 81 : index
    %c0_12 = arith.constant 0 : index
    %37 = vector.load %arg9[%c81, %c0_12] : memref<108x4xf32, #tpu.memory_space<vmem>>, vector<8x4xf32>
    tpu.vector_store %arg9[%c81, %c0_12], %36 {strides = array<i32>} : memref<108x4xf32, #tpu.memory_space<vmem>>, vector<8x4xf32>,
    %cst_13 = arith.constant 0.000000e+00 : f32
    %38 = vector.broadcast %cst_13 : f32 to vector<80x8xf32>
    %c0_14 = arith.constant 0 : index
    %c0_15 = arith.constant 0 : index
    %39 = vector.load %arg9[%c0_14, %c0_15] : memref<108x4xf32, #tpu.memory_space<vmem>>, vector<80x4xf32>
    %40 = arith.truncf %39 : vector<80x4xf32> to vector<80x4xbf16>
    %c0_16 = arith.constant 0 : index
    %c0_17 = arith.constant 0 : index
    %c0_18 = arith.constant 0 : index
    %41 = vector.load %arg2[%c0_16, %c0_17, %c0_18] : memref<9x4x8xbf16, #tpu.memory_space<vmem>>, vector<1x4x8xbf16>
    %42 = vector.shape_cast %41 : vector<1x4x8xbf16> to vector<4x8xbf16>
    %cst_19 = arith.constant dense<0.000000e+00> : vector<80x8xf32>
    %43 = tpu.matmul %40, %42, %cst_19 {dimension_numbers = #tpu.dot_dimension_numbers<[1], [0], [0], [1], [0, 0, 1, 1], [], []>} : vector<80x4xbf16>, vector<4x8xbf16>, vector<80x8xf32> -> vector<80x8xf32>
    %44 = arith.addf %38, %43 : vector<80x8xf32>
    %c1 = arith.constant 1 : index
    %c0_20 = arith.constant 0 : index
    %45 = vector.load %arg9[%c1, %c0_20] : memref<108x4xf32, #tpu.memory_space<vmem>>, vector<80x4xf32>
    %46 = arith.truncf %45 : vector<80x4xf32> to vector<80x4xbf16>
    %c1_21 = arith.constant 1 : index
    %c0_22 = arith.constant 0 : index
    %c0_23 = arith.constant 0 : index
    %47 = vector.load %arg2[%c1_21, %c0_22, %c0_23] : memref<9x4x8xbf16, #tpu.memory_space<vmem>>, vector<1x4x8xbf16>
    %48 = vector.shape_cast %47 : vector<1x4x8xbf16> to vector<4x8xbf16>
    %cst_24 = arith.constant dense<0.000000e+00> : vector<80x8xf32>
    %49 = tpu.matmul %46, %48, %cst_24 {dimension_numbers = #tpu.dot_dimension_numbers<[1], [0], [0], [1], [0, 0, 1, 1], [], []>} : vector<80x4xbf16>, vector<4x8xbf16>, vector<80x8xf32> -> vector<80x8xf32>
    %50 = arith.addf %44, %49 : vector<80x8xf32>
    %c2 = arith.constant 2 : index
    %c0_25 = arith.constant 0 : index
    %51 = vector.load %arg9[%c2, %c0_25] : memref<108x4xf32, #tpu.memory_space<vmem>>, vector<80x4xf32>
    %52 = arith.truncf %51 : vector<80x4xf32> to vector<80x4xbf16>
    %c2_26 = arith.constant 2 : index
    %c0_27 = arith.constant 0 : index
    %c0_28 = arith.constant 0 : index
    %53 = vector.load %arg2[%c2_26, %c0_27, %c0_28] : memref<9x4x8xbf16, #tpu.memory_space<vmem>>, vector<1x4x8xbf16>
    %54 = vector.shape_cast %53 : vector<1x4x8xbf16> to vector<4x8xbf16>
    %cst_29 = arith.constant dense<0.000000e+00> : vector<80x8xf32>
    %55 = tpu.matmul %52, %54, %cst_29 {dimension_numbers = #tpu.dot_dimension_numbers<[1], [0], [0], [1], [0, 0, 1, 1], [], []>} : vector<80x4xbf16>, vector<4x8xbf16>, vector<80x8xf32> -> vector<80x8xf32>
    %56 = arith.addf %50, %55 : vector<80x8xf32>
    %c10 = arith.constant 10 : index
    %c0_30 = arith.constant 0 : index
    %57 = vector.load %arg9[%c10, %c0_30] : memref<108x4xf32, #tpu.memory_space<vmem>>, vector<80x4xf32>
    %58 = arith.truncf %57 : vector<80x4xf32> to vector<80x4xbf16>
    %c3 = arith.constant 3 : index
    %c0_31 = arith.constant 0 : index
    %c0_32 = arith.constant 0 : index
    %59 = vector.load %arg2[%c3, %c0_31, %c0_32] : memref<9x4x8xbf16, #tpu.memory_space<vmem>>, vector<1x4x8xbf16>
    %60 = vector.shape_cast %59 : vector<1x4x8xbf16> to vector<4x8xbf16>
    %cst_33 = arith.constant dense<0.000000e+00> : vector<80x8xf32>
    %61 = tpu.matmul %58, %60, %cst_33 {dimension_numbers = #tpu.dot_dimension_numbers<[1], [0], [0], [1], [0, 0, 1, 1], [], []>} : vector<80x4xbf16>, vector<4x8xbf16>, vector<80x8xf32> -> vector<80x8xf32>
    %62 = arith.addf %56, %61 : vector<80x8xf32>
    %c11_34 = arith.constant 11 : index
    %c0_35 = arith.constant 0 : index
    %63 = vector.load %arg9[%c11_34, %c0_35] : memref<108x4xf32, #tpu.memory_space<vmem>>, vector<80x4xf32>
    %64 = arith.truncf %63 : vector<80x4xf32> to vector<80x4xbf16>
    %c4 = arith.constant 4 : index
    %c0_36 = arith.constant 0 : index
    %c0_37 = arith.constant 0 : index
    %65 = vector.load %arg2[%c4, %c0_36, %c0_37] : memref<9x4x8xbf16, #tpu.memory_space<vmem>>, vector<1x4x8xbf16>
    %66 = vector.shape_cast %65 : vector<1x4x8xbf16> to vector<4x8xbf16>
    %cst_38 = arith.constant dense<0.000000e+00> : vector<80x8xf32>
    %67 = tpu.matmul %64, %66, %cst_38 {dimension_numbers = #tpu.dot_dimension_numbers<[1], [0], [0], [1], [0, 0, 1, 1], [], []>} : vector<80x4xbf16>, vector<4x8xbf16>, vector<80x8xf32> -> vector<80x8xf32>
    %68 = arith.addf %62, %67 : vector<80x8xf32>
    %c12 = arith.constant 12 : index
    %c0_39 = arith.constant 0 : index
    %69 = vector.load %arg9[%c12, %c0_39] : memref<108x4xf32, #tpu.memory_space<vmem>>, vector<80x4xf32>
    %70 = arith.truncf %69 : vector<80x4xf32> to vector<80x4xbf16>
    %c5 = arith.constant 5 : index
    %c0_40 = arith.constant 0 : index
    %c0_41 = arith.constant 0 : index
    %71 = vector.load %arg2[%c5, %c0_40, %c0_41] : memref<9x4x8xbf16, #tpu.memory_space<vmem>>, vector<1x4x8xbf16>
    %72 = vector.shape_cast %71 : vector<1x4x8xbf16> to vector<4x8xbf16>
    %cst_42 = arith.constant dense<0.000000e+00> : vector<80x8xf32>
    %73 = tpu.matmul %70, %72, %cst_42 {dimension_numbers = #tpu.dot_dimension_numbers<[1], [0], [0], [1], [0, 0, 1, 1], [], []>} : vector<80x4xbf16>, vector<4x8xbf16>, vector<80x8xf32> -> vector<80x8xf32>
    %74 = arith.addf %68, %73 : vector<80x8xf32>
    %c20 = arith.constant 20 : index
    %c0_43 = arith.constant 0 : index
    %75 = vector.load %arg9[%c20, %c0_43] : memref<108x4xf32, #tpu.memory_space<vmem>>, vector<80x4xf32>
    %76 = arith.truncf %75 : vector<80x4xf32> to vector<80x4xbf16>
    %c6 = arith.constant 6 : index
    %c0_44 = arith.constant 0 : index
    %c0_45 = arith.constant 0 : index
    %77 = vector.load %arg2[%c6, %c0_44, %c0_45] : memref<9x4x8xbf16, #tpu.memory_space<vmem>>, vector<1x4x8xbf16>
    %78 = vector.shape_cast %77 : vector<1x4x8xbf16> to vector<4x8xbf16>
    %cst_46 = arith.constant dense<0.000000e+00> : vector<80x8xf32>
    %79 = tpu.matmul %76, %78, %cst_46 {dimension_numbers = #tpu.dot_dimension_numbers<[1], [0], [0], [1], [0, 0, 1, 1], [], []>} : vector<80x4xbf16>, vector<4x8xbf16>, vector<80x8xf32> -> vector<80x8xf32>
    %80 = arith.addf %74, %79 : vector<80x8xf32>
    %c21_47 = arith.constant 21 : index
    %c0_48 = arith.constant 0 : index
    %81 = vector.load %arg9[%c21_47, %c0_48] : memref<108x4xf32, #tpu.memory_space<vmem>>, vector<80x4xf32>
    %82 = arith.truncf %81 : vector<80x4xf32> to vector<80x4xbf16>
    %c7 = arith.constant 7 : index
    %c0_49 = arith.constant 0 : index
    %c0_50 = arith.constant 0 : index
    %83 = vector.load %arg2[%c7, %c0_49, %c0_50] : memref<9x4x8xbf16, #tpu.memory_space<vmem>>, vector<1x4x8xbf16>
    %84 = vector.shape_cast %83 : vector<1x4x8xbf16> to vector<4x8xbf16>
    %cst_51 = arith.constant dense<0.000000e+00> : vector<80x8xf32>
    %85 = tpu.matmul %82, %84, %cst_51 {dimension_numbers = #tpu.dot_dimension_numbers<[1], [0], [0], [1], [0, 0, 1, 1], [], []>} : vector<80x4xbf16>, vector<4x8xbf16>, vector<80x8xf32> -> vector<80x8xf32>
    %86 = arith.addf %80, %85 : vector<80x8xf32>
    %c22 = arith.constant 22 : index
    %c0_52 = arith.constant 0 : index
    %87 = vector.load %arg9[%c22, %c0_52] : memref<108x4xf32, #tpu.memory_space<vmem>>, vector<80x4xf32>
    %88 = arith.truncf %87 : vector<80x4xf32> to vector<80x4xbf16>
    %c8 = arith.constant 8 : index
    %c0_53 = arith.constant 0 : index
    %c0_54 = arith.constant 0 : index
    %89 = vector.load %arg2[%c8, %c0_53, %c0_54] : memref<9x4x8xbf16, #tpu.memory_space<vmem>>, vector<1x4x8xbf16>
    %90 = vector.shape_cast %89 : vector<1x4x8xbf16> to vector<4x8xbf16>
    %cst_55 = arith.constant dense<0.000000e+00> : vector<80x8xf32>
    %91 = tpu.matmul %88, %90, %cst_55 {dimension_numbers = #tpu.dot_dimension_numbers<[1], [0], [0], [1], [0, 0, 1, 1], [], []>} : vector<80x4xbf16>, vector<4x8xbf16>, vector<80x8xf32> -> vector<80x8xf32>
    %92 = arith.addf %86, %91 : vector<80x8xf32>
    %93 = tpu.iota {dimensions = array<i32: 0>} : vector<80x1xi32>
    %c10_i32 = arith.constant 10 : i32
    %c0_i32 = arith.constant 0 : i32
    %94 = arith.cmpi eq, %c10_i32, %c0_i32 : i32
    %c1_i32 = arith.constant 1 : i32
    %95 = arith.select %94, %c1_i32, %c10_i32 : i32
    %96 = vector.broadcast %95 : i32 to vector<80x1xi32>
    %97 = arith.remsi %93, %96 : vector<80x1xi32>
    %c0_i32_56 = arith.constant 0 : i32
    %98 = vector.broadcast %c0_i32_56 : i32 to vector<80x1xi32>
    %99 = arith.cmpi ne, %97, %98 : vector<80x1xi32>
    %c0_i32_57 = arith.constant 0 : i32
    %100 = vector.broadcast %c0_i32_57 : i32 to vector<80x1xi32>
    %101 = arith.cmpi slt, %97, %100 : vector<80x1xi32>
    %c0_i32_58 = arith.constant 0 : i32
    %102 = arith.cmpi slt, %95, %c0_i32_58 : i32
    %103 = vector.broadcast %102 : i1 to vector<80x1xi1>
    %104 = vector.broadcast %103 : vector<80x1xi1> to vector<80x1xi1>
    %105 = arith.xori %101, %104 : vector<80x1xi1>
    %106 = arith.andi %105, %99 : vector<80x1xi1>
    %107 = vector.broadcast %95 : i32 to vector<80x1xi32>
    %108 = arith.addi %97, %107 : vector<80x1xi32>
    %109 = arith.select %106, %108, %97 : vector<80x1xi1>, vector<80x1xi32>
    %c8_i32 = arith.constant 8 : i32
    %110 = vector.broadcast %c8_i32 : i32 to vector<80x1xi32>
    %111 = arith.cmpi slt, %109, %110 : vector<80x1xi32>
    %112 = arith.extui %111 : vector<80x1xi1> to vector<80x1xi32>
    %113 = arith.sitofp %112 : vector<80x1xi32> to vector<80x1xf32>
    %c0_59 = arith.constant 0 : index
    %c0_60 = arith.constant 0 : index
    %114 = vector.load %arg3[%c0_59, %c0_60] : memref<1x8xf32, #tpu.memory_space<vmem>>, vector<1x8xf32>
    %115 = vector.broadcast %114 : vector<1x8xf32> to vector<80x8xf32>
    %116 = arith.mulf %92, %115 : vector<80x8xf32>
    %c0_61 = arith.constant 0 : index
    %c0_62 = arith.constant 0 : index
    %117 = vector.load %arg4[%c0_61, %c0_62] : memref<1x8xf32, #tpu.memory_space<vmem>>, vector<1x8xf32>
    %118 = vector.broadcast %117 : vector<1x8xf32> to vector<80x8xf32>
    %119 = arith.addf %116, %118 : vector<80x8xf32>
    %cst_63 = arith.constant 0.000000e+00 : f32
    %120 = vector.broadcast %cst_63 : f32 to vector<80x8xf32>
    %121 = arith.maximumf %119, %120 : vector<80x8xf32>
    %122 = vector.broadcast %113 : vector<80x1xf32> to vector<80x8xf32>
    %123 = arith.mulf %121, %122 : vector<80x8xf32>
    %cst_64 = arith.constant 0.000000e+00 : f32
    %124 = vector.broadcast %cst_64 : f32 to vector<11x8xf32>
    %c0_65 = arith.constant 0 : index
    %c0_66 = arith.constant 0 : index
    %125 = vector.load %arg10[%c0_65, %c0_66] : memref<108x8xf32, #tpu.memory_space<vmem>>, vector<11x8xf32>
    tpu.vector_store %arg10[%c0_65, %c0_66], %124 {strides = array<i32>} : memref<108x8xf32, #tpu.memory_space<vmem>>, vector<11x8xf32>,
    %c11_67 = arith.constant 11 : index
    %c0_68 = arith.constant 0 : index
    %126 = vector.load %arg10[%c11_67, %c0_68] : memref<108x8xf32, #tpu.memory_space<vmem>>, vector<80x8xf32>
    tpu.vector_store %arg10[%c11_67, %c0_68], %123 {strides = array<i32>} : memref<108x8xf32, #tpu.memory_space<vmem>>, vector<80x8xf32>,
    %cst_69 = arith.constant 0.000000e+00 : f32
    %127 = vector.broadcast %cst_69 : f32 to vector<17x8xf32>
    %c91 = arith.constant 91 : index
    %c0_70 = arith.constant 0 : index
    %128 = vector.load %arg10[%c91, %c0_70] : memref<108x8xf32, #tpu.memory_space<vmem>>, vector<17x8xf32>
    tpu.vector_store %arg10[%c91, %c0_70], %127 {strides = array<i32>} : memref<108x8xf32, #tpu.memory_space<vmem>>, vector<17x8xf32>,
    %cst_71 = arith.constant 0.000000e+00 : f32
    %129 = vector.broadcast %cst_71 : f32 to vector<80x8xf32>
    %c0_72 = arith.constant 0 : index
    %c0_73 = arith.constant 0 : index
    %130 = vector.load %arg10[%c0_72, %c0_73] : memref<108x8xf32, #tpu.memory_space<vmem>>, vector<80x8xf32>
    %131 = arith.truncf %130 : vector<80x8xf32> to vector<80x8xbf16>
    %c0_74 = arith.constant 0 : index
    %c0_75 = arith.constant 0 : index
    %c0_76 = arith.constant 0 : index
    %132 = vector.load %arg5[%c0_74, %c0_75, %c0_76] : memref<9x8x8xbf16, #tpu.memory_space<vmem>>, vector<1x8x8xbf16>
    %133 = vector.shape_cast %132 : vector<1x8x8xbf16> to vector<8x8xbf16>
    %cst_77 = arith.constant dense<0.000000e+00> : vector<80x8xf32>
    %134 = tpu.matmul %131, %133, %cst_77 {dimension_numbers = #tpu.dot_dimension_numbers<[1], [0], [0], [1], [0, 0, 1, 1], [], []>} : vector<80x8xbf16>, vector<8x8xbf16>, vector<80x8xf32> -> vector<80x8xf32>
    %135 = arith.addf %129, %134 : vector<80x8xf32>
    %c1_78 = arith.constant 1 : index
    %c0_79 = arith.constant 0 : index
    %136 = vector.load %arg10[%c1_78, %c0_79] : memref<108x8xf32, #tpu.memory_space<vmem>>, vector<80x8xf32>
    %137 = arith.truncf %136 : vector<80x8xf32> to vector<80x8xbf16>
    %c1_80 = arith.constant 1 : index
    %c0_81 = arith.constant 0 : index
    %c0_82 = arith.constant 0 : index
    %138 = vector.load %arg5[%c1_80, %c0_81, %c0_82] : memref<9x8x8xbf16, #tpu.memory_space<vmem>>, vector<1x8x8xbf16>
    %139 = vector.shape_cast %138 : vector<1x8x8xbf16> to vector<8x8xbf16>
    %cst_83 = arith.constant dense<0.000000e+00> : vector<80x8xf32>
    %140 = tpu.matmul %137, %139, %cst_83 {dimension_numbers = #tpu.dot_dimension_numbers<[1], [0], [0], [1], [0, 0, 1, 1], [], []>} : vector<80x8xbf16>, vector<8x8xbf16>, vector<80x8xf32> -> vector<80x8xf32>
    %141 = arith.addf %135, %140 : vector<80x8xf32>
    %c2_84 = arith.constant 2 : index
    %c0_85 = arith.constant 0 : index
    %142 = vector.load %arg10[%c2_84, %c0_85] : memref<108x8xf32, #tpu.memory_space<vmem>>, vector<80x8xf32>
    %143 = arith.truncf %142 : vector<80x8xf32> to vector<80x8xbf16>
    %c2_86 = arith.constant 2 : index
    %c0_87 = arith.constant 0 : index
    %c0_88 = arith.constant 0 : index
    %144 = vector.load %arg5[%c2_86, %c0_87, %c0_88] : memref<9x8x8xbf16, #tpu.memory_space<vmem>>, vector<1x8x8xbf16>
    %145 = vector.shape_cast %144 : vector<1x8x8xbf16> to vector<8x8xbf16>
    %cst_89 = arith.constant dense<0.000000e+00> : vector<80x8xf32>
    %146 = tpu.matmul %143, %145, %cst_89 {dimension_numbers = #tpu.dot_dimension_numbers<[1], [0], [0], [1], [0, 0, 1, 1], [], []>} : vector<80x8xbf16>, vector<8x8xbf16>, vector<80x8xf32> -> vector<80x8xf32>
    %147 = arith.addf %141, %146 : vector<80x8xf32>
    %c10_90 = arith.constant 10 : index
    %c0_91 = arith.constant 0 : index
    %148 = vector.load %arg10[%c10_90, %c0_91] : memref<108x8xf32, #tpu.memory_space<vmem>>, vector<80x8xf32>
    %149 = arith.truncf %148 : vector<80x8xf32> to vector<80x8xbf16>
    %c3_92 = arith.constant 3 : index
    %c0_93 = arith.constant 0 : index
    %c0_94 = arith.constant 0 : index
    %150 = vector.load %arg5[%c3_92, %c0_93, %c0_94] : memref<9x8x8xbf16, #tpu.memory_space<vmem>>, vector<1x8x8xbf16>
    %151 = vector.shape_cast %150 : vector<1x8x8xbf16> to vector<8x8xbf16>
    %cst_95 = arith.constant dense<0.000000e+00> : vector<80x8xf32>
    %152 = tpu.matmul %149, %151, %cst_95 {dimension_numbers = #tpu.dot_dimension_numbers<[1], [0], [0], [1], [0, 0, 1, 1], [], []>} : vector<80x8xbf16>, vector<8x8xbf16>, vector<80x8xf32> -> vector<80x8xf32>
    %153 = arith.addf %147, %152 : vector<80x8xf32>
    %c11_96 = arith.constant 11 : index
    %c0_97 = arith.constant 0 : index
    %154 = vector.load %arg10[%c11_96, %c0_97] : memref<108x8xf32, #tpu.memory_space<vmem>>, vector<80x8xf32>
    %155 = arith.truncf %154 : vector<80x8xf32> to vector<80x8xbf16>
    %c4_98 = arith.constant 4 : index
    %c0_99 = arith.constant 0 : index
    %c0_100 = arith.constant 0 : index
    %156 = vector.load %arg5[%c4_98, %c0_99, %c0_100] : memref<9x8x8xbf16, #tpu.memory_space<vmem>>, vector<1x8x8xbf16>
    %157 = vector.shape_cast %156 : vector<1x8x8xbf16> to vector<8x8xbf16>
    %cst_101 = arith.constant dense<0.000000e+00> : vector<80x8xf32>
    %158 = tpu.matmul %155, %157, %cst_101 {dimension_numbers = #tpu.dot_dimension_numbers<[1], [0], [0], [1], [0, 0, 1, 1], [], []>} : vector<80x8xbf16>, vector<8x8xbf16>, vector<80x8xf32> -> vector<80x8xf32>
    %159 = arith.addf %153, %158 : vector<80x8xf32>
    %c12_102 = arith.constant 12 : index
    %c0_103 = arith.constant 0 : index
    %160 = vector.load %arg10[%c12_102, %c0_103] : memref<108x8xf32, #tpu.memory_space<vmem>>, vector<80x8xf32>
    %161 = arith.truncf %160 : vector<80x8xf32> to vector<80x8xbf16>
    %c5_104 = arith.constant 5 : index
    %c0_105 = arith.constant 0 : index
    %c0_106 = arith.constant 0 : index
    %162 = vector.load %arg5[%c5_104, %c0_105, %c0_106] : memref<9x8x8xbf16, #tpu.memory_space<vmem>>, vector<1x8x8xbf16>
    %163 = vector.shape_cast %162 : vector<1x8x8xbf16> to vector<8x8xbf16>
    %cst_107 = arith.constant dense<0.000000e+00> : vector<80x8xf32>
    %164 = tpu.matmul %161, %163, %cst_107 {dimension_numbers = #tpu.dot_dimension_numbers<[1], [0], [0], [1], [0, 0, 1, 1], [], []>} : vector<80x8xbf16>, vector<8x8xbf16>, vector<80x8xf32> -> vector<80x8xf32>
    %165 = arith.addf %159, %164 : vector<80x8xf32>
    %c20_108 = arith.constant 20 : index
    %c0_109 = arith.constant 0 : index
    %166 = vector.load %arg10[%c20_108, %c0_109] : memref<108x8xf32, #tpu.memory_space<vmem>>, vector<80x8xf32>
    %167 = arith.truncf %166 : vector<80x8xf32> to vector<80x8xbf16>
    %c6_110 = arith.constant 6 : index
    %c0_111 = arith.constant 0 : index
    %c0_112 = arith.constant 0 : index
    %168 = vector.load %arg5[%c6_110, %c0_111, %c0_112] : memref<9x8x8xbf16, #tpu.memory_space<vmem>>, vector<1x8x8xbf16>
    %169 = vector.shape_cast %168 : vector<1x8x8xbf16> to vector<8x8xbf16>
    %cst_113 = arith.constant dense<0.000000e+00> : vector<80x8xf32>
    %170 = tpu.matmul %167, %169, %cst_113 {dimension_numbers = #tpu.dot_dimension_numbers<[1], [0], [0], [1], [0, 0, 1, 1], [], []>} : vector<80x8xbf16>, vector<8x8xbf16>, vector<80x8xf32> -> vector<80x8xf32>
    %171 = arith.addf %165, %170 : vector<80x8xf32>
    %c21_114 = arith.constant 21 : index
    %c0_115 = arith.constant 0 : index
    %172 = vector.load %arg10[%c21_114, %c0_115] : memref<108x8xf32, #tpu.memory_space<vmem>>, vector<80x8xf32>
    %173 = arith.truncf %172 : vector<80x8xf32> to vector<80x8xbf16>
    %c7_116 = arith.constant 7 : index
    %c0_117 = arith.constant 0 : index
    %c0_118 = arith.constant 0 : index
    %174 = vector.load %arg5[%c7_116, %c0_117, %c0_118] : memref<9x8x8xbf16, #tpu.memory_space<vmem>>, vector<1x8x8xbf16>
    %175 = vector.shape_cast %174 : vector<1x8x8xbf16> to vector<8x8xbf16>
    %cst_119 = arith.constant dense<0.000000e+00> : vector<80x8xf32>
    %176 = tpu.matmul %173, %175, %cst_119 {dimension_numbers = #tpu.dot_dimension_numbers<[1], [0], [0], [1], [0, 0, 1, 1], [], []>} : vector<80x8xbf16>, vector<8x8xbf16>, vector<80x8xf32> -> vector<80x8xf32>
    %177 = arith.addf %171, %176 : vector<80x8xf32>
    %c22_120 = arith.constant 22 : index
    %c0_121 = arith.constant 0 : index
    %178 = vector.load %arg10[%c22_120, %c0_121] : memref<108x8xf32, #tpu.memory_space<vmem>>, vector<80x8xf32>
    %179 = arith.truncf %178 : vector<80x8xf32> to vector<80x8xbf16>
    %c8_122 = arith.constant 8 : index
    %c0_123 = arith.constant 0 : index
    %c0_124 = arith.constant 0 : index
    %180 = vector.load %arg5[%c8_122, %c0_123, %c0_124] : memref<9x8x8xbf16, #tpu.memory_space<vmem>>, vector<1x8x8xbf16>
    %181 = vector.shape_cast %180 : vector<1x8x8xbf16> to vector<8x8xbf16>
    %cst_125 = arith.constant dense<0.000000e+00> : vector<80x8xf32>
    %182 = tpu.matmul %179, %181, %cst_125 {dimension_numbers = #tpu.dot_dimension_numbers<[1], [0], [0], [1], [0, 0, 1, 1], [], []>} : vector<80x8xbf16>, vector<8x8xbf16>, vector<80x8xf32> -> vector<80x8xf32>
    %183 = arith.addf %177, %182 : vector<80x8xf32>
    %c0_126 = arith.constant 0 : index
    %c0_127 = arith.constant 0 : index
    %184 = vector.load %arg6[%c0_126, %c0_127] : memref<1x8xf32, #tpu.memory_space<vmem>>, vector<1x8xf32>
    %185 = vector.broadcast %184 : vector<1x8xf32> to vector<80x8xf32>
    %186 = arith.mulf %183, %185 : vector<80x8xf32>
    %c0_128 = arith.constant 0 : index
    %c0_129 = arith.constant 0 : index
    %187 = vector.load %arg7[%c0_128, %c0_129] : memref<1x8xf32, #tpu.memory_space<vmem>>, vector<1x8xf32>
    %188 = vector.broadcast %187 : vector<1x8xf32> to vector<80x8xf32>
    %189 = arith.addf %186, %188 : vector<80x8xf32>
    %cst_130 = arith.constant 0.000000e+00 : f32
    %190 = vector.broadcast %cst_130 : f32 to vector<80x8xf32>
    %191 = arith.maximumf %189, %190 : vector<80x8xf32>
    %192 = vector.shape_cast %191 : vector<80x8xf32> to vector<1x80x8xf32>
    %c0_131 = arith.constant 0 : index
    %c0_132 = arith.constant 0 : index
    %c0_133 = arith.constant 0 : index
    %193 = vector.load %arg8[%c0_131, %c0_132, %c0_133] : memref<1x80x8xf32, #tpu.memory_space<vmem>>, vector<1x80x8xf32>
    tpu.vector_store %arg8[%c0_131, %c0_132, %c0_133], %192 {strides = array<i32>} : memref<1x80x8xf32, #tpu.memory_space<vmem>>, vector<1x80x8xf32>,
    return
  }
  func.func @transform_0(%arg0: i32) -> (i32, i32, i32, i32) {
    %c0_i32 = arith.constant 0 : i32
    %c0_i32_0 = arith.constant 0 : i32
    %c0_i32_1 = arith.constant 0 : i32
    %c0_i32_2 = arith.constant 0 : i32
    return %arg0, %c0_i32, %c0_i32_0, %c0_i32_1 : i32, i32, i32, i32
  }
  func.func @transform_1(%arg0: i32) -> (i32, i32, i32) {
    %c0_i32 = arith.constant 0 : i32
    %c0_i32_0 = arith.constant 0 : i32
    %c0_i32_1 = arith.constant 0 : i32
    %c0_i32_2 = arith.constant 0 : i32
    return %c0_i32, %c0_i32_0, %c0_i32_1 : i32, i32, i32
  }
  func.func @transform_2(%arg0: i32) -> (i32, i32) {
    %c0_i32 = arith.constant 0 : i32
    %c0_i32_0 = arith.constant 0 : i32
    %c0_i32_1 = arith.constant 0 : i32
    return %c0_i32, %c0_i32_0 : i32, i32
  }
  func.func @transform_3(%arg0: i32) -> (i32, i32) {
    %c0_i32 = arith.constant 0 : i32
    %c0_i32_0 = arith.constant 0 : i32
    %c0_i32_1 = arith.constant 0 : i32
    return %c0_i32, %c0_i32_0 : i32, i32
  }
  func.func @transform_4(%arg0: i32) -> (i32, i32, i32) {
    %c0_i32 = arith.constant 0 : i32
    %c0_i32_0 = arith.constant 0 : i32
    %c0_i32_1 = arith.constant 0 : i32
    %c0_i32_2 = arith.constant 0 : i32
    return %c0_i32, %c0_i32_0, %c0_i32_1 : i32, i32, i32
  }
  func.func @transform_5(%arg0: i32) -> (i32, i32) {
    %c0_i32 = arith.constant 0 : i32
    %c0_i32_0 = arith.constant 0 : i32
    %c0_i32_1 = arith.constant 0 : i32
    return %c0_i32, %c0_i32_0 : i32, i32
  }
  func.func @transform_6(%arg0: i32) -> (i32, i32) {
    %c0_i32 = arith.constant 0 : i32
    %c0_i32_0 = arith.constant 0 : i32
    %c0_i32_1 = arith.constant 0 : i32
    return %c0_i32, %c0_i32_0 : i32, i32
  }
  func.func @transform_7(%arg0: i32) -> (i32, i32, i32) {
    %c0_i32 = arith.constant 0 : i32
    %c0_i32_0 = arith.constant 0 : i32
    %c0_i32_1 = arith.constant 0 : i32
    return %arg0, %c0_i32, %c0_i32_0 : i32, i32, i32
  }
}

</mosaic_0001>

<llo_original>
// kernel: down_pallas.1
$region0: #{down_pallas.1}
  #allocation0 [shape = 'u32[]', space=smem, size = 0x4, offset = 0x4, fixed_abs, tag = 'smem constant byte address 0x4 - core index']
  #allocation1 [shape = 'u32[144,128]{1,0:T(1,128)}', space=vmem, size = 0x12000, scoped, tag = 'internal scratch']
  #allocation2 [shape = 'f32[108,4]{1,0:T(8,128)}', space=vmem, size = 0xe000, scoped, tag = 'scratch operand']
  #allocation3 [shape = 'f32[108,8]{1,0:T(8,128)}', space=vmem, size = 0xe000, scoped, tag = 'scratch operand']
  %s0 = inlined_call_operand.hbm [shape: bf16[2,16,8,8], index: 0, kind: input, shape index: {}]
  %s1 = inlined_call_operand.hbm [shape: bf16[9,4,8], index: 1, kind: input, shape index: {}]
  %s2 = inlined_call_operand.hbm [shape: f32[1,8], index: 2, kind: input, shape index: {}]
  %s3 = inlined_call_operand.hbm [shape: f32[1,8], index: 3, kind: input, shape index: {}]
  %s4 = inlined_call_operand.hbm [shape: bf16[9,8,8], index: 4, kind: input, shape index: {}]
  %s5 = inlined_call_operand.hbm [shape: f32[1,8], index: 5, kind: input, shape index: {}]
  %s6 = inlined_call_operand.hbm [shape: f32[1,8], index: 6, kind: input, shape index: {}]
  %s7 = inlined_call_operand.hbm [shape: f32[2,80,8], index: 7, kind: output, shape index: {}]
  %s8 = sld [smem:[#allocation0]]
  $region89: #{down_pallas.1} parent=0
    _
  %s10 = ssub.s32 1, %s8
  %s11 = scalar_select 0, %s10, %s8
  $region1: #{down_pallas.1} parent=0
    #allocation4 [shape = 'u8[65536]{0}', space=vmem, size = 0x10000, scoped, tag = 'input window, operand 0']
    #allocation5 [shape = 's32[2]{0}', space=sflag, size = 0x8, scoped, tag = 'scoped memory for down_pallas.1']
    #allocation6 [shape = 's32[2]{0}', space=sflag, size = 0x8, scoped, tag = 'scoped memory for down_pallas.1']
    #allocation7 [shape = 'u8[9216]{0}', space=vmem, size = 0x2400, scoped, tag = 'input window, operand 1, single buffered']
    #allocation8 [shape = 's32[1]{0}', space=sflag, size = 0x4, scoped, tag = 'scoped memory for down_pallas.1']
    #allocation9 [shape = 'u8[512]{0}', space=vmem, size = 0x400, scoped, tag = 'input window, operand 2, single buffered']
    #allocation10 [shape = 'u8[512]{0}', space=vmem, size = 0x400, scoped, tag = 'input window, operand 3, single buffered']
    #allocation11 [shape = 's32[1]{0}', space=sflag, size = 0x4, scoped, tag = 'scoped memory for down_pallas.1']
    #allocation12 [shape = 'u8[18432]{0}', space=vmem, size = 0x4800, scoped, tag = 'input window, operand 4, single buffered']
    #allocation13 [shape = 'u8[512]{0}', space=vmem, size = 0x400, scoped, tag = 'input window, operand 5, single buffered']
    #allocation14 [shape = 's32[1]{0}', space=sflag, size = 0x4, scoped, tag = 'scoped memory for down_pallas.1']
    #allocation15 [shape = 'u8[512]{0}', space=vmem, size = 0x400, scoped, tag = 'input window, operand 6, single buffered']
    #allocation16 [shape = 'u8[81920]{0}', space=vmem, size = 0x14000, scoped, tag = 'output window, operand 0']
    %12 = vsyncpa [#allocation5], 0
    %s13 = scalar_lea.sflag [#allocation5], 1
    %14 = vsyncpa %s13, 0
    %15 = vsyncpa [#allocation8], 0
    %16 = vsyncpa [#allocation11], 0
    %17 = vsyncpa [#allocation14], 0
    %18 = vsyncpa [#allocation6], 0
    %s19 = scalar_lea.sflag [#allocation6], 1
    %20 = vsyncpa %s19, 0
    loop: start=0, step=1, limit=4
    $region2: #{down_pallas.1} parent=1 // loop_pre_header
      _
    $region3: #{down_pallas.1} parent=1 // loop_header
      %s22 = sphi 0, %s26
      %p23 = scmp.ge.s32.totalorder %s22, 4
      %s32 = sphi 0, %s34
      %s35 = sphi 0, %s32
      %s36 = sphi 0, %s35
      %s52 = sphi 0, %s36
      %s56 = sphi 0, %s56
      %s58 = sphi 0, %s56
      %s59 = sphi 0, %s58
      %s73 = sphi 0, %s59
      %s77 = sphi 0, %s77
      %s79 = sphi 0, %s77
      %s80 = sphi 0, %s79
      %s94 = sphi 0, %s80
      %s98 = sphi 0, %s98
      %s100 = sphi 0, %s98
      %s101 = sphi 0, %s100
      %s115 = sphi 0, %s101
      %s119 = sphi 0, %s119
      %s121 = sphi 0, %s119
      %s122 = sphi 0, %s121
      %s136 = sphi 0, %s122
      %s140 = sphi 0, %s140
      %s142 = sphi 0, %s140
      %s143 = sphi 0, %s142
      %s157 = sphi 0, %s143
      %s161 = sphi 0, %s161
      %s163 = sphi 0, %s161
      %s164 = sphi 0, %s163
      %s178 = sphi 0, %s164
      %s184 = sphi 0, %s186
      %s187 = sphi 0, %s184
      %s188 = sphi 0, %s187
      %s204 = sphi 0, %s188
    $region4: #{down_pallas.1} parent=1 // loop_header_branch
      %25 = sbr.rel (%p23) target = $region8
    $region5: #{down_pallas.1} parent=1 // loop_body
      %s27 = ssub.s32 %s22, 1
      %s28 = ssub.s32 %s22, 2
      %s29 = sadd.s32 %s22, 1
      %s30 = ssub.s32 %s22, %s29
      %p31 = scmp.eq.s32.totalorder %s30, 0
      %s33 = sadd.s32 %s32, 1
      %s34 = scalar_select %p31, %s32, %s33
      %p37 = pneg %p31
      %p38 = scmp.eq.s32.totalorder %s22, 1
      %p39 = por %p37, %p38
      %p40 = scmp.ne.s32.totalorder %s32, %s35
      %p41 = scmp.eq.s32.totalorder %s22, 0
      %p42 = por %p40, %p41
      %p43 = scmp.ne.s32.totalorder %s32, %s35
      %p44 = scmp.eq.s32.totalorder %s27, 1
      %p45 = por %p43, %p44
      %p46 = scmp.ne.s32.totalorder %s35, %s36
      %p47 = scmp.eq.s32.totalorder %s27, 0
      %p48 = por %p46, %p47
      %p49 = scmp.ne.s32.totalorder %s35, %s36
      %p50 = scmp.eq.s32.totalorder %s28, 1
      %p51 = por %p49, %p50
      %p53 = scmp.ne.s32.totalorder %s36, %s52
      %p54 = scmp.eq.s32.totalorder %s28, 0
      %p55 = por %p53, %p54
      %s57 = sadd.s32 %s56, 1
      %p60 = scmp.eq.s32.totalorder %s22, 1
      %p61 = scmp.ne.s32.totalorder %s56, %s58
      %p62 = scmp.eq.s32.totalorder %s22, 0
      %p63 = por %p61, %p62
      %p64 = scmp.ne.s32.totalorder %s56, %s58
      %p65 = scmp.eq.s32.totalorder %s27, 1
      %p66 = por %p64, %p65
      %p67 = scmp.ne.s32.totalorder %s58, %s59
      %p68 = scmp.eq.s32.totalorder %s27, 0
      %p69 = por %p67, %p68
      %p70 = scmp.ne.s32.totalorder %s58, %s59
      %p71 = scmp.eq.s32.totalorder %s28, 1
      %p72 = por %p70, %p71
      %p74 = scmp.ne.s32.totalorder %s59, %s73
      %p75 = scmp.eq.s32.totalorder %s28, 0
      %p76 = por %p74, %p75
      %s78 = sadd.s32 %s77, 1
      %p81 = scmp.eq.s32.totalorder %s22, 1
      %p82 = scmp.ne.s32.totalorder %s77, %s79
      %p83 = scmp.eq.s32.totalorder %s22, 0
      %p84 = por %p82, %p83
      %p85 = scmp.ne.s32.totalorder %s77, %s79
      %p86 = scmp.eq.s32.totalorder %s27, 1
      %p87 = por %p85, %p86
      %p88 = scmp.ne.s32.totalorder %s79, %s80
      %p89 = scmp.eq.s32.totalorder %s27, 0
      %p90 = por %p88, %p89
      %p91 = scmp.ne.s32.totalorder %s79, %s80
      %p92 = scmp.eq.s32.totalorder %s28, 1
      %p93 = por %p91, %p92
      %p95 = scmp.ne.s32.totalorder %s80, %s94
      %p96 = scmp.eq.s32.totalorder %s28, 0
      %p97 = por %p95, %p96
      %s99 = sadd.s32 %s98, 1
      %p102 = scmp.eq.s32.totalorder %s22, 1
      %p103 = scmp.ne.s32.totalorder %s98, %s100
      %p104 = scmp.eq.s32.totalorder %s22, 0
      %p105 = por %p103, %p104
      %p106 = scmp.ne.s32.totalorder %s98, %s100
      %p107 = scmp.eq.s32.totalorder %s27, 1
      %p108 = por %p106, %p107
      %p109 = scmp.ne.s32.totalorder %s100, %s101
      %p110 = scmp.eq.s32.totalorder %s27, 0
      %p111 = por %p109, %p110
      %p112 = scmp.ne.s32.totalorder %s100, %s101
      %p113 = scmp.eq.s32.totalorder %s28, 1
      %p114 = por %p112, %p113
      %p116 = scmp.ne.s32.totalorder %s101, %s115
      %p117 = scmp.eq.s32.totalorder %s28, 0
      %p118 = por %p116, %p117
      %s120 = sadd.s32 %s119, 1
      %p123 = scmp.eq.s32.totalorder %s22, 1
      %p124 = scmp.ne.s32.totalorder %s119, %s121
      %p125 = scmp.eq.s32.totalorder %s22, 0
      %p126 = por %p124, %p125
      %p127 = scmp.ne.s32.totalorder %s119, %s121
      %p128 = scmp.eq.s32.totalorder %s27, 1
      %p129 = por %p127, %p128
      %p130 = scmp.ne.s32.totalorder %s121, %s122
      %p131 = scmp.eq.s32.totalorder %s27, 0
      %p132 = por %p130, %p131
      %p133 = scmp.ne.s32.totalorder %s121, %s122
      %p134 = scmp.eq.s32.totalorder %s28, 1
      %p135 = por %p133, %p134
      %p137 = scmp.ne.s32.totalorder %s122, %s136
      %p138 = scmp.eq.s32.totalorder %s28, 0
      %p139 = por %p137, %p138
      %s141 = sadd.s32 %s140, 1
      %p144 = scmp.eq.s32.totalorder %s22, 1
      %p145 = scmp.ne.s32.totalorder %s140, %s142
      %p146 = scmp.eq.s32.totalorder %s22, 0
      %p147 = por %p145, %p146
      %p148 = scmp.ne.s32.totalorder %s140, %s142
      %p149 = scmp.eq.s32.totalorder %s27, 1
      %p150 = por %p148, %p149
      %p151 = scmp.ne.s32.totalorder %s142, %s143
      %p152 = scmp.eq.s32.totalorder %s27, 0
      %p153 = por %p151, %p152
      %p154 = scmp.ne.s32.totalorder %s142, %s143
      %p155 = scmp.eq.s32.totalorder %s28, 1
      %p156 = por %p154, %p155
      %p158 = scmp.ne.s32.totalorder %s143, %s157
      %p159 = scmp.eq.s32.totalorder %s28, 0
      %p160 = por %p158, %p159
      %s162 = sadd.s32 %s161, 1
      %p165 = scmp.eq.s32.totalorder %s22, 1
      %p166 = scmp.ne.s32.totalorder %s161, %s163
      %p167 = scmp.eq.s32.totalorder %s22, 0
      %p168 = por %p166, %p167
      %p169 = scmp.ne.s32.totalorder %s161, %s163
      %p170 = scmp.eq.s32.totalorder %s27, 1
      %p171 = por %p169, %p170
      %p172 = scmp.ne.s32.totalorder %s163, %s164
      %p173 = scmp.eq.s32.totalorder %s27, 0
      %p174 = por %p172, %p173
      %p175 = scmp.ne.s32.totalorder %s163, %s164
      %p176 = scmp.eq.s32.totalorder %s28, 1
      %p177 = por %p175, %p176
      %p179 = scmp.ne.s32.totalorder %s164, %s178
      %p180 = scmp.eq.s32.totalorder %s28, 0
      %p181 = por %p179, %p180
      %s182 = ssub.s32 %s22, %s29
      %p183 = scmp.eq.s32.totalorder %s182, 0
      %s185 = sadd.s32 %s184, 1
      %s186 = scalar_select %p183, %s184, %s185
      %p189 = pneg %p183
      %p190 = scmp.eq.s32.totalorder %s22, 1
      %p191 = por %p189, %p190
      %p192 = scmp.ne.s32.totalorder %s184, %s187
      %p193 = scmp.eq.s32.totalorder %s22, 0
      %p194 = por %p192, %p193
      %p195 = scmp.ne.s32.totalorder %s184, %s187
      %p196 = scmp.eq.s32.totalorder %s27, 1
      %p197 = por %p195, %p196
      %p198 = scmp.ne.s32.totalorder %s187, %s188
      %p199 = scmp.eq.s32.totalorder %s27, 0
      %p200 = por %p198, %p199
      %p201 = scmp.ne.s32.totalorder %s187, %s188
      %p202 = scmp.eq.s32.totalorder %s28, 1
      %p203 = por %p201, %p202
      %p205 = scmp.ne.s32.totalorder %s188, %s204
      %p206 = scmp.eq.s32.totalorder %s28, 0
      %p207 = por %p205, %p206
      %p208 = scmp.le.s32.totalorder 1, %s22
      %p209 = scmp.lt.s32.totalorder %s22, 3
      %p210 = pnand %p208, %p209
      %p211 = pneg %p210
      // Predicated region
      $region9: #{down_pallas.1} parent=5 // pred_check
        _
      $region10: #{down_pallas.1} parent=5 // pred_check_branch
        %213 = sbr.rel (%p210) target = $region12
      $region11: #{down_pallas.1} parent=5 // pred_region
        %s214 = ssub.s32 %s22, 1
        // Predicated region
        $region13: #{down_pallas.1} parent=11 // pred_check
          %p215 = pneg %p69
        $region14: #{down_pallas.1} parent=11 // pred_check_branch
          %217 = sbr.rel (%p215) target = $region16
        $region15: #{down_pallas.1} parent=11 // pred_region
          %s219 = ssub.s32 288, 288
          %220 = vsyncadd [#allocation8], %s219
          %s221 = sshll.u32 [#allocation7], 4
          %s222 = int_to_ptr.vmem [resolvable:$true] %s221
          %227 = dma.hbm_to_vmem [thread:$0]  %s1, 288, %s222, [#allocation8], 32, 32, 2
        $region16: #{down_pallas.1} parent=11 // pred_fallthru
          _
        // Predicated region
        $region17: #{down_pallas.1} parent=11 // pred_check
          %p228 = pneg %p90
        $region18: #{down_pallas.1} parent=11 // pred_check_branch
          %230 = sbr.rel (%p228) target = $region20
        $region19: #{down_pallas.1} parent=11 // pred_region
          %s232 = ssub.s32 16, 16
          %233 = vsyncadd [#allocation8], %s232
          %s235 = sshll.u32 [#allocation9], 4
          %s236 = int_to_ptr.vmem [resolvable:$true] %s235
          %238 = dma.hbm_to_vmem [thread:$0]  %s2, 16, %s236, [#allocation8]
        $region20: #{down_pallas.1} parent=11 // pred_fallthru
          _
        // Predicated region
        $region21: #{down_pallas.1} parent=11 // pred_check
          %p239 = pneg %p111
        $region22: #{down_pallas.1} parent=11 // pred_check_branch
          %241 = sbr.rel (%p239) target = $region24
        $region23: #{down_pallas.1} parent=11 // pred_region
          %s243 = ssub.s32 16, 16
          %244 = vsyncadd [#allocation11], %s243
          %s246 = sshll.u32 [#allocation10], 4
          %s247 = int_to_ptr.vmem [resolvable:$true] %s246
          %249 = dma.hbm_to_vmem [thread:$0]  %s3, 16, %s247, [#allocation11]
        $region24: #{down_pallas.1} parent=11 // pred_fallthru
          _
        // Predicated region
        $region25: #{down_pallas.1} parent=11 // pred_check
          %p250 = pneg %p132
        $region26: #{down_pallas.1} parent=11 // pred_check_branch
          %252 = sbr.rel (%p250) target = $region28
        $region27: #{down_pallas.1} parent=11 // pred_region
          %s254 = ssub.s32 576, 576
          %255 = vsyncadd [#allocation11], %s254
          %s256 = sshll.u32 [#allocation12], 4
          %s257 = int_to_ptr.vmem [resolvable:$true] %s256
          %262 = dma.hbm_to_vmem [thread:$0]  %s4, 576, %s257, [#allocation11], 64, 64, 4
        $region28: #{down_pallas.1} parent=11 // pred_fallthru
          _
        // Predicated region
        $region29: #{down_pallas.1} parent=11 // pred_check
          %p263 = pneg %p153
        $region30: #{down_pallas.1} parent=11 // pred_check_branch
          %265 = sbr.rel (%p263) target = $region32
        $region31: #{down_pallas.1} parent=11 // pred_region
          %s267 = ssub.s32 16, 16
          %268 = vsyncadd [#allocation14], %s267
          %s270 = sshll.u32 [#allocation13], 4
          %s271 = int_to_ptr.vmem [resolvable:$true] %s270
          %273 = dma.hbm_to_vmem [thread:$0]  %s5, 16, %s271, [#allocation14]
        $region32: #{down_pallas.1} parent=11 // pred_fallthru
          _
        // Predicated region
        $region33: #{down_pallas.1} parent=11 // pred_check
          %p274 = pneg %p174
        $region34: #{down_pallas.1} parent=11 // pred_check_branch
          %276 = sbr.rel (%p274) target = $region36
        $region35: #{down_pallas.1} parent=11 // pred_region
          %s278 = ssub.s32 16, 16
          %279 = vsyncadd [#allocation14], %s278
          %s281 = sshll.u32 [#allocation15], 4
          %s282 = int_to_ptr.vmem [resolvable:$true] %s281
          %284 = dma.hbm_to_vmem [thread:$0]  %s6, 16, %s282, [#allocation14]
        $region36: #{down_pallas.1} parent=11 // pred_fallthru
          _
      $region12: #{down_pallas.1} parent=5 // pred_fallthru
        _
      %p285 = scmp.lt.s32.totalorder %s22, 2
      // Predicated region
      $region37: #{down_pallas.1} parent=5 // pred_check
        %p286 = pneg %p285
      $region38: #{down_pallas.1} parent=5 // pred_check_branch
        %288 = sbr.rel (%p286) target = $region40
      $region39: #{down_pallas.1} parent=5 // pred_region
        // Predicated region
        $region41: #{down_pallas.1} parent=39 // pred_check
          %p289 = pneg %p42
        $region42: #{down_pallas.1} parent=39 // pred_check_branch
          %291 = sbr.rel (%p289) target = $region44
        $region43: #{down_pallas.1} parent=39 // pred_region
          %s292 = sand.u32 %s32, 1
          %s293 = scalar_lea.sflag [#allocation5], %s292
          %s294 = sand.u32 %s32, 1
          %s295 = smul.addr %s294, 64
          %s296 = scalar_lea.vmem [#allocation4], %s295
          %s298 = ssub.s32 1024, 1024
          %299 = vsyncadd %s293, %s298
          %s300 = smul.addr %s22, 16
          %s301 = smul.addr %s300, 64
          %s302 = scalar_lea.hbm %s0, %s301
          %s303 = sshll.u32 %s296, 4
          %s304 = int_to_ptr.vmem [resolvable:$true] %s303
          %309 = dma.hbm_to_vmem [thread:$0]  %s302, 1024, %s304, %s293, 64, 64, 4
        $region44: #{down_pallas.1} parent=39 // pred_fallthru
          _
      $region40: #{down_pallas.1} parent=5 // pred_fallthru
        _
      %p310 = scmp.le.s32.totalorder 1, %s22
      %p311 = scmp.lt.s32.totalorder %s22, 3
      %p312 = pnand %p310, %p311
      %p313 = pneg %p312
      // Predicated region
      $region45: #{down_pallas.1} parent=5 // pred_check
        _
      $region46: #{down_pallas.1} parent=5 // pred_check_branch
        %315 = sbr.rel (%p312) target = $region48
      $region47: #{down_pallas.1} parent=5 // pred_region
        %s316 = ssub.s32 %s22, 1
        %s317 = sand.u32 %s35, 1
        %s318 = scalar_lea.sflag [#allocation5], %s317
        %s319 = sand.u32 %s35, 1
        %s320 = smul.addr %s319, 64
        %s321 = scalar_lea.vmem [#allocation4], %s320
        // Predicated region
        $region49: #{down_pallas.1} parent=47 // pred_check
          %p322 = pneg %p48
        $region50: #{down_pallas.1} parent=47 // pred_check_branch
          %324 = sbr.rel (%p322) target = $region52
        $region51: #{down_pallas.1} parent=47 // pred_region
          %325 = dma.done %s318, 1024
        $region52: #{down_pallas.1} parent=47 // pred_fallthru
          _
        // Predicated region
        $region53: #{down_pallas.1} parent=47 // pred_check
          %p326 = pneg %p69
        $region54: #{down_pallas.1} parent=47 // pred_check_branch
          %328 = sbr.rel (%p326) target = $region56
        $region55: #{down_pallas.1} parent=47 // pred_region
          %329 = dma.done [#allocation8], 288
        $region56: #{down_pallas.1} parent=47 // pred_fallthru
          _
        // Predicated region
        $region57: #{down_pallas.1} parent=47 // pred_check
          %p330 = pneg %p90
        $region58: #{down_pallas.1} parent=47 // pred_check_branch
          %332 = sbr.rel (%p330) target = $region60
        $region59: #{down_pallas.1} parent=47 // pred_region
          %333 = dma.done [#allocation8], 16
        $region60: #{down_pallas.1} parent=47 // pred_fallthru
          _
        // Predicated region
        $region61: #{down_pallas.1} parent=47 // pred_check
          %p334 = pneg %p111
        $region62: #{down_pallas.1} parent=47 // pred_check_branch
          %336 = sbr.rel (%p334) target = $region64
        $region63: #{down_pallas.1} parent=47 // pred_region
          %337 = dma.done [#allocation11], 16
        $region64: #{down_pallas.1} parent=47 // pred_fallthru
          _
        // Predicated region
        $region65: #{down_pallas.1} parent=47 // pred_check
          %p338 = pneg %p132
        $region66: #{down_pallas.1} parent=47 // pred_check_branch
          %340 = sbr.rel (%p338) target = $region68
        $region67: #{down_pallas.1} parent=47 // pred_region
          %341 = dma.done [#allocation11], 576
        $region68: #{down_pallas.1} parent=47 // pred_fallthru
          _
        // Predicated region
        $region69: #{down_pallas.1} parent=47 // pred_check
          %p342 = pneg %p153
        $region70: #{down_pallas.1} parent=47 // pred_check_branch
          %344 = sbr.rel (%p342) target = $region72
        $region71: #{down_pallas.1} parent=47 // pred_region
          %345 = dma.done [#allocation14], 16
        $region72: #{down_pallas.1} parent=47 // pred_fallthru
          _
        // Predicated region
        $region73: #{down_pallas.1} parent=47 // pred_check
          %p346 = pneg %p174
        $region74: #{down_pallas.1} parent=47 // pred_check_branch
          %348 = sbr.rel (%p346) target = $region76
        $region75: #{down_pallas.1} parent=47 // pred_region
          %349 = dma.done [#allocation14], 16
        $region76: #{down_pallas.1} parent=47 // pred_fallthru
          _
        %s350 = sand.u32 %s35, 1
        %s351 = scalar_lea.sflag [#allocation5], %s350
        %s352 = sand.u32 %s35, 1
        %s353 = smul.addr %s352, 64
        %s354 = scalar_lea.vmem [#allocation4], %s353
        %p355 = pneg %p48
        %p356 = pneg %p45
        %p357 = pneg %p69
        %p358 = pneg %p66
        %p359 = pneg %p90
        %p360 = pneg %p87
        %p361 = pneg %p111
        %p362 = pneg %p108
        %p363 = pneg %p132
        %p364 = pneg %p129
        %p365 = pneg %p153
        %p366 = pneg %p150
        %p367 = pneg %p174
        %p368 = pneg %p171
        %p369 = pneg %p200
        %p370 = pneg %p197
        %s371 = sand.u32 %s187, 1
        %s372 = scalar_lea.sflag [#allocation6], %s371
        %s373 = sand.u32 %s187, 1
        %s374 = smul.addr %s373, 80
        %s375 = scalar_lea.vmem [#allocation16], %s374
        %v377 = vld [vmem:[%s321] sm:$0xf]
        %v378 = vld [vmem:[%s321 + $0x4] sm:$0xf]
        %v379 = vld [vmem:[%s321 + $0x8] sm:$0xf]
        %v380 = vld [vmem:[%s321 + $0xc] sm:$0xf]
        %v381 = vld [vmem:[%s321 + $0x10] sm:$0xf]
        %v382 = vld [vmem:[%s321 + $0x14] sm:$0xf]
        %v383 = vld [vmem:[%s321 + $0x18] sm:$0xf]
        %v384 = vld [vmem:[%s321 + $0x1c] sm:$0xf]
        %v385 = vld [vmem:[%s321 + $0x20] sm:$0xf]
        %v386 = vld [vmem:[%s321 + $0x24] sm:$0xf]
        %v387 = vld [vmem:[%s321 + $0x28] sm:$0xf]
        %v388 = vld [vmem:[%s321 + $0x2c] sm:$0xf]
        %v389 = vld [vmem:[%s321 + $0x30] sm:$0xf]
        %v390 = vld [vmem:[%s321 + $0x34] sm:$0xf]
        %v391 = vld [vmem:[%s321 + $0x38] sm:$0xf]
        %v392 = vld [vmem:[%s321 + $0x3c] sm:$0xf]
        %409 = vrot.lane.b32.xlu0 %v377, 124
        %v410 = vpop.permute.xlu0 %409
        %411 = vrot.lane.b32.xlu0 %v378, 124
        %v412 = vpop.permute.xlu0 %411
        %413 = vrot.lane.b32.xlu0 %v379, 124
        %v414 = vpop.permute.xlu0 %413
        %415 = vrot.lane.b32.xlu0 %v380, 124
        %v416 = vpop.permute.xlu0 %415
        %417 = vrot.lane.b32.xlu0 %v381, 124
        %v418 = vpop.permute.xlu0 %417
        %419 = vrot.lane.b32.xlu0 %v382, 124
        %v420 = vpop.permute.xlu0 %419
        %421 = vrot.lane.b32.xlu0 %v383, 124
        %v422 = vpop.permute.xlu0 %421
        %423 = vrot.lane.b32.xlu0 %v384, 124
        %v424 = vpop.permute.xlu0 %423
        %425 = vrot.lane.b32.xlu0 %v385, 124
        %v426 = vpop.permute.xlu0 %425
        %427 = vrot.lane.b32.xlu0 %v386, 124
        %v428 = vpop.permute.xlu0 %427
        %429 = vrot.lane.b32.xlu0 %v387, 124
        %v430 = vpop.permute.xlu0 %429
        %431 = vrot.lane.b32.xlu0 %v388, 124
        %v432 = vpop.permute.xlu0 %431
        %433 = vrot.lane.b32.xlu0 %v389, 124
        %v434 = vpop.permute.xlu0 %433
        %435 = vrot.lane.b32.xlu0 %v390, 124
        %v436 = vpop.permute.xlu0 %435
        %437 = vrot.lane.b32.xlu0 %v391, 124
        %v438 = vpop.permute.xlu0 %437
        %439 = vrot.lane.b32.xlu0 %v392, 124
        %v440 = vpop.permute.xlu0 %439
        %v457 = vmax.bf16 %v377, %v410
        %v458 = vmax.bf16 %v378, %v412
        %v459 = vmax.bf16 %v379, %v414
        %v460 = vmax.bf16 %v380, %v416
        %v461 = vmax.bf16 %v381, %v418
        %v462 = vmax.bf16 %v382, %v420
        %v463 = vmax.bf16 %v383, %v422
        %v464 = vmax.bf16 %v384, %v424
        %v465 = vmax.bf16 %v385, %v426
        %v466 = vmax.bf16 %v386, %v428
        %v467 = vmax.bf16 %v387, %v430
        %v468 = vmax.bf16 %v388, %v432
        %v469 = vmax.bf16 %v389, %v434
        %v470 = vmax.bf16 %v390, %v436
        %v471 = vmax.bf16 %v391, %v438
        %v472 = vmax.bf16 %v392, %v440
        %v473 = vmax.bf16 %v457, %v458
        %v474 = vmax.bf16 %v459, %v460
        %v475 = vmax.bf16 %v461, %v462
        %v476 = vmax.bf16 %v463, %v464
        %v477 = vmax.bf16 %v465, %v466
        %v478 = vmax.bf16 %v467, %v468
        %v479 = vmax.bf16 %v469, %v470
        %v480 = vmax.bf16 %v471, %v472
        %v481 = vunpack.c.l.bf16 %v473
        %v482 = vunpack.c.l.bf16 %v474
        %v483 = vunpack.c.l.bf16 %v475
        %v484 = vunpack.c.l.bf16 %v476
        %v485 = vunpack.c.l.bf16 %v477
        %v486 = vunpack.c.l.bf16 %v478
        %v487 = vunpack.c.l.bf16 %v479
        %v488 = vunpack.c.l.bf16 %v480
        %vm489 = vcmask 31744
        %490 = vst.msk [vmem:[#allocation2] sm:$0xff] %vm489, 0.0
        %491 = vst.msk [vmem:[#allocation2 + $0x8] sm:$0xff] %vm489, 0.0
        %492 = vst.msk [vmem:[#allocation2 + $0x10] sm:$0xff] %vm489, 0.0
        %493 = vst.msk [vmem:[#allocation2 + $0x18] sm:$0xff] %vm489, 0.0
        %494 = vst.msk [vmem:[#allocation2 + $0x20] sm:$0xff] %vm489, 0.0
        %495 = vst.msk [vmem:[#allocation2 + $0x28] sm:$0xff] %vm489, 0.0
        %496 = vst.msk [vmem:[#allocation2 + $0x30] sm:$0xff] %vm489, 0.0
        %497 = vst.msk [vmem:[#allocation2 + $0x38] sm:$0xff] %vm489, 0.0
        %498 = vst.msk [vmem:[#allocation2 + $0x40] sm:$0xff] %vm489, 0.0
        %499 = vst.msk [vmem:[#allocation2 + $0x48] sm:$0xff] %vm489, 0.0
        %500 = vst.msk [vmem:[#allocation2 + $0x50] sm:$0xff] %vm489, 0.0
        %501 = vst.msk [vmem:[#allocation2 + $0x58] sm:$0xff] %vm489, 0.0
        %502 = vst.msk [vmem:[#allocation2 + $0x60] sm:$0xff] %vm489, 0.0
        %vm503 = vcmask 27648
        %504 = vst.msk [vmem:[#allocation2 + $0x68] sm:$0xf] %vm503, 0.0
        %505 = vst.msk [vmem:[#allocation2 + $0xb] sm:$0xff] %vm489, %v481
        %506 = vst.msk [vmem:[#allocation2 + $0x15] sm:$0xff] %vm489, %v482
        %507 = vst.msk [vmem:[#allocation2 + $0x1f] sm:$0xff] %vm489, %v483
        %508 = vst.msk [vmem:[#allocation2 + $0x29] sm:$0xff] %vm489, %v484
        %509 = vst.msk [vmem:[#allocation2 + $0x33] sm:$0xff] %vm489, %v485
        %510 = vst.msk [vmem:[#allocation2 + $0x3d] sm:$0xff] %vm489, %v486
        %511 = vst.msk [vmem:[#allocation2 + $0x47] sm:$0xff] %vm489, %v487
        %512 = vst.msk [vmem:[#allocation2 + $0x51] sm:$0xff] %vm489, %v488
        %v513 = vld [vmem:[#allocation2] sm:$0xff]
        %v514 = vld [vmem:[#allocation2 + $0x8] sm:$0xff]
        %v515 = vld [vmem:[#allocation2 + $0x10] sm:$0xff]
        %v516 = vld [vmem:[#allocation2 + $0x18] sm:$0xff]
        %v517 = vld [vmem:[#allocation2 + $0x20] sm:$0xff]
        %v518 = vld [vmem:[#allocation2 + $0x28] sm:$0xff]
        %v519 = vld [vmem:[#allocation2 + $0x30] sm:$0xff]
        %v520 = vld [vmem:[#allocation2 + $0x38] sm:$0xff]
        %v521 = vld [vmem:[#allocation2 + $0x40] sm:$0xff]
        %v522 = vld [vmem:[#allocation2 + $0x48] sm:$0xff]
        %v523 = vpack.c.bf16 %v514, %v513
        %v524 = vpack.c.bf16 %v516, %v515
        %v525 = vpack.c.bf16 %v518, %v517
        %v526 = vpack.c.bf16 %v520, %v519
        %v527 = vpack.c.bf16 %v522, %v521
        %v528 = vld [vmem:[#allocation7] sm:$0x3]
        %v529 = vld [vmem:[#allocation2 + $0x1] sm:$0xff]
        %v530 = vld [vmem:[#allocation2 + $0x9] sm:$0xff]
        %v531 = vld [vmem:[#allocation2 + $0x11] sm:$0xff]
        %v532 = vld [vmem:[#allocation2 + $0x19] sm:$0xff]
        %v533 = vld [vmem:[#allocation2 + $0x21] sm:$0xff]
        %v534 = vld [vmem:[#allocation2 + $0x29] sm:$0xff]
        %v535 = vld [vmem:[#allocation2 + $0x31] sm:$0xff]
        %v536 = vld [vmem:[#allocation2 + $0x39] sm:$0xff]
        %v537 = vld [vmem:[#allocation2 + $0x41] sm:$0xff]
        %v538 = vld [vmem:[#allocation2 + $0x49] sm:$0xff]
        %v539 = vpack.c.bf16 %v530, %v529
        %v540 = vpack.c.bf16 %v532, %v531
        %v541 = vpack.c.bf16 %v534, %v533
        %v542 = vpack.c.bf16 %v536, %v535
        %v543 = vpack.c.bf16 %v538, %v537
        %s544 = scalar_lea.vmem [#allocation7], 2
        %v545 = vld [vmem:[%s544] sm:$0x3]
        %v547 = vsel %vm489, %v539, 0
        %v550 = vsel %vm489, %v540, 0
        %v553 = vsel %vm489, %v541, 0
        %v556 = vsel %vm489, %v542, 0
        %v559 = vsel %vm489, %v543, 0
        %vm561 = vcmask 1041408
        %v563 = vsel %vm561, %v545, 0
        %565 = vmatprep.subr.bf16.mxu0 0
        %566 = vmatpush1.bf16.msra.mxu0 %v563
        %567 = vmatprep.subr.bf16.mxu0 0
        %568 = vmatpush1.bf16.msra.mxu0 0
        %569 = vmatprep.subr.bf16.mxu0 0
        %570 = vmatpush1.bf16.msra.mxu0 0
        %571 = vmatprep.subr.bf16.mxu0 0
        %572 = vmatpush1.bf16.msra.mxu0 0
        %573 = vmatprep.subr.bf16.mxu0 0
        %574 = vmatpush1.bf16.msra.mxu0 0
        %575 = vmatprep.subr.bf16.mxu0 0
        %576 = vmatpush1.bf16.msra.mxu0 0
        %577 = vmatprep.subr.bf16.mxu0 0
        %578 = vmatpush1.bf16.msra.mxu0 0
        %579 = vmatprep.subr.bf16.mxu0 0
        %580 = vmatpush1.bf16.msra.mxu0 0
        %581 = vmatprep.subr.bf16.mxu0 0
        %582 = vmatpush1.bf16.msra.mxu0 0
        %583 = vmatprep.subr.bf16.mxu0 0
        %584 = vmatpush1.bf16.msra.mxu0 0
        %585 = vmatprep.subr.bf16.mxu0 0
        %586 = vmatpush1.bf16.msra.mxu0 0
        %587 = vmatprep.subr.bf16.mxu0 0
        %588 = vmatpush1.bf16.msra.mxu0 0
        %589 = vmatprep.subr.bf16.mxu0 0
        %590 = vmatpush1.bf16.msra.mxu0 0
        %591 = vmatprep.subr.bf16.mxu0 0
        %592 = vmatpush1.bf16.msra.mxu0 0
        %593 = vmatprep.subr.bf16.mxu0 0
        %594 = vmatpush1.bf16.msra.mxu0 0
        %595 = vmatprep.subr.bf16.mxu0 0
        %596 = vmatpush1.bf16.msra.mxu0 0
        %597 = vmatprep.mubr.bf16.mxu0 0
        %598 = vmatmul.mubr.bf16.gmra.mrb[0].mxu0 %v547
        %v599 = vpop.f32.mrb[0].mxu0
        %v600 = vadd.f32 0.0, %v599
        %v601 = vpop.f32.mrb[0].mxu0
        %v602 = vpop.f32.mrb[0].mxu0
        %v603 = vadd.f32 0.0, %v602
        %v604 = vpop.f32.mrb[0].mxu0
        %605 = vmatprep.mubr.bf16.mxu0 0
        %606 = vmatmul.mubr.bf16.gmra.mrb[0].mxu0 %v550
        %v607 = vpop.f32.mrb[0].mxu0
        %v608 = vadd.f32 0.0, %v607
        %v609 = vpop.f32.mrb[0].mxu0
        %v610 = vpop.f32.mrb[0].mxu0
        %v611 = vadd.f32 0.0, %v610
        %v612 = vpop.f32.mrb[0].mxu0
        %613 = vmatprep.mubr.bf16.mxu0 0
        %614 = vmatmul.mubr.bf16.gmra.mrb[0].mxu0 %v553
        %v615 = vpop.f32.mrb[0].mxu0
        %v616 = vadd.f32 0.0, %v615
        %v617 = vpop.f32.mrb[0].mxu0
        %v618 = vpop.f32.mrb[0].mxu0
        %v619 = vadd.f32 0.0, %v618
        %v620 = vpop.f32.mrb[0].mxu0
        %621 = vmatprep.mubr.bf16.mxu0 0
        %622 = vmatmul.mubr.bf16.gmra.mrb[0].mxu0 %v556
        %v623 = vpop.f32.mrb[0].mxu0
        %v624 = vadd.f32 0.0, %v623
        %v625 = vpop.f32.mrb[0].mxu0
        %v626 = vpop.f32.mrb[0].mxu0
        %v627 = vadd.f32 0.0, %v626
        %v628 = vpop.f32.mrb[0].mxu0
        %629 = vmatprep.mubr.bf16.mxu0 0
        %630 = vmatmul.mubr.bf16.gmra.mrb[0].mxu0 %v559
        %v631 = vpop.f32.mrb[0].mxu0
        %v632 = vadd.f32 0.0, %v631
        %v633 = vpop.f32.mrb[0].mxu0
        %v634 = vpop.f32.mrb[0].mxu0
        %v635 = vadd.f32 0.0, %v634
        %v636 = vpop.f32.mrb[0].mxu0
        %637 = vdwg.mxu0
        %v639 = vsel %vm489, %v523, 0
        %v642 = vsel %vm489, %v524, 0
        %v645 = vsel %vm489, %v525, 0
        %v648 = vsel %vm489, %v526, 0
        %v651 = vsel %vm489, %v527, 0
        %v654 = vsel %vm561, %v528, 0
        %656 = vmatprep.subr.bf16.mxu0 0
        %657 = vmatpush1.bf16.msra.mxu0 %v654
        %658 = vmatprep.subr.bf16.mxu0 0
        %659 = vmatpush1.bf16.msra.mxu0 0
        %660 = vmatprep.subr.bf16.mxu0 0
        %661 = vmatpush1.bf16.msra.mxu0 0
        %662 = vmatprep.subr.bf16.mxu0 0
        %663 = vmatpush1.bf16.msra.mxu0 0
        %664 = vmatprep.subr.bf16.mxu0 0
        %665 = vmatpush1.bf16.msra.mxu0 0
        %666 = vmatprep.subr.bf16.mxu0 0
        %667 = vmatpush1.bf16.msra.mxu0 0
        %668 = vmatprep.subr.bf16.mxu0 0
        %669 = vmatpush1.bf16.msra.mxu0 0
        %670 = vmatprep.subr.bf16.mxu0 0
        %671 = vmatpush1.bf16.msra.mxu0 0
        %672 = vmatprep.subr.bf16.mxu0 0
        %673 = vmatpush1.bf16.msra.mxu0 0
        %674 = vmatprep.subr.bf16.mxu0 0
        %675 = vmatpush1.bf16.msra.mxu0 0
        %676 = vmatprep.subr.bf16.mxu0 0
        %677 = vmatpush1.bf16.msra.mxu0 0
        %678 = vmatprep.subr.bf16.mxu0 0
        %679 = vmatpush1.bf16.msra.mxu0 0
        %680 = vmatprep.subr.bf16.mxu0 0
        %681 = vmatpush1.bf16.msra.mxu0 0
        %682 = vmatprep.subr.bf16.mxu0 0
        %683 = vmatpush1.bf16.msra.mxu0 0
        %684 = vmatprep.subr.bf16.mxu0 0
        %685 = vmatpush1.bf16.msra.mxu0 0
        %686 = vmatprep.subr.bf16.mxu0 0
        %687 = vmatpush1.bf16.msra.mxu0 0
        %688 = vmatprep.mubr.bf16.mxu0 0
        %689 = vmatmul.mubr.bf16.gmra.mrb[0].mxu0 %v639
        %v690 = vpop.f32.mrb[0].mxu0
        %v691 = vadd.f32 %v600, %v690
        %v692 = vpop.f32.mrb[0].mxu0
        %v693 = vpop.f32.mrb[0].mxu0
        %v694 = vadd.f32 %v603, %v693
        %v695 = vpop.f32.mrb[0].mxu0
        %696 = vmatprep.mubr.bf16.mxu0 0
        %697 = vmatmul.mubr.bf16.gmra.mrb[0].mxu0 %v642
        %v698 = vpop.f32.mrb[0].mxu0
        %v699 = vadd.f32 %v608, %v698
        %v700 = vpop.f32.mrb[0].mxu0
        %v701 = vpop.f32.mrb[0].mxu0
        %v702 = vadd.f32 %v611, %v701
        %v703 = vpop.f32.mrb[0].mxu0
        %704 = vmatprep.mubr.bf16.mxu0 0
        %705 = vmatmul.mubr.bf16.gmra.mrb[0].mxu0 %v645
        %v706 = vpop.f32.mrb[0].mxu0
        %v707 = vadd.f32 %v616, %v706
        %v708 = vpop.f32.mrb[0].mxu0
        %v709 = vpop.f32.mrb[0].mxu0
        %v710 = vadd.f32 %v619, %v709
        %v711 = vpop.f32.mrb[0].mxu0
        %712 = vmatprep.mubr.bf16.mxu0 0
        %713 = vmatmul.mubr.bf16.gmra.mrb[0].mxu0 %v648
        %v714 = vpop.f32.mrb[0].mxu0
        %v715 = vadd.f32 %v624, %v714
        %v716 = vpop.f32.mrb[0].mxu0
        %v717 = vpop.f32.mrb[0].mxu0
        %v718 = vadd.f32 %v627, %v717
        %v719 = vpop.f32.mrb[0].mxu0
        %720 = vmatprep.mubr.bf16.mxu0 0
        %721 = vmatmul.mubr.bf16.gmra.mrb[0].mxu0 %v651
        %v722 = vpop.f32.mrb[0].mxu0
        %v723 = vadd.f32 %v632, %v722
        %v724 = vpop.f32.mrb[0].mxu0
        %v725 = vpop.f32.mrb[0].mxu0
        %v726 = vadd.f32 %v635, %v725
        %v727 = vpop.f32.mrb[0].mxu0
        %728 = vdwg.mxu0
        %v729 = vld [vmem:[#allocation2 + $0x2] sm:$0xff]
        %v730 = vld [vmem:[#allocation2 + $0xa] sm:$0xff]
        %v731 = vld [vmem:[#allocation2 + $0x12] sm:$0xff]
        %v732 = vld [vmem:[#allocation2 + $0x1a] sm:$0xff]
        %v733 = vld [vmem:[#allocation2 + $0x22] sm:$0xff]
        %v734 = vld [vmem:[#allocation2 + $0x2a] sm:$0xff]
        %v735 = vld [vmem:[#allocation2 + $0x32] sm:$0xff]
        %v736 = vld [vmem:[#allocation2 + $0x3a] sm:$0xff]
        %v737 = vld [vmem:[#allocation2 + $0x42] sm:$0xff]
        %v738 = vld [vmem:[#allocation2 + $0x4a] sm:$0xff]
        %v739 = vpack.c.bf16 %v730, %v729
        %v740 = vpack.c.bf16 %v732, %v731
        %v741 = vpack.c.bf16 %v734, %v733
        %v742 = vpack.c.bf16 %v736, %v735
        %v743 = vpack.c.bf16 %v738, %v737
        %s744 = scalar_lea.vmem [#allocation7], 4
        %v745 = vld [vmem:[%s744] sm:$0x3]
        %v747 = vsel %vm489, %v739, 0
        %v750 = vsel %vm489, %v740, 0
        %v753 = vsel %vm489, %v741, 0
        %v756 = vsel %vm489, %v742, 0
        %v759 = vsel %vm489, %v743, 0
        %v762 = vsel %vm561, %v745, 0
        %764 = vmatprep.subr.bf16.mxu0 0
        %765 = vmatpush1.bf16.msra.mxu0 %v762
        %766 = vmatprep.subr.bf16.mxu0 0
        %767 = vmatpush1.bf16.msra.mxu0 0
        %768 = vmatprep.subr.bf16.mxu0 0
        %769 = vmatpush1.bf16.msra.mxu0 0
        %770 = vmatprep.subr.bf16.mxu0 0
        %771 = vmatpush1.bf16.msra.mxu0 0
        %772 = vmatprep.subr.bf16.mxu0 0
        %773 = vmatpush1.bf16.msra.mxu0 0
        %774 = vmatprep.subr.bf16.mxu0 0
        %775 = vmatpush1.bf16.msra.mxu0 0
        %776 = vmatprep.subr.bf16.mxu0 0
        %777 = vmatpush1.bf16.msra.mxu0 0
        %778 = vmatprep.subr.bf16.mxu0 0
        %779 = vmatpush1.bf16.msra.mxu0 0
        %780 = vmatprep.subr.bf16.mxu0 0
        %781 = vmatpush1.bf16.msra.mxu0 0
        %782 = vmatprep.subr.bf16.mxu0 0
        %783 = vmatpush1.bf16.msra.mxu0 0
        %784 = vmatprep.subr.bf16.mxu0 0
        %785 = vmatpush1.bf16.msra.mxu0 0
        %786 = vmatprep.subr.bf16.mxu0 0
        %787 = vmatpush1.bf16.msra.mxu0 0
        %788 = vmatprep.subr.bf16.mxu0 0
        %789 = vmatpush1.bf16.msra.mxu0 0
        %790 = vmatprep.subr.bf16.mxu0 0
        %791 = vmatpush1.bf16.msra.mxu0 0
        %792 = vmatprep.subr.bf16.mxu0 0
        %793 = vmatpush1.bf16.msra.mxu0 0
        %794 = vmatprep.subr.bf16.mxu0 0
        %795 = vmatpush1.bf16.msra.mxu0 0
        %796 = vmatprep.mubr.bf16.mxu0 0
        %797 = vmatmul.mubr.bf16.gmra.mrb[0].mxu0 %v747
        %v798 = vpop.f32.mrb[0].mxu0
        %v799 = vadd.f32 0.0, %v798
        %v800 = vpop.f32.mrb[0].mxu0
        %v801 = vpop.f32.mrb[0].mxu0
        %v802 = vadd.f32 0.0, %v801
        %v803 = vpop.f32.mrb[0].mxu0
        %804 = vmatprep.mubr.bf16.mxu0 0
        %805 = vmatmul.mubr.bf16.gmra.mrb[0].mxu0 %v750
        %v806 = vpop.f32.mrb[0].mxu0
        %v807 = vadd.f32 0.0, %v806
        %v808 = vpop.f32.mrb[0].mxu0
        %v809 = vpop.f32.mrb[0].mxu0
        %v810 = vadd.f32 0.0, %v809
        %v811 = vpop.f32.mrb[0].mxu0
        %812 = vmatprep.mubr.bf16.mxu0 0
        %813 = vmatmul.mubr.bf16.gmra.mrb[0].mxu0 %v753
        %v814 = vpop.f32.mrb[0].mxu0
        %v815 = vadd.f32 0.0, %v814
        %v816 = vpop.f32.mrb[0].mxu0
        %v817 = vpop.f32.mrb[0].mxu0
        %v818 = vadd.f32 0.0, %v817
        %v819 = vpop.f32.mrb[0].mxu0
        %820 = vmatprep.mubr.bf16.mxu0 0
        %821 = vmatmul.mubr.bf16.gmra.mrb[0].mxu0 %v756
        %v822 = vpop.f32.mrb[0].mxu0
        %v823 = vadd.f32 0.0, %v822
        %v824 = vpop.f32.mrb[0].mxu0
        %v825 = vpop.f32.mrb[0].mxu0
        %v826 = vadd.f32 0.0, %v825
        %v827 = vpop.f32.mrb[0].mxu0
        %828 = vmatprep.mubr.bf16.mxu0 0
        %829 = vmatmul.mubr.bf16.gmra.mrb[0].mxu0 %v759
        %v830 = vpop.f32.mrb[0].mxu0
        %v831 = vadd.f32 0.0, %v830
        %v832 = vpop.f32.mrb[0].mxu0
        %v833 = vpop.f32.mrb[0].mxu0
        %v834 = vadd.f32 0.0, %v833
        %v835 = vpop.f32.mrb[0].mxu0
        %836 = vdwg.mxu0
        %v837 = vadd.f32 %v691, %v799
        %v838 = vadd.f32 %v694, %v802
        %v839 = vadd.f32 %v699, %v807
        %v840 = vadd.f32 %v702, %v810
        %v841 = vadd.f32 %v707, %v815
        %v842 = vadd.f32 %v710, %v818
        %v843 = vadd.f32 %v715, %v823
        %v844 = vadd.f32 %v718, %v826
        %v845 = vadd.f32 %v723, %v831
        %v846 = vadd.f32 %v726, %v834
        %v847 = vld [vmem:[#allocation2 + $0xa] sm:$0xff]
        %v848 = vld [vmem:[#allocation2 + $0x12] sm:$0xff]
        %v849 = vld [vmem:[#allocation2 + $0x1a] sm:$0xff]
        %v850 = vld [vmem:[#allocation2 + $0x22] sm:$0xff]
        %v851 = vld [vmem:[#allocation2 + $0x2a] sm:$0xff]
        %v852 = vld [vmem:[#allocation2 + $0x32] sm:$0xff]
        %v853 = vld [vmem:[#allocation2 + $0x3a] sm:$0xff]
        %v854 = vld [vmem:[#allocation2 + $0x42] sm:$0xff]
        %v855 = vld [vmem:[#allocation2 + $0x4a] sm:$0xff]
        %v856 = vld [vmem:[#allocation2 + $0x52] sm:$0xff]
        %v857 = vpack.c.bf16 %v848, %v847
        %v858 = vpack.c.bf16 %v850, %v849
        %v859 = vpack.c.bf16 %v852, %v851
        %v860 = vpack.c.bf16 %v854, %v853
        %v861 = vpack.c.bf16 %v856, %v855
        %s862 = scalar_lea.vmem [#allocation7], 6
        %v863 = vld [vmem:[%s862] sm:$0x3]
        %v865 = vsel %vm489, %v857, 0
        %v868 = vsel %vm489, %v858, 0
        %v871 = vsel %vm489, %v859, 0
        %v874 = vsel %vm489, %v860, 0
        %v877 = vsel %vm489, %v861, 0
        %v880 = vsel %vm561, %v863, 0
        %882 = vmatprep.subr.bf16.mxu0 0
        %883 = vmatpush1.bf16.msra.mxu0 %v880
        %884 = vmatprep.subr.bf16.mxu0 0
        %885 = vmatpush1.bf16.msra.mxu0 0
        %886 = vmatprep.subr.bf16.mxu0 0
        %887 = vmatpush1.bf16.msra.mxu0 0
        %888 = vmatprep.subr.bf16.mxu0 0
        %889 = vmatpush1.bf16.msra.mxu0 0
        %890 = vmatprep.subr.bf16.mxu0 0
        %891 = vmatpush1.bf16.msra.mxu0 0
        %892 = vmatprep.subr.bf16.mxu0 0
        %893 = vmatpush1.bf16.msra.mxu0 0
        %894 = vmatprep.subr.bf16.mxu0 0
        %895 = vmatpush1.bf16.msra.mxu0 0
        %896 = vmatprep.subr.bf16.mxu0 0
        %897 = vmatpush1.bf16.msra.mxu0 0
        %898 = vmatprep.subr.bf16.mxu0 0
        %899 = vmatpush1.bf16.msra.mxu0 0
        %900 = vmatprep.subr.bf16.mxu0 0
        %901 = vmatpush1.bf16.msra.mxu0 0
        %902 = vmatprep.subr.bf16.mxu0 0
        %903 = vmatpush1.bf16.msra.mxu0 0
        %904 = vmatprep.subr.bf16.mxu0 0
        %905 = vmatpush1.bf16.msra.mxu0 0
        %906 = vmatprep.subr.bf16.mxu0 0
        %907 = vmatpush1.bf16.msra.mxu0 0
        %908 = vmatprep.subr.bf16.mxu0 0
        %909 = vmatpush1.bf16.msra.mxu0 0
        %910 = vmatprep.subr.bf16.mxu0 0
        %911 = vmatpush1.bf16.msra.mxu0 0
        %912 = vmatprep.subr.bf16.mxu0 0
        %913 = vmatpush1.bf16.msra.mxu0 0
        %914 = vmatprep.mubr.bf16.mxu0 0
        %915 = vmatmul.mubr.bf16.gmra.mrb[0].mxu0 %v865
        %v916 = vpop.f32.mrb[0].mxu0
        %v917 = vadd.f32 0.0, %v916
        %v918 = vpop.f32.mrb[0].mxu0
        %v919 = vpop.f32.mrb[0].mxu0
        %v920 = vadd.f32 0.0, %v919
        %v921 = vpop.f32.mrb[0].mxu0
        %922 = vmatprep.mubr.bf16.mxu0 0
        %923 = vmatmul.mubr.bf16.gmra.mrb[0].mxu0 %v868
        %v924 = vpop.f32.mrb[0].mxu0
        %v925 = vadd.f32 0.0, %v924
        %v926 = vpop.f32.mrb[0].mxu0
        %v927 = vpop.f32.mrb[0].mxu0
        %v928 = vadd.f32 0.0, %v927
        %v929 = vpop.f32.mrb[0].mxu0
        %930 = vmatprep.mubr.bf16.mxu0 0
        %931 = vmatmul.mubr.bf16.gmra.mrb[0].mxu0 %v871
        %v932 = vpop.f32.mrb[0].mxu0
        %v933 = vadd.f32 0.0, %v932
        %v934 = vpop.f32.mrb[0].mxu0
        %v935 = vpop.f32.mrb[0].mxu0
        %v936 = vadd.f32 0.0, %v935
        %v937 = vpop.f32.mrb[0].mxu0
        %938 = vmatprep.mubr.bf16.mxu0 0
        %939 = vmatmul.mubr.bf16.gmra.mrb[0].mxu0 %v874
        %v940 = vpop.f32.mrb[0].mxu0
        %v941 = vadd.f32 0.0, %v940
        %v942 = vpop.f32.mrb[0].mxu0
        %v943 = vpop.f32.mrb[0].mxu0
        %v944 = vadd.f32 0.0, %v943
        %v945 = vpop.f32.mrb[0].mxu0
        %946 = vmatprep.mubr.bf16.mxu0 0
        %947 = vmatmul.mubr.bf16.gmra.mrb[0].mxu0 %v877
        %v948 = vpop.f32.mrb[0].mxu0
        %v949 = vadd.f32 0.0, %v948
        %v950 = vpop.f32.mrb[0].mxu0
        %v951 = vpop.f32.mrb[0].mxu0
        %v952 = vadd.f32 0.0, %v951
        %v953 = vpop.f32.mrb[0].mxu0
        %954 = vdwg.mxu0
        %v955 = vadd.f32 %v837, %v917
        %v956 = vadd.f32 %v838, %v920
        %v957 = vadd.f32 %v839, %v925
        %v958 = vadd.f32 %v840, %v928
        %v959 = vadd.f32 %v841, %v933
        %v960 = vadd.f32 %v842, %v936
        %v961 = vadd.f32 %v843, %v941
        %v962 = vadd.f32 %v844, %v944
        %v963 = vadd.f32 %v845, %v949
        %v964 = vadd.f32 %v846, %v952
        %v965 = vld [vmem:[#allocation2 + $0xb] sm:$0xff]
        %v966 = vld [vmem:[#allocation2 + $0x13] sm:$0xff]
        %v967 = vld [vmem:[#allocation2 + $0x1b] sm:$0xff]
        %v968 = vld [vmem:[#allocation2 + $0x23] sm:$0xff]
        %v969 = vld [vmem:[#allocation2 + $0x2b] sm:$0xff]
        %v970 = vld [vmem:[#allocation2 + $0x33] sm:$0xff]
        %v971 = vld [vmem:[#allocation2 + $0x3b] sm:$0xff]
        %v972 = vld [vmem:[#allocation2 + $0x43] sm:$0xff]
        %v973 = vld [vmem:[#allocation2 + $0x4b] sm:$0xff]
        %v974 = vld [vmem:[#allocation2 + $0x53] sm:$0xff]
        %v975 = vpack.c.bf16 %v966, %v965
        %v976 = vpack.c.bf16 %v968, %v967
        %v977 = vpack.c.bf16 %v970, %v969
        %v978 = vpack.c.bf16 %v972, %v971
        %v979 = vpack.c.bf16 %v974, %v973
        %s980 = scalar_lea.vmem [#allocation7], 8
        %v981 = vld [vmem:[%s980] sm:$0x3]
        %v983 = vsel %vm489, %v975, 0
        %v986 = vsel %vm489, %v976, 0
        %v989 = vsel %vm489, %v977, 0
        %v992 = vsel %vm489, %v978, 0
        %v995 = vsel %vm489, %v979, 0
        %v998 = vsel %vm561, %v981, 0
        %1000 = vmatprep.subr.bf16.mxu0 0
        %1001 = vmatpush1.bf16.msra.mxu0 %v998
        %1002 = vmatprep.subr.bf16.mxu0 0
        %1003 = vmatpush1.bf16.msra.mxu0 0
        %1004 = vmatprep.subr.bf16.mxu0 0
        %1005 = vmatpush1.bf16.msra.mxu0 0
        %1006 = vmatprep.subr.bf16.mxu0 0
        %1007 = vmatpush1.bf16.msra.mxu0 0
        %1008 = vmatprep.subr.bf16.mxu0 0
        %1009 = vmatpush1.bf16.msra.mxu0 0
        %1010 = vmatprep.subr.bf16.mxu0 0
        %1011 = vmatpush1.bf16.msra.mxu0 0
        %1012 = vmatprep.subr.bf16.mxu0 0
        %1013 = vmatpush1.bf16.msra.mxu0 0
        %1014 = vmatprep.subr.bf16.mxu0 0
        %1015 = vmatpush1.bf16.msra.mxu0 0
        %1016 = vmatprep.subr.bf16.mxu0 0
        %1017 = vmatpush1.bf16.msra.mxu0 0
        %1018 = vmatprep.subr.bf16.mxu0 0
        %1019 = vmatpush1.bf16.msra.mxu0 0
        %1020 = vmatprep.subr.bf16.mxu0 0
        %1021 = vmatpush1.bf16.msra.mxu0 0
        %1022 = vmatprep.subr.bf16.mxu0 0
        %1023 = vmatpush1.bf16.msra.mxu0 0
        %1024 = vmatprep.subr.bf16.mxu0 0
        %1025 = vmatpush1.bf16.msra.mxu0 0
        %1026 = vmatprep.subr.bf16.mxu0 0
        %1027 = vmatpush1.bf16.msra.mxu0 0
        %1028 = vmatprep.subr.bf16.mxu0 0
        %1029 = vmatpush1.bf16.msra.mxu0 0
        %1030 = vmatprep.subr.bf16.mxu0 0
        %1031 = vmatpush1.bf16.msra.mxu0 0
        %1032 = vmatprep.mubr.bf16.mxu0 0
        %1033 = vmatmul.mubr.bf16.gmra.mrb[0].mxu0 %v983
        %v1034 = vpop.f32.mrb[0].mxu0
        %v1035 = vadd.f32 0.0, %v1034
        %v1036 = vpop.f32.mrb[0].mxu0
        %v1037 = vpop.f32.mrb[0].mxu0
        %v1038 = vadd.f32 0.0, %v1037
        %v1039 = vpop.f32.mrb[0].mxu0
        %1040 = vmatprep.mubr.bf16.mxu0 0
        %1041 = vmatmul.mubr.bf16.gmra.mrb[0].mxu0 %v986
        %v1042 = vpop.f32.mrb[0].mxu0
        %v1043 = vadd.f32 0.0, %v1042
        %v1044 = vpop.f32.mrb[0].mxu0
        %v1045 = vpop.f32.mrb[0].mxu0
        %v1046 = vadd.f32 0.0, %v1045
        %v1047 = vpop.f32.mrb[0].mxu0
        %1048 = vmatprep.mubr.bf16.mxu0 0
        %1049 = vmatmul.mubr.bf16.gmra.mrb[0].mxu0 %v989
        %v1050 = vpop.f32.mrb[0].mxu0
        %v1051 = vadd.f32 0.0, %v1050
        %v1052 = vpop.f32.mrb[0].mxu0
        %v1053 = vpop.f32.mrb[0].mxu0
        %v1054 = vadd.f32 0.0, %v1053
        %v1055 = vpop.f32.mrb[0].mxu0
        %1056 = vmatprep.mubr.bf16.mxu0 0
        %1057 = vmatmul.mubr.bf16.gmra.mrb[0].mxu0 %v992
        %v1058 = vpop.f32.mrb[0].mxu0
        %v1059 = vadd.f32 0.0, %v1058
        %v1060 = vpop.f32.mrb[0].mxu0
        %v1061 = vpop.f32.mrb[0].mxu0
        %v1062 = vadd.f32 0.0, %v1061
        %v1063 = vpop.f32.mrb[0].mxu0
        %1064 = vmatprep.mubr.bf16.mxu0 0
        %1065 = vmatmul.mubr.bf16.gmra.mrb[0].mxu0 %v995
        %v1066 = vpop.f32.mrb[0].mxu0
        %v1067 = vadd.f32 0.0, %v1066
        %v1068 = vpop.f32.mrb[0].mxu0
        %v1069 = vpop.f32.mrb[0].mxu0
        %v1070 = vadd.f32 0.0, %v1069
        %v1071 = vpop.f32.mrb[0].mxu0
        %1072 = vdwg.mxu0
        %v1073 = vadd.f32 %v955, %v1035
        %v1074 = vadd.f32 %v956, %v1038
        %v1075 = vadd.f32 %v957, %v1043
        %v1076 = vadd.f32 %v958, %v1046
        %v1077 = vadd.f32 %v959, %v1051
        %v1078 = vadd.f32 %v960, %v1054
        %v1079 = vadd.f32 %v961, %v1059
        %v1080 = vadd.f32 %v962, %v1062
        %v1081 = vadd.f32 %v963, %v1067
        %v1082 = vadd.f32 %v964, %v1070
        %v1083 = vld [vmem:[#allocation2 + $0xc] sm:$0xff]
        %v1084 = vld [vmem:[#allocation2 + $0x14] sm:$0xff]
        %v1085 = vld [vmem:[#allocation2 + $0x1c] sm:$0xff]
        %v1086 = vld [vmem:[#allocation2 + $0x24] sm:$0xff]
        %v1087 = vld [vmem:[#allocation2 + $0x2c] sm:$0xff]
        %v1088 = vld [vmem:[#allocation2 + $0x34] sm:$0xff]
        %v1089 = vld [vmem:[#allocation2 + $0x3c] sm:$0xff]
        %v1090 = vld [vmem:[#allocation2 + $0x44] sm:$0xff]
        %v1091 = vld [vmem:[#allocation2 + $0x4c] sm:$0xff]
        %v1092 = vld [vmem:[#allocation2 + $0x54] sm:$0xff]
        %v1093 = vpack.c.bf16 %v1084, %v1083
        %v1094 = vpack.c.bf16 %v1086, %v1085
        %v1095 = vpack.c.bf16 %v1088, %v1087
        %v1096 = vpack.c.bf16 %v1090, %v1089
        %v1097 = vpack.c.bf16 %v1092, %v1091
        %s1098 = scalar_lea.vmem [#allocation7], 10
        %v1099 = vld [vmem:[%s1098] sm:$0x3]
        %v1101 = vsel %vm489, %v1093, 0
        %v1104 = vsel %vm489, %v1094, 0
        %v1107 = vsel %vm489, %v1095, 0
        %v1110 = vsel %vm489, %v1096, 0
        %v1113 = vsel %vm489, %v1097, 0
        %v1116 = vsel %vm561, %v1099, 0
        %1118 = vmatprep.subr.bf16.mxu0 0
        %1119 = vmatpush1.bf16.msra.mxu0 %v1116
        %1120 = vmatprep.subr.bf16.mxu0 0
        %1121 = vmatpush1.bf16.msra.mxu0 0
        %1122 = vmatprep.subr.bf16.mxu0 0
        %1123 = vmatpush1.bf16.msra.mxu0 0
        %1124 = vmatprep.subr.bf16.mxu0 0
        %1125 = vmatpush1.bf16.msra.mxu0 0
        %1126 = vmatprep.subr.bf16.mxu0 0
        %1127 = vmatpush1.bf16.msra.mxu0 0
        %1128 = vmatprep.subr.bf16.mxu0 0
        %1129 = vmatpush1.bf16.msra.mxu0 0
        %1130 = vmatprep.subr.bf16.mxu0 0
        %1131 = vmatpush1.bf16.msra.mxu0 0
        %1132 = vmatprep.subr.bf16.mxu0 0
        %1133 = vmatpush1.bf16.msra.mxu0 0
        %1134 = vmatprep.subr.bf16.mxu0 0
        %1135 = vmatpush1.bf16.msra.mxu0 0
        %1136 = vmatprep.subr.bf16.mxu0 0
        %1137 = vmatpush1.bf16.msra.mxu0 0
        %1138 = vmatprep.subr.bf16.mxu0 0
        %1139 = vmatpush1.bf16.msra.mxu0 0
        %1140 = vmatprep.subr.bf16.mxu0 0
        %1141 = vmatpush1.bf16.msra.mxu0 0
        %1142 = vmatprep.subr.bf16.mxu0 0
        %1143 = vmatpush1.bf16.msra.mxu0 0
        %1144 = vmatprep.subr.bf16.mxu0 0
        %1145 = vmatpush1.bf16.msra.mxu0 0
        %1146 = vmatprep.subr.bf16.mxu0 0
        %1147 = vmatpush1.bf16.msra.mxu0 0
        %1148 = vmatprep.subr.bf16.mxu0 0
        %1149 = vmatpush1.bf16.msra.mxu0 0
        %1150 = vmatprep.mubr.bf16.mxu0 0
        %1151 = vmatmul.mubr.bf16.gmra.mrb[0].mxu0 %v1101
        %v1152 = vpop.f32.mrb[0].mxu0
        %v1153 = vadd.f32 0.0, %v1152
        %v1154 = vpop.f32.mrb[0].mxu0
        %v1155 = vpop.f32.mrb[0].mxu0
        %v1156 = vadd.f32 0.0, %v1155
        %v1157 = vpop.f32.mrb[0].mxu0
        %1158 = vmatprep.mubr.bf16.mxu0 0
        %1159 = vmatmul.mubr.bf16.gmra.mrb[0].mxu0 %v1104
        %v1160 = vpop.f32.mrb[0].mxu0
        %v1161 = vadd.f32 0.0, %v1160
        %v1162 = vpop.f32.mrb[0].mxu0
        %v1163 = vpop.f32.mrb[0].mxu0
        %v1164 = vadd.f32 0.0, %v1163
        %v1165 = vpop.f32.mrb[0].mxu0
        %1166 = vmatprep.mubr.bf16.mxu0 0
        %1167 = vmatmul.mubr.bf16.gmra.mrb[0].mxu0 %v1107
        %v1168 = vpop.f32.mrb[0].mxu0
        %v1169 = vadd.f32 0.0, %v1168
        %v1170 = vpop.f32.mrb[0].mxu0
        %v1171 = vpop.f32.mrb[0].mxu0
        %v1172 = vadd.f32 0.0, %v1171
        %v1173 = vpop.f32.mrb[0].mxu0
        %1174 = vmatprep.mubr.bf16.mxu0 0
        %1175 = vmatmul.mubr.bf16.gmra.mrb[0].mxu0 %v1110
        %v1176 = vpop.f32.mrb[0].mxu0
        %v1177 = vadd.f32 0.0, %v1176
        %v1178 = vpop.f32.mrb[0].mxu0
        %v1179 = vpop.f32.mrb[0].mxu0
        %v1180 = vadd.f32 0.0, %v1179
        %v1181 = vpop.f32.mrb[0].mxu0
        %1182 = vmatprep.mubr.bf16.mxu0 0
        %1183 = vmatmul.mubr.bf16.gmra.mrb[0].mxu0 %v1113
        %v1184 = vpop.f32.mrb[0].mxu0
        %v1185 = vadd.f32 0.0, %v1184
        %v1186 = vpop.f32.mrb[0].mxu0
        %v1187 = vpop.f32.mrb[0].mxu0
        %v1188 = vadd.f32 0.0, %v1187
        %v1189 = vpop.f32.mrb[0].mxu0
        %1190 = vdwg.mxu0
        %v1191 = vadd.f32 %v1073, %v1153
        %v1192 = vadd.f32 %v1074, %v1156
        %v1193 = vadd.f32 %v1075, %v1161
        %v1194 = vadd.f32 %v1076, %v1164
        %v1195 = vadd.f32 %v1077, %v1169
        %v1196 = vadd.f32 %v1078, %v1172
        %v1197 = vadd.f32 %v1079, %v1177
        %v1198 = vadd.f32 %v1080, %v1180
        %v1199 = vadd.f32 %v1081, %v1185
        %v1200 = vadd.f32 %v1082, %v1188
        %v1201 = vld [vmem:[#allocation2 + $0x14] sm:$0xff]
        %v1202 = vld [vmem:[#allocation2 + $0x1c] sm:$0xff]
        %v1203 = vld [vmem:[#allocation2 + $0x24] sm:$0xff]
        %v1204 = vld [vmem:[#allocation2 + $0x2c] sm:$0xff]
        %v1205 = vld [vmem:[#allocation2 + $0x34] sm:$0xff]
        %v1206 = vld [vmem:[#allocation2 + $0x3c] sm:$0xff]
        %v1207 = vld [vmem:[#allocation2 + $0x44] sm:$0xff]
        %v1208 = vld [vmem:[#allocation2 + $0x4c] sm:$0xff]
        %v1209 = vld [vmem:[#allocation2 + $0x54] sm:$0xff]
        %v1210 = vld [vmem:[#allocation2 + $0x5c] sm:$0xff]
        %v1211 = vpack.c.bf16 %v1202, %v1201
        %v1212 = vpack.c.bf16 %v1204, %v1203
        %v1213 = vpack.c.bf16 %v1206, %v1205
        %v1214 = vpack.c.bf16 %v1208, %v1207
        %v1215 = vpack.c.bf16 %v1210, %v1209
        %s1216 = scalar_lea.vmem [#allocation7], 12
        %v1217 = vld [vmem:[%s1216] sm:$0x3]
        %v1219 = vsel %vm489, %v1211, 0
        %v1222 = vsel %vm489, %v1212, 0
        %v1225 = vsel %vm489, %v1213, 0
        %v1228 = vsel %vm489, %v1214, 0
        %v1231 = vsel %vm489, %v1215, 0
        %v1234 = vsel %vm561, %v1217, 0
        %1236 = vmatprep.subr.bf16.mxu0 0
        %1237 = vmatpush1.bf16.msra.mxu0 %v1234
        %1238 = vmatprep.subr.bf16.mxu0 0
        %1239 = vmatpush1.bf16.msra.mxu0 0
        %1240 = vmatprep.subr.bf16.mxu0 0
        %1241 = vmatpush1.bf16.msra.mxu0 0
        %1242 = vmatprep.subr.bf16.mxu0 0
        %1243 = vmatpush1.bf16.msra.mxu0 0
        %1244 = vmatprep.subr.bf16.mxu0 0
        %1245 = vmatpush1.bf16.msra.mxu0 0
        %1246 = vmatprep.subr.bf16.mxu0 0
        %1247 = vmatpush1.bf16.msra.mxu0 0
        %1248 = vmatprep.subr.bf16.mxu0 0
        %1249 = vmatpush1.bf16.msra.mxu0 0
        %1250 = vmatprep.subr.bf16.mxu0 0
        %1251 = vmatpush1.bf16.msra.mxu0 0
        %1252 = vmatprep.subr.bf16.mxu0 0
        %1253 = vmatpush1.bf16.msra.mxu0 0
        %1254 = vmatprep.subr.bf16.mxu0 0
        %1255 = vmatpush1.bf16.msra.mxu0 0
        %1256 = vmatprep.subr.bf16.mxu0 0
        %1257 = vmatpush1.bf16.msra.mxu0 0
        %1258 = vmatprep.subr.bf16.mxu0 0
        %1259 = vmatpush1.bf16.msra.mxu0 0
        %1260 = vmatprep.subr.bf16.mxu0 0
        %1261 = vmatpush1.bf16.msra.mxu0 0
        %1262 = vmatprep.subr.bf16.mxu0 0
        %1263 = vmatpush1.bf16.msra.mxu0 0
        %1264 = vmatprep.subr.bf16.mxu0 0
        %1265 = vmatpush1.bf16.msra.mxu0 0
        %1266 = vmatprep.subr.bf16.mxu0 0
        %1267 = vmatpush1.bf16.msra.mxu0 0
        %1268 = vmatprep.mubr.bf16.mxu0 0
        %1269 = vmatmul.mubr.bf16.gmra.mrb[0].mxu0 %v1219
        %v1270 = vpop.f32.mrb[0].mxu0
        %v1271 = vadd.f32 0.0, %v1270
        %v1272 = vpop.f32.mrb[0].mxu0
        %v1273 = vpop.f32.mrb[0].mxu0
        %v1274 = vadd.f32 0.0, %v1273
        %v1275 = vpop.f32.mrb[0].mxu0
        %1276 = vmatprep.mubr.bf16.mxu0 0
        %1277 = vmatmul.mubr.bf16.gmra.mrb[0].mxu0 %v1222
        %v1278 = vpop.f32.mrb[0].mxu0
        %v1279 = vadd.f32 0.0, %v1278
        %v1280 = vpop.f32.mrb[0].mxu0
        %v1281 = vpop.f32.mrb[0].mxu0
        %v1282 = vadd.f32 0.0, %v1281
        %v1283 = vpop.f32.mrb[0].mxu0
        %1284 = vmatprep.mubr.bf16.mxu0 0
        %1285 = vmatmul.mubr.bf16.gmra.mrb[0].mxu0 %v1225
        %v1286 = vpop.f32.mrb[0].mxu0
        %v1287 = vadd.f32 0.0, %v1286
        %v1288 = vpop.f32.mrb[0].mxu0
        %v1289 = vpop.f32.mrb[0].mxu0
        %v1290 = vadd.f32 0.0, %v1289
        %v1291 = vpop.f32.mrb[0].mxu0
        %1292 = vmatprep.mubr.bf16.mxu0 0
        %1293 = vmatmul.mubr.bf16.gmra.mrb[0].mxu0 %v1228
        %v1294 = vpop.f32.mrb[0].mxu0
        %v1295 = vadd.f32 0.0, %v1294
        %v1296 = vpop.f32.mrb[0].mxu0
        %v1297 = vpop.f32.mrb[0].mxu0
        %v1298 = vadd.f32 0.0, %v1297
        %v1299 = vpop.f32.mrb[0].mxu0
        %1300 = vmatprep.mubr.bf16.mxu0 0
        %1301 = vmatmul.mubr.bf16.gmra.mrb[0].mxu0 %v1231
        %v1302 = vpop.f32.mrb[0].mxu0
        %v1303 = vadd.f32 0.0, %v1302
        %v1304 = vpop.f32.mrb[0].mxu0
        %v1305 = vpop.f32.mrb[0].mxu0
        %v1306 = vadd.f32 0.0, %v1305
        %v1307 = vpop.f32.mrb[0].mxu0
        %1308 = vdwg.mxu0
        %v1309 = vadd.f32 %v1191, %v1271
        %v1310 = vadd.f32 %v1192, %v1274
        %v1311 = vadd.f32 %v1193, %v1279
        %v1312 = vadd.f32 %v1194, %v1282
        %v1313 = vadd.f32 %v1195, %v1287
        %v1314 = vadd.f32 %v1196, %v1290
        %v1315 = vadd.f32 %v1197, %v1295
        %v1316 = vadd.f32 %v1198, %v1298
        %v1317 = vadd.f32 %v1199, %v1303
        %v1318 = vadd.f32 %v1200, %v1306
        %v1319 = vld [vmem:[#allocation2 + $0x15] sm:$0xff]
        %v1320 = vld [vmem:[#allocation2 + $0x1d] sm:$0xff]
        %v1321 = vld [vmem:[#allocation2 + $0x25] sm:$0xff]
        %v1322 = vld [vmem:[#allocation2 + $0x2d] sm:$0xff]
        %v1323 = vld [vmem:[#allocation2 + $0x35] sm:$0xff]
        %v1324 = vld [vmem:[#allocation2 + $0x3d] sm:$0xff]
        %v1325 = vld [vmem:[#allocation2 + $0x45] sm:$0xff]
        %v1326 = vld [vmem:[#allocation2 + $0x4d] sm:$0xff]
        %v1327 = vld [vmem:[#allocation2 + $0x55] sm:$0xff]
        %v1328 = vld [vmem:[#allocation2 + $0x5d] sm:$0xff]
        %v1329 = vpack.c.bf16 %v1320, %v1319
        %v1330 = vpack.c.bf16 %v1322, %v1321
        %v1331 = vpack.c.bf16 %v1324, %v1323
        %v1332 = vpack.c.bf16 %v1326, %v1325
        %v1333 = vpack.c.bf16 %v1328, %v1327
        %s1334 = scalar_lea.vmem [#allocation7], 14
        %v1335 = vld [vmem:[%s1334] sm:$0x3]
        %v1337 = vsel %vm489, %v1329, 0
        %v1340 = vsel %vm489, %v1330, 0
        %v1343 = vsel %vm489, %v1331, 0
        %v1346 = vsel %vm489, %v1332, 0
        %v1349 = vsel %vm489, %v1333, 0
        %v1352 = vsel %vm561, %v1335, 0
        %1354 = vmatprep.subr.bf16.mxu0 0
        %1355 = vmatpush1.bf16.msra.mxu0 %v1352
        %1356 = vmatprep.subr.bf16.mxu0 0
        %1357 = vmatpush1.bf16.msra.mxu0 0
        %1358 = vmatprep.subr.bf16.mxu0 0
        %1359 = vmatpush1.bf16.msra.mxu0 0
        %1360 = vmatprep.subr.bf16.mxu0 0
        %1361 = vmatpush1.bf16.msra.mxu0 0
        %1362 = vmatprep.subr.bf16.mxu0 0
        %1363 = vmatpush1.bf16.msra.mxu0 0
        %1364 = vmatprep.subr.bf16.mxu0 0
        %1365 = vmatpush1.bf16.msra.mxu0 0
        %1366 = vmatprep.subr.bf16.mxu0 0
        %1367 = vmatpush1.bf16.msra.mxu0 0
        %1368 = vmatprep.subr.bf16.mxu0 0
        %1369 = vmatpush1.bf16.msra.mxu0 0
        %1370 = vmatprep.subr.bf16.mxu0 0
        %1371 = vmatpush1.bf16.msra.mxu0 0
        %1372 = vmatprep.subr.bf16.mxu0 0
        %1373 = vmatpush1.bf16.msra.mxu0 0
        %1374 = vmatprep.subr.bf16.mxu0 0
        %1375 = vmatpush1.bf16.msra.mxu0 0
        %1376 = vmatprep.subr.bf16.mxu0 0
        %1377 = vmatpush1.bf16.msra.mxu0 0
        %1378 = vmatprep.subr.bf16.mxu0 0
        %1379 = vmatpush1.bf16.msra.mxu0 0
        %1380 = vmatprep.subr.bf16.mxu0 0
        %1381 = vmatpush1.bf16.msra.mxu0 0
        %1382 = vmatprep.subr.bf16.mxu0 0
        %1383 = vmatpush1.bf16.msra.mxu0 0
        %1384 = vmatprep.subr.bf16.mxu0 0
        %1385 = vmatpush1.bf16.msra.mxu0 0
        %1386 = vmatprep.mubr.bf16.mxu0 0
        %1387 = vmatmul.mubr.bf16.gmra.mrb[0].mxu0 %v1337
        %v1388 = vpop.f32.mrb[0].mxu0
        %v1389 = vadd.f32 0.0, %v1388
        %v1390 = vpop.f32.mrb[0].mxu0
        %v1391 = vpop.f32.mrb[0].mxu0
        %v1392 = vadd.f32 0.0, %v1391
        %v1393 = vpop.f32.mrb[0].mxu0
        %1394 = vmatprep.mubr.bf16.mxu0 0
        %1395 = vmatmul.mubr.bf16.gmra.mrb[0].mxu0 %v1340
        %v1396 = vpop.f32.mrb[0].mxu0
        %v1397 = vadd.f32 0.0, %v1396
        %v1398 = vpop.f32.mrb[0].mxu0
        %v1399 = vpop.f32.mrb[0].mxu0
        %v1400 = vadd.f32 0.0, %v1399
        %v1401 = vpop.f32.mrb[0].mxu0
        %1402 = vmatprep.mubr.bf16.mxu0 0
        %1403 = vmatmul.mubr.bf16.gmra.mrb[0].mxu0 %v1343
        %v1404 = vpop.f32.mrb[0].mxu0
        %v1405 = vadd.f32 0.0, %v1404
        %v1406 = vpop.f32.mrb[0].mxu0
        %v1407 = vpop.f32.mrb[0].mxu0
        %v1408 = vadd.f32 0.0, %v1407
        %v1409 = vpop.f32.mrb[0].mxu0
        %1410 = vmatprep.mubr.bf16.mxu0 0
        %1411 = vmatmul.mubr.bf16.gmra.mrb[0].mxu0 %v1346
        %v1412 = vpop.f32.mrb[0].mxu0
        %v1413 = vadd.f32 0.0, %v1412
        %v1414 = vpop.f32.mrb[0].mxu0
        %v1415 = vpop.f32.mrb[0].mxu0
        %v1416 = vadd.f32 0.0, %v1415
        %v1417 = vpop.f32.mrb[0].mxu0
        %1418 = vmatprep.mubr.bf16.mxu0 0
        %1419 = vmatmul.mubr.bf16.gmra.mrb[0].mxu0 %v1349
        %v1420 = vpop.f32.mrb[0].mxu0
        %v1421 = vadd.f32 0.0, %v1420
        %v1422 = vpop.f32.mrb[0].mxu0
        %v1423 = vpop.f32.mrb[0].mxu0
        %v1424 = vadd.f32 0.0, %v1423
        %v1425 = vpop.f32.mrb[0].mxu0
        %1426 = vdwg.mxu0
        %v1427 = vadd.f32 %v1309, %v1389
        %v1428 = vadd.f32 %v1310, %v1392
        %v1429 = vadd.f32 %v1311, %v1397
        %v1430 = vadd.f32 %v1312, %v1400
        %v1431 = vadd.f32 %v1313, %v1405
        %v1432 = vadd.f32 %v1314, %v1408
        %v1433 = vadd.f32 %v1315, %v1413
        %v1434 = vadd.f32 %v1316, %v1416
        %v1435 = vadd.f32 %v1317, %v1421
        %v1436 = vadd.f32 %v1318, %v1424
        %v1437 = vld [vmem:[#allocation2 + $0x16] sm:$0xff]
        %v1438 = vld [vmem:[#allocation2 + $0x1e] sm:$0xff]
        %v1439 = vld [vmem:[#allocation2 + $0x26] sm:$0xff]
        %v1440 = vld [vmem:[#allocation2 + $0x2e] sm:$0xff]
        %v1441 = vld [vmem:[#allocation2 + $0x36] sm:$0xff]
        %v1442 = vld [vmem:[#allocation2 + $0x3e] sm:$0xff]
        %v1443 = vld [vmem:[#allocation2 + $0x46] sm:$0xff]
        %v1444 = vld [vmem:[#allocation2 + $0x4e] sm:$0xff]
        %v1445 = vld [vmem:[#allocation2 + $0x56] sm:$0xff]
        %v1446 = vld [vmem:[#allocation2 + $0x5e] sm:$0xff]
        %v1447 = vpack.c.bf16 %v1438, %v1437
        %v1448 = vpack.c.bf16 %v1440, %v1439
        %v1449 = vpack.c.bf16 %v1442, %v1441
        %v1450 = vpack.c.bf16 %v1444, %v1443
        %v1451 = vpack.c.bf16 %v1446, %v1445
        %s1452 = scalar_lea.vmem [#allocation7], 16
        %v1453 = vld [vmem:[%s1452] sm:$0x3]
        %v1455 = vsel %vm489, %v1447, 0
        %v1458 = vsel %vm489, %v1448, 0
        %v1461 = vsel %vm489, %v1449, 0
        %v1464 = vsel %vm489, %v1450, 0
        %v1467 = vsel %vm489, %v1451, 0
        %v1470 = vsel %vm561, %v1453, 0
        %1472 = vmatprep.subr.bf16.mxu0 0
        %1473 = vmatpush1.bf16.msra.mxu0 %v1470
        %1474 = vmatprep.subr.bf16.mxu0 0
        %1475 = vmatpush1.bf16.msra.mxu0 0
        %1476 = vmatprep.subr.bf16.mxu0 0
        %1477 = vmatpush1.bf16.msra.mxu0 0
        %1478 = vmatprep.subr.bf16.mxu0 0
        %1479 = vmatpush1.bf16.msra.mxu0 0
        %1480 = vmatprep.subr.bf16.mxu0 0
        %1481 = vmatpush1.bf16.msra.mxu0 0
        %1482 = vmatprep.subr.bf16.mxu0 0
        %1483 = vmatpush1.bf16.msra.mxu0 0
        %1484 = vmatprep.subr.bf16.mxu0 0
        %1485 = vmatpush1.bf16.msra.mxu0 0
        %1486 = vmatprep.subr.bf16.mxu0 0
        %1487 = vmatpush1.bf16.msra.mxu0 0
        %1488 = vmatprep.subr.bf16.mxu0 0
        %1489 = vmatpush1.bf16.msra.mxu0 0
        %1490 = vmatprep.subr.bf16.mxu0 0
        %1491 = vmatpush1.bf16.msra.mxu0 0
        %1492 = vmatprep.subr.bf16.mxu0 0
        %1493 = vmatpush1.bf16.msra.mxu0 0
        %1494 = vmatprep.subr.bf16.mxu0 0
        %1495 = vmatpush1.bf16.msra.mxu0 0
        %1496 = vmatprep.subr.bf16.mxu0 0
        %1497 = vmatpush1.bf16.msra.mxu0 0
        %1498 = vmatprep.subr.bf16.mxu0 0
        %1499 = vmatpush1.bf16.msra.mxu0 0
        %1500 = vmatprep.subr.bf16.mxu0 0
        %1501 = vmatpush1.bf16.msra.mxu0 0
        %1502 = vmatprep.subr.bf16.mxu0 0
        %1503 = vmatpush1.bf16.msra.mxu0 0
        %1504 = vmatprep.mubr.bf16.mxu0 0
        %1505 = vmatmul.mubr.bf16.gmra.mrb[0].mxu0 %v1455
        %v1506 = vpop.f32.mrb[0].mxu0
        %v1507 = vadd.f32 0.0, %v1506
        %v1508 = vpop.f32.mrb[0].mxu0
        %v1509 = vpop.f32.mrb[0].mxu0
        %v1510 = vadd.f32 0.0, %v1509
        %v1511 = vpop.f32.mrb[0].mxu0
        %1512 = vmatprep.mubr.bf16.mxu0 0
        %1513 = vmatmul.mubr.bf16.gmra.mrb[0].mxu0 %v1458
        %v1514 = vpop.f32.mrb[0].mxu0
        %v1515 = vadd.f32 0.0, %v1514
        %v1516 = vpop.f32.mrb[0].mxu0
        %v1517 = vpop.f32.mrb[0].mxu0
        %v1518 = vadd.f32 0.0, %v1517
        %v1519 = vpop.f32.mrb[0].mxu0
        %1520 = vmatprep.mubr.bf16.mxu0 0
        %1521 = vmatmul.mubr.bf16.gmra.mrb[0].mxu0 %v1461
        %v1522 = vpop.f32.mrb[0].mxu0
        %v1523 = vadd.f32 0.0, %v1522
        %v1524 = vpop.f32.mrb[0].mxu0
        %v1525 = vpop.f32.mrb[0].mxu0
        %v1526 = vadd.f32 0.0, %v1525
        %v1527 = vpop.f32.mrb[0].mxu0
        %1528 = vmatprep.mubr.bf16.mxu0 0
        %1529 = vmatmul.mubr.bf16.gmra.mrb[0].mxu0 %v1464
        %v1530 = vpop.f32.mrb[0].mxu0
        %v1531 = vadd.f32 0.0, %v1530
        %v1532 = vpop.f32.mrb[0].mxu0
        %v1533 = vpop.f32.mrb[0].mxu0
        %v1534 = vadd.f32 0.0, %v1533
        %v1535 = vpop.f32.mrb[0].mxu0
        %1536 = vmatprep.mubr.bf16.mxu0 0
        %1537 = vmatmul.mubr.bf16.gmra.mrb[0].mxu0 %v1467
        %v1538 = vpop.f32.mrb[0].mxu0
        %v1539 = vadd.f32 0.0, %v1538
        %v1540 = vpop.f32.mrb[0].mxu0
        %v1541 = vpop.f32.mrb[0].mxu0
        %v1542 = vadd.f32 0.0, %v1541
        %v1543 = vpop.f32.mrb[0].mxu0
        %1544 = vdwg.mxu0
        %v1545 = vadd.f32 %v1427, %v1507
        %v1546 = vadd.f32 %v1428, %v1510
        %v1547 = vadd.f32 %v1429, %v1515
        %v1548 = vadd.f32 %v1430, %v1518
        %v1549 = vadd.f32 %v1431, %v1523
        %v1550 = vadd.f32 %v1432, %v1526
        %v1551 = vadd.f32 %v1433, %v1531
        %v1552 = vadd.f32 %v1434, %v1534
        %v1553 = vadd.f32 %v1435, %v1539
        %v1554 = vadd.f32 %v1436, %v1542
        %v1555 = vlaneseq
        %v1556 = vshrl.u32 %v1555, 7
        %v1557 = vadd.s32 %v1556, 8
        %v1558 = vadd.s32 %v1556, 16
        %v1559 = vadd.s32 %v1556, 24
        %v1560 = vadd.s32 %v1556, 32
        %v1561 = vadd.s32 %v1556, 40
        %v1562 = vadd.s32 %v1556, 48
        %v1563 = vadd.s32 %v1556, 56
        %v1564 = vadd.s32 %v1556, 64
        %v1565 = vadd.s32 %v1556, 72
        %vm1566 = vcmp.lt.s32.totalorder %v1556, 0
        %v1567 = vsub.s32 0, %v1556
        %v1568 = vsel %vm1566, %v1567, %v1556
        %v1569 = vmul.u32.u64.compose %v1568, 3435973837
        %v1570 = vextract.low.u32 %v1569
        %v1571 = vextract.high.u32 %v1569
        %v1572 = vshrl.u32 %v1571, 3
        %v1573 = vmul.u32 %v1572, 10
        %v1574 = vsub.s32 %v1568, %v1573
        %v1575 = vsub.s32 0, %v1574
        %v1576 = vsel %vm1566, %v1575, %v1574
        %vm1577 = vcmp.lt.s32.totalorder %v1557, 0
        %v1578 = vsub.s32 0, %v1557
        %v1579 = vsel %vm1577, %v1578, %v1557
        %v1580 = vmul.u32.u64.compose %v1579, 3435973837
        %v1581 = vextract.low.u32 %v1580
        %v1582 = vextract.high.u32 %v1580
        %v1583 = vshrl.u32 %v1582, 3
        %v1584 = vmul.u32 %v1583, 10
        %v1585 = vsub.s32 %v1579, %v1584
        %v1586 = vsub.s32 0, %v1585
        %v1587 = vsel %vm1577, %v1586, %v1585
        %vm1588 = vcmp.lt.s32.totalorder %v1558, 0
        %v1589 = vsub.s32 0, %v1558
        %v1590 = vsel %vm1588, %v1589, %v1558
        %v1591 = vmul.u32.u64.compose %v1590, 3435973837
        %v1592 = vextract.low.u32 %v1591
        %v1593 = vextract.high.u32 %v1591
        %v1594 = vshrl.u32 %v1593, 3
        %v1595 = vmul.u32 %v1594, 10
        %v1596 = vsub.s32 %v1590, %v1595
        %v1597 = vsub.s32 0, %v1596
        %v1598 = vsel %vm1588, %v1597, %v1596
        %vm1599 = vcmp.lt.s32.totalorder %v1559, 0
        %v1600 = vsub.s32 0, %v1559
        %v1601 = vsel %vm1599, %v1600, %v1559
        %v1602 = vmul.u32.u64.compose %v1601, 3435973837
        %v1603 = vextract.low.u32 %v1602
        %v1604 = vextract.high.u32 %v1602
        %v1605 = vshrl.u32 %v1604, 3
        %v1606 = vmul.u32 %v1605, 10
        %v1607 = vsub.s32 %v1601, %v1606
        %v1608 = vsub.s32 0, %v1607
        %v1609 = vsel %vm1599, %v1608, %v1607
        %vm1610 = vcmp.lt.s32.totalorder %v1560, 0
        %v1611 = vsub.s32 0, %v1560
        %v1612 = vsel %vm1610, %v1611, %v1560
        %v1613 = vmul.u32.u64.compose %v1612, 3435973837
        %v1614 = vextract.low.u32 %v1613
        %v1615 = vextract.high.u32 %v1613
        %v1616 = vshrl.u32 %v1615, 3
        %v1617 = vmul.u32 %v1616, 10
        %v1618 = vsub.s32 %v1612, %v1617
        %v1619 = vsub.s32 0, %v1618
        %v1620 = vsel %vm1610, %v1619, %v1618
        %vm1621 = vcmp.lt.s32.totalorder %v1561, 0
        %v1622 = vsub.s32 0, %v1561
        %v1623 = vsel %vm1621, %v1622, %v1561
        %v1624 = vmul.u32.u64.compose %v1623, 3435973837
        %v1625 = vextract.low.u32 %v1624
        %v1626 = vextract.high.u32 %v1624
        %v1627 = vshrl.u32 %v1626, 3
        %v1628 = vmul.u32 %v1627, 10
        %v1629 = vsub.s32 %v1623, %v1628
        %v1630 = vsub.s32 0, %v1629
        %v1631 = vsel %vm1621, %v1630, %v1629
        %vm1632 = vcmp.lt.s32.totalorder %v1562, 0
        %v1633 = vsub.s32 0, %v1562
        %v1634 = vsel %vm1632, %v1633, %v1562
        %v1635 = vmul.u32.u64.compose %v1634, 3435973837
        %v1636 = vextract.low.u32 %v1635
        %v1637 = vextract.high.u32 %v1635
        %v1638 = vshrl.u32 %v1637, 3
        %v1639 = vmul.u32 %v1638, 10
        %v1640 = vsub.s32 %v1634, %v1639
        %v1641 = vsub.s32 0, %v1640
        %v1642 = vsel %vm1632, %v1641, %v1640
        %vm1643 = vcmp.lt.s32.totalorder %v1563, 0
        %v1644 = vsub.s32 0, %v1563
        %v1645 = vsel %vm1643, %v1644, %v1563
        %v1646 = vmul.u32.u64.compose %v1645, 3435973837
        %v1647 = vextract.low.u32 %v1646
        %v1648 = vextract.high.u32 %v1646
        %v1649 = vshrl.u32 %v1648, 3
        %v1650 = vmul.u32 %v1649, 10
        %v1651 = vsub.s32 %v1645, %v1650
        %v1652 = vsub.s32 0, %v1651
        %v1653 = vsel %vm1643, %v1652, %v1651
        %vm1654 = vcmp.lt.s32.totalorder %v1564, 0
        %v1655 = vsub.s32 0, %v1564
        %v1656 = vsel %vm1654, %v1655, %v1564
        %v1657 = vmul.u32.u64.compose %v1656, 3435973837
        %v1658 = vextract.low.u32 %v1657
        %v1659 = vextract.high.u32 %v1657
        %v1660 = vshrl.u32 %v1659, 3
        %v1661 = vmul.u32 %v1660, 10
        %v1662 = vsub.s32 %v1656, %v1661
        %v1663 = vsub.s32 0, %v1662
        %v1664 = vsel %vm1654, %v1663, %v1662
        %vm1665 = vcmp.lt.s32.totalorder %v1565, 0
        %v1666 = vsub.s32 0, %v1565
        %v1667 = vsel %vm1665, %v1666, %v1565
        %v1668 = vmul.u32.u64.compose %v1667, 3435973837
        %v1669 = vextract.low.u32 %v1668
        %v1670 = vextract.high.u32 %v1668
        %v1671 = vshrl.u32 %v1670, 3
        %v1672 = vmul.u32 %v1671, 10
        %v1673 = vsub.s32 %v1667, %v1672
        %v1674 = vsub.s32 0, %v1673
        %v1675 = vsel %vm1665, %v1674, %v1673
        %vm1676 = vcmp.ne.s32.totalorder %v1576, 0
        %vm1677 = vcmp.ne.s32.totalorder %v1587, 0
        %vm1678 = vcmp.ne.s32.totalorder %v1598, 0
        %vm1679 = vcmp.ne.s32.totalorder %v1609, 0
        %vm1680 = vcmp.ne.s32.totalorder %v1620, 0
        %vm1681 = vcmp.ne.s32.totalorder %v1631, 0
        %vm1682 = vcmp.ne.s32.totalorder %v1642, 0
        %vm1683 = vcmp.ne.s32.totalorder %v1653, 0
        %vm1684 = vcmp.ne.s32.totalorder %v1664, 0
        %vm1685 = vcmp.ne.s32.totalorder %v1675, 0
        %vm1686 = vcmp.lt.s32.totalorder %v1576, 0
        %vm1687 = vcmp.lt.s32.totalorder %v1587, 0
        %vm1688 = vcmp.lt.s32.totalorder %v1598, 0
        %vm1689 = vcmp.lt.s32.totalorder %v1609, 0
        %vm1690 = vcmp.lt.s32.totalorder %v1620, 0
        %vm1691 = vcmp.lt.s32.totalorder %v1631, 0
        %vm1692 = vcmp.lt.s32.totalorder %v1642, 0
        %vm1693 = vcmp.lt.s32.totalorder %v1653, 0
        %vm1694 = vcmp.lt.s32.totalorder %v1664, 0
        %vm1695 = vcmp.lt.s32.totalorder %v1675, 0
        %vm1696 = vmand %vm1686, %vm1676
        %vm1697 = vmand %vm1687, %vm1677
        %vm1698 = vmand %vm1688, %vm1678
        %vm1699 = vmand %vm1689, %vm1679
        %vm1700 = vmand %vm1690, %vm1680
        %vm1701 = vmand %vm1691, %vm1681
        %vm1702 = vmand %vm1692, %vm1682
        %vm1703 = vmand %vm1693, %vm1683
        %vm1704 = vmand %vm1694, %vm1684
        %vm1705 = vmand %vm1695, %vm1685
        %v1706 = vadd.s32 %v1576, 10
        %v1707 = vadd.s32 %v1587, 10
        %v1708 = vadd.s32 %v1598, 10
        %v1709 = vadd.s32 %v1609, 10
        %v1710 = vadd.s32 %v1620, 10
        %v1711 = vadd.s32 %v1631, 10
        %v1712 = vadd.s32 %v1642, 10
        %v1713 = vadd.s32 %v1653, 10
        %v1714 = vadd.s32 %v1664, 10
        %v1715 = vadd.s32 %v1675, 10
        %v1716 = vsel %vm1696, %v1706, %v1576
        %v1717 = vsel %vm1697, %v1707, %v1587
        %v1718 = vsel %vm1698, %v1708, %v1598
        %v1719 = vsel %vm1699, %v1709, %v1609
        %v1720 = vsel %vm1700, %v1710, %v1620
        %v1721 = vsel %vm1701, %v1711, %v1631
        %v1722 = vsel %vm1702, %v1712, %v1642
        %v1723 = vsel %vm1703, %v1713, %v1653
        %v1724 = vsel %vm1704, %v1714, %v1664
        %v1725 = vsel %vm1705, %v1715, %v1675
        %vm1726 = vcmp.lt.s32.totalorder %v1716, 8
        %vm1727 = vcmp.lt.s32.totalorder %v1717, 8
        %vm1728 = vcmp.lt.s32.totalorder %v1718, 8
        %vm1729 = vcmp.lt.s32.totalorder %v1719, 8
        %vm1730 = vcmp.lt.s32.totalorder %v1720, 8
        %vm1731 = vcmp.lt.s32.totalorder %v1721, 8
        %vm1732 = vcmp.lt.s32.totalorder %v1722, 8
        %vm1733 = vcmp.lt.s32.totalorder %v1723, 8
        %vm1734 = vcmp.lt.s32.totalorder %v1724, 8
        %vm1735 = vcmp.lt.s32.totalorder %v1725, 8
        %v1736 = vsel %vm1726, 1, 0
        %v1737 = vsel %vm1727, 1, 0
        %v1738 = vsel %vm1728, 1, 0
        %v1739 = vsel %vm1729, 1, 0
        %v1740 = vsel %vm1730, 1, 0
        %v1741 = vsel %vm1731, 1, 0
        %v1742 = vsel %vm1732, 1, 0
        %v1743 = vsel %vm1733, 1, 0
        %v1744 = vsel %vm1734, 1, 0
        %v1745 = vsel %vm1735, 1, 0
        %v1746 = vcvt.s32.f32 %v1736
        %v1747 = vcvt.s32.f32 %v1737
        %v1748 = vcvt.s32.f32 %v1738
        %v1749 = vcvt.s32.f32 %v1739
        %v1750 = vcvt.s32.f32 %v1740
        %v1751 = vcvt.s32.f32 %v1741
        %v1752 = vcvt.s32.f32 %v1742
        %v1753 = vcvt.s32.f32 %v1743
        %v1754 = vcvt.s32.f32 %v1744
        %v1755 = vcvt.s32.f32 %v1745
        %v1756 = vld [vmem:[#allocation9] sm:$0x1]
        %v1758 = vlaneseq
        %v1759 = vshrl.u32 %v1758, 7
        %v1760 = vsub.s32 0, %v1759
        %v1761 = vrot.slane %v1756, %v1760
        %v1763 = vmul.f32 %v1545, %v1761
        %v1764 = vmul.f32 %v1546, %v1761
        %v1765 = vmul.f32 %v1547, %v1761
        %v1766 = vmul.f32 %v1548, %v1761
        %v1767 = vmul.f32 %v1549, %v1761
        %v1768 = vmul.f32 %v1550, %v1761
        %v1769 = vmul.f32 %v1551, %v1761
        %v1770 = vmul.f32 %v1552, %v1761
        %v1771 = vmul.f32 %v1553, %v1761
        %v1772 = vmul.f32 %v1554, %v1761
        %v1773 = vld [vmem:[#allocation10] sm:$0x1]
        %v1775 = vlaneseq
        %v1776 = vshrl.u32 %v1775, 7
        %v1777 = vsub.s32 0, %v1776
        %v1778 = vrot.slane %v1773, %v1777
        %v1780 = vadd.f32 %v1763, %v1778
        %v1781 = vadd.f32 %v1764, %v1778
        %v1782 = vadd.f32 %v1765, %v1778
        %v1783 = vadd.f32 %v1766, %v1778
        %v1784 = vadd.f32 %v1767, %v1778
        %v1785 = vadd.f32 %v1768, %v1778
        %v1786 = vadd.f32 %v1769, %v1778
        %v1787 = vadd.f32 %v1770, %v1778
        %v1788 = vadd.f32 %v1771, %v1778
        %v1789 = vadd.f32 %v1772, %v1778
        %v1790 = vmax.f32 %v1780, 0.0
        %v1791 = vmax.f32 %v1781, 0.0
        %v1792 = vmax.f32 %v1782, 0.0
        %v1793 = vmax.f32 %v1783, 0.0
        %v1794 = vmax.f32 %v1784, 0.0
        %v1795 = vmax.f32 %v1785, 0.0
        %v1796 = vmax.f32 %v1786, 0.0
        %v1797 = vmax.f32 %v1787, 0.0
        %v1798 = vmax.f32 %v1788, 0.0
        %v1799 = vmax.f32 %v1789, 0.0
        %v1800 = vmul.f32 %v1790, %v1746
        %v1801 = vmul.f32 %v1791, %v1747
        %v1802 = vmul.f32 %v1792, %v1748
        %v1803 = vmul.f32 %v1793, %v1749
        %v1804 = vmul.f32 %v1794, %v1750
        %v1805 = vmul.f32 %v1795, %v1751
        %v1806 = vmul.f32 %v1796, %v1752
        %v1807 = vmul.f32 %v1797, %v1753
        %v1808 = vmul.f32 %v1798, %v1754
        %v1809 = vmul.f32 %v1799, %v1755
        %vm1810 = vcmask 64512
        %1811 = vst.msk [vmem:[#allocation3] sm:$0xff] %vm1810, 0.0
        %vm1812 = vcmask 59392
        %1813 = vst.msk [vmem:[#allocation3 + $0x8] sm:$0x7] %vm1812, 0.0
        %1814 = vst.msk [vmem:[#allocation3 + $0xb] sm:$0xff] %vm1810, %v1800
        %1815 = vst.msk [vmem:[#allocation3 + $0x13] sm:$0xff] %vm1810, %v1801
        %1816 = vst.msk [vmem:[#allocation3 + $0x1b] sm:$0xff] %vm1810, %v1802
        %1817 = vst.msk [vmem:[#allocation3 + $0x23] sm:$0xff] %vm1810, %v1803
        %1818 = vst.msk [vmem:[#allocation3 + $0x2b] sm:$0xff] %vm1810, %v1804
        %1819 = vst.msk [vmem:[#allocation3 + $0x33] sm:$0xff] %vm1810, %v1805
        %1820 = vst.msk [vmem:[#allocation3 + $0x3b] sm:$0xff] %vm1810, %v1806
        %1821 = vst.msk [vmem:[#allocation3 + $0x43] sm:$0xff] %vm1810, %v1807
        %1822 = vst.msk [vmem:[#allocation3 + $0x4b] sm:$0xff] %vm1810, %v1808
        %1823 = vst.msk [vmem:[#allocation3 + $0x53] sm:$0xff] %vm1810, %v1809
        %1824 = vst.msk [vmem:[#allocation3 + $0x5b] sm:$0xff] %vm1810, 0.0
        %1825 = vst.msk [vmem:[#allocation3 + $0x63] sm:$0xff] %vm1810, 0.0
        %vm1826 = vcmask 57344
        %1827 = vst.msk [vmem:[#allocation3 + $0x6b] sm:$0x1] %vm1826, 0.0
        %v1828 = vld [vmem:[#allocation3] sm:$0xff]
        %v1829 = vld [vmem:[#allocation3 + $0x8] sm:$0xff]
        %v1830 = vld [vmem:[#allocation3 + $0x10] sm:$0xff]
        %v1831 = vld [vmem:[#allocation3 + $0x18] sm:$0xff]
        %v1832 = vld [vmem:[#allocation3 + $0x20] sm:$0xff]
        %v1833 = vld [vmem:[#allocation3 + $0x28] sm:$0xff]
        %v1834 = vld [vmem:[#allocation3 + $0x30] sm:$0xff]
        %v1835 = vld [vmem:[#allocation3 + $0x38] sm:$0xff]
        %v1836 = vld [vmem:[#allocation3 + $0x40] sm:$0xff]
        %v1837 = vld [vmem:[#allocation3 + $0x48] sm:$0xff]
        %v1838 = vpack.c.bf16 %v1829, %v1828
        %v1839 = vpack.c.bf16 %v1831, %v1830
        %v1840 = vpack.c.bf16 %v1833, %v1832
        %v1841 = vpack.c.bf16 %v1835, %v1834
        %v1842 = vpack.c.bf16 %v1837, %v1836
        %v1843 = vld [vmem:[#allocation12] sm:$0xf]
        %v1844 = vld [vmem:[#allocation3 + $0x1] sm:$0xff]
        %v1845 = vld [vmem:[#allocation3 + $0x9] sm:$0xff]
        %v1846 = vld [vmem:[#allocation3 + $0x11] sm:$0xff]
        %v1847 = vld [vmem:[#allocation3 + $0x19] sm:$0xff]
        %v1848 = vld [vmem:[#allocation3 + $0x21] sm:$0xff]
        %v1849 = vld [vmem:[#allocation3 + $0x29] sm:$0xff]
        %v1850 = vld [vmem:[#allocation3 + $0x31] sm:$0xff]
        %v1851 = vld [vmem:[#allocation3 + $0x39] sm:$0xff]
        %v1852 = vld [vmem:[#allocation3 + $0x41] sm:$0xff]
        %v1853 = vld [vmem:[#allocation3 + $0x49] sm:$0xff]
        %v1854 = vpack.c.bf16 %v1845, %v1844
        %v1855 = vpack.c.bf16 %v1847, %v1846
        %v1856 = vpack.c.bf16 %v1849, %v1848
        %v1857 = vpack.c.bf16 %v1851, %v1850
        %v1858 = vpack.c.bf16 %v1853, %v1852
        %s1859 = scalar_lea.vmem [#allocation12], 4
        %v1860 = vld [vmem:[%s1859] sm:$0xf]
        %v1862 = vsel %vm1810, %v1854, 0
        %v1865 = vsel %vm1810, %v1855, 0
        %v1868 = vsel %vm1810, %v1856, 0
        %v1871 = vsel %vm1810, %v1857, 0
        %v1874 = vsel %vm1810, %v1858, 0
        %vm1876 = vcmask 1043456
        %v1878 = vsel %vm1876, %v1860, 0
        %1880 = vmatprep.subr.bf16.mxu0 0
        %1881 = vmatpush1.bf16.msra.mxu0 %v1878
        %1882 = vmatprep.subr.bf16.mxu0 0
        %1883 = vmatpush1.bf16.msra.mxu0 0
        %1884 = vmatprep.subr.bf16.mxu0 0
        %1885 = vmatpush1.bf16.msra.mxu0 0
        %1886 = vmatprep.subr.bf16.mxu0 0
        %1887 = vmatpush1.bf16.msra.mxu0 0
        %1888 = vmatprep.subr.bf16.mxu0 0
        %1889 = vmatpush1.bf16.msra.mxu0 0
        %1890 = vmatprep.subr.bf16.mxu0 0
        %1891 = vmatpush1.bf16.msra.mxu0 0
        %1892 = vmatprep.subr.bf16.mxu0 0
        %1893 = vmatpush1.bf16.msra.mxu0 0
        %1894 = vmatprep.subr.bf16.mxu0 0
        %1895 = vmatpush1.bf16.msra.mxu0 0
        %1896 = vmatprep.subr.bf16.mxu0 0
        %1897 = vmatpush1.bf16.msra.mxu0 0
        %1898 = vmatprep.subr.bf16.mxu0 0
        %1899 = vmatpush1.bf16.msra.mxu0 0
        %1900 = vmatprep.subr.bf16.mxu0 0
        %1901 = vmatpush1.bf16.msra.mxu0 0
        %1902 = vmatprep.subr.bf16.mxu0 0
        %1903 = vmatpush1.bf16.msra.mxu0 0
        %1904 = vmatprep.subr.bf16.mxu0 0
        %1905 = vmatpush1.bf16.msra.mxu0 0
        %1906 = vmatprep.subr.bf16.mxu0 0
        %1907 = vmatpush1.bf16.msra.mxu0 0
        %1908 = vmatprep.subr.bf16.mxu0 0
        %1909 = vmatpush1.bf16.msra.mxu0 0
        %1910 = vmatprep.subr.bf16.mxu0 0
        %1911 = vmatpush1.bf16.msra.mxu0 0
        %1912 = vmatprep.mubr.bf16.mxu0 0
        %1913 = vmatmul.mubr.bf16.gmra.mrb[0].mxu0 %v1862
        %v1914 = vpop.f32.mrb[0].mxu0
        %v1915 = vadd.f32 0.0, %v1914
        %v1916 = vpop.f32.mrb[0].mxu0
        %v1917 = vpop.f32.mrb[0].mxu0
        %v1918 = vadd.f32 0.0, %v1917
        %v1919 = vpop.f32.mrb[0].mxu0
        %1920 = vmatprep.mubr.bf16.mxu0 0
        %1921 = vmatmul.mubr.bf16.gmra.mrb[0].mxu0 %v1865
        %v1922 = vpop.f32.mrb[0].mxu0
        %v1923 = vadd.f32 0.0, %v1922
        %v1924 = vpop.f32.mrb[0].mxu0
        %v1925 = vpop.f32.mrb[0].mxu0
        %v1926 = vadd.f32 0.0, %v1925
        %v1927 = vpop.f32.mrb[0].mxu0
        %1928 = vmatprep.mubr.bf16.mxu0 0
        %1929 = vmatmul.mubr.bf16.gmra.mrb[0].mxu0 %v1868
        %v1930 = vpop.f32.mrb[0].mxu0
        %v1931 = vadd.f32 0.0, %v1930
        %v1932 = vpop.f32.mrb[0].mxu0
        %v1933 = vpop.f32.mrb[0].mxu0
        %v1934 = vadd.f32 0.0, %v1933
        %v1935 = vpop.f32.mrb[0].mxu0
        %1936 = vmatprep.mubr.bf16.mxu0 0
        %1937 = vmatmul.mubr.bf16.gmra.mrb[0].mxu0 %v1871
        %v1938 = vpop.f32.mrb[0].mxu0
        %v1939 = vadd.f32 0.0, %v1938
        %v1940 = vpop.f32.mrb[0].mxu0
        %v1941 = vpop.f32.mrb[0].mxu0
        %v1942 = vadd.f32 0.0, %v1941
        %v1943 = vpop.f32.mrb[0].mxu0
        %1944 = vmatprep.mubr.bf16.mxu0 0
        %1945 = vmatmul.mubr.bf16.gmra.mrb[0].mxu0 %v1874
        %v1946 = vpop.f32.mrb[0].mxu0
        %v1947 = vadd.f32 0.0, %v1946
        %v1948 = vpop.f32.mrb[0].mxu0
        %v1949 = vpop.f32.mrb[0].mxu0
        %v1950 = vadd.f32 0.0, %v1949
        %v1951 = vpop.f32.mrb[0].mxu0
        %1952 = vdwg.mxu0
        %v1954 = vsel %vm1810, %v1838, 0
        %v1957 = vsel %vm1810, %v1839, 0
        %v1960 = vsel %vm1810, %v1840, 0
        %v1963 = vsel %vm1810, %v1841, 0
        %v1966 = vsel %vm1810, %v1842, 0
        %v1969 = vsel %vm1876, %v1843, 0
        %1971 = vmatprep.subr.bf16.mxu0 0
        %1972 = vmatpush1.bf16.msra.mxu0 %v1969
        %1973 = vmatprep.subr.bf16.mxu0 0
        %1974 = vmatpush1.bf16.msra.mxu0 0
        %1975 = vmatprep.subr.bf16.mxu0 0
        %1976 = vmatpush1.bf16.msra.mxu0 0
        %1977 = vmatprep.subr.bf16.mxu0 0
        %1978 = vmatpush1.bf16.msra.mxu0 0
        %1979 = vmatprep.subr.bf16.mxu0 0
        %1980 = vmatpush1.bf16.msra.mxu0 0
        %1981 = vmatprep.subr.bf16.mxu0 0
        %1982 = vmatpush1.bf16.msra.mxu0 0
        %1983 = vmatprep.subr.bf16.mxu0 0
        %1984 = vmatpush1.bf16.msra.mxu0 0
        %1985 = vmatprep.subr.bf16.mxu0 0
        %1986 = vmatpush1.bf16.msra.mxu0 0
        %1987 = vmatprep.subr.bf16.mxu0 0
        %1988 = vmatpush1.bf16.msra.mxu0 0
        %1989 = vmatprep.subr.bf16.mxu0 0
        %1990 = vmatpush1.bf16.msra.mxu0 0
        %1991 = vmatprep.subr.bf16.mxu0 0
        %1992 = vmatpush1.bf16.msra.mxu0 0
        %1993 = vmatprep.subr.bf16.mxu0 0
        %1994 = vmatpush1.bf16.msra.mxu0 0
        %1995 = vmatprep.subr.bf16.mxu0 0
        %1996 = vmatpush1.bf16.msra.mxu0 0
        %1997 = vmatprep.subr.bf16.mxu0 0
        %1998 = vmatpush1.bf16.msra.mxu0 0
        %1999 = vmatprep.subr.bf16.mxu0 0
        %2000 = vmatpush1.bf16.msra.mxu0 0
        %2001 = vmatprep.subr.bf16.mxu0 0
        %2002 = vmatpush1.bf16.msra.mxu0 0
        %2003 = vmatprep.mubr.bf16.mxu0 0
        %2004 = vmatmul.mubr.bf16.gmra.mrb[0].mxu0 %v1954
        %v2005 = vpop.f32.mrb[0].mxu0
        %v2006 = vadd.f32 %v1915, %v2005
        %v2007 = vpop.f32.mrb[0].mxu0
        %v2008 = vpop.f32.mrb[0].mxu0
        %v2009 = vadd.f32 %v1918, %v2008
        %v2010 = vpop.f32.mrb[0].mxu0
        %2011 = vmatprep.mubr.bf16.mxu0 0
        %2012 = vmatmul.mubr.bf16.gmra.mrb[0].mxu0 %v1957
        %v2013 = vpop.f32.mrb[0].mxu0
        %v2014 = vadd.f32 %v1923, %v2013
        %v2015 = vpop.f32.mrb[0].mxu0
        %v2016 = vpop.f32.mrb[0].mxu0
        %v2017 = vadd.f32 %v1926, %v2016
        %v2018 = vpop.f32.mrb[0].mxu0
        %2019 = vmatprep.mubr.bf16.mxu0 0
        %2020 = vmatmul.mubr.bf16.gmra.mrb[0].mxu0 %v1960
        %v2021 = vpop.f32.mrb[0].mxu0
        %v2022 = vadd.f32 %v1931, %v2021
        %v2023 = vpop.f32.mrb[0].mxu0
        %v2024 = vpop.f32.mrb[0].mxu0
        %v2025 = vadd.f32 %v1934, %v2024
        %v2026 = vpop.f32.mrb[0].mxu0
        %2027 = vmatprep.mubr.bf16.mxu0 0
        %2028 = vmatmul.mubr.bf16.gmra.mrb[0].mxu0 %v1963
        %v2029 = vpop.f32.mrb[0].mxu0
        %v2030 = vadd.f32 %v1939, %v2029
        %v2031 = vpop.f32.mrb[0].mxu0
        %v2032 = vpop.f32.mrb[0].mxu0
        %v2033 = vadd.f32 %v1942, %v2032
        %v2034 = vpop.f32.mrb[0].mxu0
        %2035 = vmatprep.mubr.bf16.mxu0 0
        %2036 = vmatmul.mubr.bf16.gmra.mrb[0].mxu0 %v1966
        %v2037 = vpop.f32.mrb[0].mxu0
        %v2038 = vadd.f32 %v1947, %v2037
        %v2039 = vpop.f32.mrb[0].mxu0
        %v2040 = vpop.f32.mrb[0].mxu0
        %v2041 = vadd.f32 %v1950, %v2040
        %v2042 = vpop.f32.mrb[0].mxu0
        %2043 = vdwg.mxu0
        %v2044 = vld [vmem:[#allocation3 + $0x2] sm:$0xff]
        %v2045 = vld [vmem:[#allocation3 + $0xa] sm:$0xff]
        %v2046 = vld [vmem:[#allocation3 + $0x12] sm:$0xff]
        %v2047 = vld [vmem:[#allocation3 + $0x1a] sm:$0xff]
        %v2048 = vld [vmem:[#allocation3 + $0x22] sm:$0xff]
        %v2049 = vld [vmem:[#allocation3 + $0x2a] sm:$0xff]
        %v2050 = vld [vmem:[#allocation3 + $0x32] sm:$0xff]
        %v2051 = vld [vmem:[#allocation3 + $0x3a] sm:$0xff]
        %v2052 = vld [vmem:[#allocation3 + $0x42] sm:$0xff]
        %v2053 = vld [vmem:[#allocation3 + $0x4a] sm:$0xff]
        %v2054 = vpack.c.bf16 %v2045, %v2044
        %v2055 = vpack.c.bf16 %v2047, %v2046
        %v2056 = vpack.c.bf16 %v2049, %v2048
        %v2057 = vpack.c.bf16 %v2051, %v2050
        %v2058 = vpack.c.bf16 %v2053, %v2052
        %s2059 = scalar_lea.vmem [#allocation12], 8
        %v2060 = vld [vmem:[%s2059] sm:$0xf]
        %v2062 = vsel %vm1810, %v2054, 0
        %v2065 = vsel %vm1810, %v2055, 0
        %v2068 = vsel %vm1810, %v2056, 0
        %v2071 = vsel %vm1810, %v2057, 0
        %v2074 = vsel %vm1810, %v2058, 0
        %v2077 = vsel %vm1876, %v2060, 0
        %2079 = vmatprep.subr.bf16.mxu0 0
        %2080 = vmatpush1.bf16.msra.mxu0 %v2077
        %2081 = vmatprep.subr.bf16.mxu0 0
        %2082 = vmatpush1.bf16.msra.mxu0 0
        %2083 = vmatprep.subr.bf16.mxu0 0
        %2084 = vmatpush1.bf16.msra.mxu0 0
        %2085 = vmatprep.subr.bf16.mxu0 0
        %2086 = vmatpush1.bf16.msra.mxu0 0
        %2087 = vmatprep.subr.bf16.mxu0 0
        %2088 = vmatpush1.bf16.msra.mxu0 0
        %2089 = vmatprep.subr.bf16.mxu0 0
        %2090 = vmatpush1.bf16.msra.mxu0 0
        %2091 = vmatprep.subr.bf16.mxu0 0
        %2092 = vmatpush1.bf16.msra.mxu0 0
        %2093 = vmatprep.subr.bf16.mxu0 0
        %2094 = vmatpush1.bf16.msra.mxu0 0
        %2095 = vmatprep.subr.bf16.mxu0 0
        %2096 = vmatpush1.bf16.msra.mxu0 0
        %2097 = vmatprep.subr.bf16.mxu0 0
        %2098 = vmatpush1.bf16.msra.mxu0 0
        %2099 = vmatprep.subr.bf16.mxu0 0
        %2100 = vmatpush1.bf16.msra.mxu0 0
        %2101 = vmatprep.subr.bf16.mxu0 0
        %2102 = vmatpush1.bf16.msra.mxu0 0
        %2103 = vmatprep.subr.bf16.mxu0 0
        %2104 = vmatpush1.bf16.msra.mxu0 0
        %2105 = vmatprep.subr.bf16.mxu0 0
        %2106 = vmatpush1.bf16.msra.mxu0 0
        %2107 = vmatprep.subr.bf16.mxu0 0
        %2108 = vmatpush1.bf16.msra.mxu0 0
        %2109 = vmatprep.subr.bf16.mxu0 0
        %2110 = vmatpush1.bf16.msra.mxu0 0
        %2111 = vmatprep.mubr.bf16.mxu0 0
        %2112 = vmatmul.mubr.bf16.gmra.mrb[0].mxu0 %v2062
        %v2113 = vpop.f32.mrb[0].mxu0
        %v2114 = vadd.f32 0.0, %v2113
        %v2115 = vpop.f32.mrb[0].mxu0
        %v2116 = vpop.f32.mrb[0].mxu0
        %v2117 = vadd.f32 0.0, %v2116
        %v2118 = vpop.f32.mrb[0].mxu0
        %2119 = vmatprep.mubr.bf16.mxu0 0
        %2120 = vmatmul.mubr.bf16.gmra.mrb[0].mxu0 %v2065
        %v2121 = vpop.f32.mrb[0].mxu0
        %v2122 = vadd.f32 0.0, %v2121
        %v2123 = vpop.f32.mrb[0].mxu0
        %v2124 = vpop.f32.mrb[0].mxu0
        %v2125 = vadd.f32 0.0, %v2124
        %v2126 = vpop.f32.mrb[0].mxu0
        %2127 = vmatprep.mubr.bf16.mxu0 0
        %2128 = vmatmul.mubr.bf16.gmra.mrb[0].mxu0 %v2068
        %v2129 = vpop.f32.mrb[0].mxu0
        %v2130 = vadd.f32 0.0, %v2129
        %v2131 = vpop.f32.mrb[0].mxu0
        %v2132 = vpop.f32.mrb[0].mxu0
        %v2133 = vadd.f32 0.0, %v2132
        %v2134 = vpop.f32.mrb[0].mxu0
        %2135 = vmatprep.mubr.bf16.mxu0 0
        %2136 = vmatmul.mubr.bf16.gmra.mrb[0].mxu0 %v2071
        %v2137 = vpop.f32.mrb[0].mxu0
        %v2138 = vadd.f32 0.0, %v2137
        %v2139 = vpop.f32.mrb[0].mxu0
        %v2140 = vpop.f32.mrb[0].mxu0
        %v2141 = vadd.f32 0.0, %v2140
        %v2142 = vpop.f32.mrb[0].mxu0
        %2143 = vmatprep.mubr.bf16.mxu0 0
        %2144 = vmatmul.mubr.bf16.gmra.mrb[0].mxu0 %v2074
        %v2145 = vpop.f32.mrb[0].mxu0
        %v2146 = vadd.f32 0.0, %v2145
        %v2147 = vpop.f32.mrb[0].mxu0
        %v2148 = vpop.f32.mrb[0].mxu0
        %v2149 = vadd.f32 0.0, %v2148
        %v2150 = vpop.f32.mrb[0].mxu0
        %2151 = vdwg.mxu0
        %v2152 = vadd.f32 %v2006, %v2114
        %v2153 = vadd.f32 %v2009, %v2117
        %v2154 = vadd.f32 %v2014, %v2122
        %v2155 = vadd.f32 %v2017, %v2125
        %v2156 = vadd.f32 %v2022, %v2130
        %v2157 = vadd.f32 %v2025, %v2133
        %v2158 = vadd.f32 %v2030, %v2138
        %v2159 = vadd.f32 %v2033, %v2141
        %v2160 = vadd.f32 %v2038, %v2146
        %v2161 = vadd.f32 %v2041, %v2149
        %v2162 = vld [vmem:[#allocation3 + $0xa] sm:$0xff]
        %v2163 = vld [vmem:[#allocation3 + $0x12] sm:$0xff]
        %v2164 = vld [vmem:[#allocation3 + $0x1a] sm:$0xff]
        %v2165 = vld [vmem:[#allocation3 + $0x22] sm:$0xff]
        %v2166 = vld [vmem:[#allocation3 + $0x2a] sm:$0xff]
        %v2167 = vld [vmem:[#allocation3 + $0x32] sm:$0xff]
        %v2168 = vld [vmem:[#allocation3 + $0x3a] sm:$0xff]
        %v2169 = vld [vmem:[#allocation3 + $0x42] sm:$0xff]
        %v2170 = vld [vmem:[#allocation3 + $0x4a] sm:$0xff]
        %v2171 = vld [vmem:[#allocation3 + $0x52] sm:$0xff]
        %v2172 = vpack.c.bf16 %v2163, %v2162
        %v2173 = vpack.c.bf16 %v2165, %v2164
        %v2174 = vpack.c.bf16 %v2167, %v2166
        %v2175 = vpack.c.bf16 %v2169, %v2168
        %v2176 = vpack.c.bf16 %v2171, %v2170
        %s2177 = scalar_lea.vmem [#allocation12], 12
        %v2178 = vld [vmem:[%s2177] sm:$0xf]
        %v2180 = vsel %vm1810, %v2172, 0
        %v2183 = vsel %vm1810, %v2173, 0
        %v2186 = vsel %vm1810, %v2174, 0
        %v2189 = vsel %vm1810, %v2175, 0
        %v2192 = vsel %vm1810, %v2176, 0
        %v2195 = vsel %vm1876, %v2178, 0
        %2197 = vmatprep.subr.bf16.mxu0 0
        %2198 = vmatpush1.bf16.msra.mxu0 %v2195
        %2199 = vmatprep.subr.bf16.mxu0 0
        %2200 = vmatpush1.bf16.msra.mxu0 0
        %2201 = vmatprep.subr.bf16.mxu0 0
        %2202 = vmatpush1.bf16.msra.mxu0 0
        %2203 = vmatprep.subr.bf16.mxu0 0
        %2204 = vmatpush1.bf16.msra.mxu0 0
        %2205 = vmatprep.subr.bf16.mxu0 0
        %2206 = vmatpush1.bf16.msra.mxu0 0
        %2207 = vmatprep.subr.bf16.mxu0 0
        %2208 = vmatpush1.bf16.msra.mxu0 0
        %2209 = vmatprep.subr.bf16.mxu0 0
        %2210 = vmatpush1.bf16.msra.mxu0 0
        %2211 = vmatprep.subr.bf16.mxu0 0
        %2212 = vmatpush1.bf16.msra.mxu0 0
        %2213 = vmatprep.subr.bf16.mxu0 0
        %2214 = vmatpush1.bf16.msra.mxu0 0
        %2215 = vmatprep.subr.bf16.mxu0 0
        %2216 = vmatpush1.bf16.msra.mxu0 0
        %2217 = vmatprep.subr.bf16.mxu0 0
        %2218 = vmatpush1.bf16.msra.mxu0 0
        %2219 = vmatprep.subr.bf16.mxu0 0
        %2220 = vmatpush1.bf16.msra.mxu0 0
        %2221 = vmatprep.subr.bf16.mxu0 0
        %2222 = vmatpush1.bf16.msra.mxu0 0
        %2223 = vmatprep.subr.bf16.mxu0 0
        %2224 = vmatpush1.bf16.msra.mxu0 0
        %2225 = vmatprep.subr.bf16.mxu0 0
        %2226 = vmatpush1.bf16.msra.mxu0 0
        %2227 = vmatprep.subr.bf16.mxu0 0
        %2228 = vmatpush1.bf16.msra.mxu0 0
        %2229 = vmatprep.mubr.bf16.mxu0 0
        %2230 = vmatmul.mubr.bf16.gmra.mrb[0].mxu0 %v2180
        %v2231 = vpop.f32.mrb[0].mxu0
        %v2232 = vadd.f32 0.0, %v2231
        %v2233 = vpop.f32.mrb[0].mxu0
        %v2234 = vpop.f32.mrb[0].mxu0
        %v2235 = vadd.f32 0.0, %v2234
        %v2236 = vpop.f32.mrb[0].mxu0
        %2237 = vmatprep.mubr.bf16.mxu0 0
        %2238 = vmatmul.mubr.bf16.gmra.mrb[0].mxu0 %v2183
        %v2239 = vpop.f32.mrb[0].mxu0
        %v2240 = vadd.f32 0.0, %v2239
        %v2241 = vpop.f32.mrb[0].mxu0
        %v2242 = vpop.f32.mrb[0].mxu0
        %v2243 = vadd.f32 0.0, %v2242
        %v2244 = vpop.f32.mrb[0].mxu0
        %2245 = vmatprep.mubr.bf16.mxu0 0
        %2246 = vmatmul.mubr.bf16.gmra.mrb[0].mxu0 %v2186
        %v2247 = vpop.f32.mrb[0].mxu0
        %v2248 = vadd.f32 0.0, %v2247
        %v2249 = vpop.f32.mrb[0].mxu0
        %v2250 = vpop.f32.mrb[0].mxu0
        %v2251 = vadd.f32 0.0, %v2250
        %v2252 = vpop.f32.mrb[0].mxu0
        %2253 = vmatprep.mubr.bf16.mxu0 0
        %2254 = vmatmul.mubr.bf16.gmra.mrb[0].mxu0 %v2189
        %v2255 = vpop.f32.mrb[0].mxu0
        %v2256 = vadd.f32 0.0, %v2255
        %v2257 = vpop.f32.mrb[0].mxu0
        %v2258 = vpop.f32.mrb[0].mxu0
        %v2259 = vadd.f32 0.0, %v2258
        %v2260 = vpop.f32.mrb[0].mxu0
        %2261 = vmatprep.mubr.bf16.mxu0 0
        %2262 = vmatmul.mubr.bf16.gmra.mrb[0].mxu0 %v2192
        %v2263 = vpop.f32.mrb[0].mxu0
        %v2264 = vadd.f32 0.0, %v2263
        %v2265 = vpop.f32.mrb[0].mxu0
        %v2266 = vpop.f32.mrb[0].mxu0
        %v2267 = vadd.f32 0.0, %v2266
        %v2268 = vpop.f32.mrb[0].mxu0
        %2269 = vdwg.mxu0
        %v2270 = vadd.f32 %v2152, %v2232
        %v2271 = vadd.f32 %v2153, %v2235
        %v2272 = vadd.f32 %v2154, %v2240
        %v2273 = vadd.f32 %v2155, %v2243
        %v2274 = vadd.f32 %v2156, %v2248
        %v2275 = vadd.f32 %v2157, %v2251
        %v2276 = vadd.f32 %v2158, %v2256
        %v2277 = vadd.f32 %v2159, %v2259
        %v2278 = vadd.f32 %v2160, %v2264
        %v2279 = vadd.f32 %v2161, %v2267
        %v2280 = vld [vmem:[#allocation3 + $0xb] sm:$0xff]
        %v2281 = vld [vmem:[#allocation3 + $0x13] sm:$0xff]
        %v2282 = vld [vmem:[#allocation3 + $0x1b] sm:$0xff]
        %v2283 = vld [vmem:[#allocation3 + $0x23] sm:$0xff]
        %v2284 = vld [vmem:[#allocation3 + $0x2b] sm:$0xff]
        %v2285 = vld [vmem:[#allocation3 + $0x33] sm:$0xff]
        %v2286 = vld [vmem:[#allocation3 + $0x3b] sm:$0xff]
        %v2287 = vld [vmem:[#allocation3 + $0x43] sm:$0xff]
        %v2288 = vld [vmem:[#allocation3 + $0x4b] sm:$0xff]
        %v2289 = vld [vmem:[#allocation3 + $0x53] sm:$0xff]
        %v2290 = vpack.c.bf16 %v2281, %v2280
        %v2291 = vpack.c.bf16 %v2283, %v2282
        %v2292 = vpack.c.bf16 %v2285, %v2284
        %v2293 = vpack.c.bf16 %v2287, %v2286
        %v2294 = vpack.c.bf16 %v2289, %v2288
        %s2295 = scalar_lea.vmem [#allocation12], 16
        %v2296 = vld [vmem:[%s2295] sm:$0xf]
        %v2298 = vsel %vm1810, %v2290, 0
        %v2301 = vsel %vm1810, %v2291, 0
        %v2304 = vsel %vm1810, %v2292, 0
        %v2307 = vsel %vm1810, %v2293, 0
        %v2310 = vsel %vm1810, %v2294, 0
        %v2313 = vsel %vm1876, %v2296, 0
        %2315 = vmatprep.subr.bf16.mxu0 0
        %2316 = vmatpush1.bf16.msra.mxu0 %v2313
        %2317 = vmatprep.subr.bf16.mxu0 0
        %2318 = vmatpush1.bf16.msra.mxu0 0
        %2319 = vmatprep.subr.bf16.mxu0 0
        %2320 = vmatpush1.bf16.msra.mxu0 0
        %2321 = vmatprep.subr.bf16.mxu0 0
        %2322 = vmatpush1.bf16.msra.mxu0 0
        %2323 = vmatprep.subr.bf16.mxu0 0
        %2324 = vmatpush1.bf16.msra.mxu0 0
        %2325 = vmatprep.subr.bf16.mxu0 0
        %2326 = vmatpush1.bf16.msra.mxu0 0
        %2327 = vmatprep.subr.bf16.mxu0 0
        %2328 = vmatpush1.bf16.msra.mxu0 0
        %2329 = vmatprep.subr.bf16.mxu0 0
        %2330 = vmatpush1.bf16.msra.mxu0 0
        %2331 = vmatprep.subr.bf16.mxu0 0
        %2332 = vmatpush1.bf16.msra.mxu0 0
        %2333 = vmatprep.subr.bf16.mxu0 0
        %2334 = vmatpush1.bf16.msra.mxu0 0
        %2335 = vmatprep.subr.bf16.mxu0 0
        %2336 = vmatpush1.bf16.msra.mxu0 0
        %2337 = vmatprep.subr.bf16.mxu0 0
        %2338 = vmatpush1.bf16.msra.mxu0 0
        %2339 = vmatprep.subr.bf16.mxu0 0
        %2340 = vmatpush1.bf16.msra.mxu0 0
        %2341 = vmatprep.subr.bf16.mxu0 0
        %2342 = vmatpush1.bf16.msra.mxu0 0
        %2343 = vmatprep.subr.bf16.mxu0 0
        %2344 = vmatpush1.bf16.msra.mxu0 0
        %2345 = vmatprep.subr.bf16.mxu0 0
        %2346 = vmatpush1.bf16.msra.mxu0 0
        %2347 = vmatprep.mubr.bf16.mxu0 0
        %2348 = vmatmul.mubr.bf16.gmra.mrb[0].mxu0 %v2298
        %v2349 = vpop.f32.mrb[0].mxu0
        %v2350 = vadd.f32 0.0, %v2349
        %v2351 = vpop.f32.mrb[0].mxu0
        %v2352 = vpop.f32.mrb[0].mxu0
        %v2353 = vadd.f32 0.0, %v2352
        %v2354 = vpop.f32.mrb[0].mxu0
        %2355 = vmatprep.mubr.bf16.mxu0 0
        %2356 = vmatmul.mubr.bf16.gmra.mrb[0].mxu0 %v2301
        %v2357 = vpop.f32.mrb[0].mxu0
        %v2358 = vadd.f32 0.0, %v2357
        %v2359 = vpop.f32.mrb[0].mxu0
        %v2360 = vpop.f32.mrb[0].mxu0
        %v2361 = vadd.f32 0.0, %v2360
        %v2362 = vpop.f32.mrb[0].mxu0
        %2363 = vmatprep.mubr.bf16.mxu0 0
        %2364 = vmatmul.mubr.bf16.gmra.mrb[0].mxu0 %v2304
        %v2365 = vpop.f32.mrb[0].mxu0
        %v2366 = vadd.f32 0.0, %v2365
        %v2367 = vpop.f32.mrb[0].mxu0
        %v2368 = vpop.f32.mrb[0].mxu0
        %v2369 = vadd.f32 0.0, %v2368
        %v2370 = vpop.f32.mrb[0].mxu0
        %2371 = vmatprep.mubr.bf16.mxu0 0
        %2372 = vmatmul.mubr.bf16.gmra.mrb[0].mxu0 %v2307
        %v2373 = vpop.f32.mrb[0].mxu0
        %v2374 = vadd.f32 0.0, %v2373
        %v2375 = vpop.f32.mrb[0].mxu0
        %v2376 = vpop.f32.mrb[0].mxu0
        %v2377 = vadd.f32 0.0, %v2376
        %v2378 = vpop.f32.mrb[0].mxu0
        %2379 = vmatprep.mubr.bf16.mxu0 0
        %2380 = vmatmul.mubr.bf16.gmra.mrb[0].mxu0 %v2310
        %v2381 = vpop.f32.mrb[0].mxu0
        %v2382 = vadd.f32 0.0, %v2381
        %v2383 = vpop.f32.mrb[0].mxu0
        %v2384 = vpop.f32.mrb[0].mxu0
        %v2385 = vadd.f32 0.0, %v2384
        %v2386 = vpop.f32.mrb[0].mxu0
        %2387 = vdwg.mxu0
        %v2388 = vadd.f32 %v2270, %v2350
        %v2389 = vadd.f32 %v2271, %v2353
        %v2390 = vadd.f32 %v2272, %v2358
        %v2391 = vadd.f32 %v2273, %v2361
        %v2392 = vadd.f32 %v2274, %v2366
        %v2393 = vadd.f32 %v2275, %v2369
        %v2394 = vadd.f32 %v2276, %v2374
        %v2395 = vadd.f32 %v2277, %v2377
        %v2396 = vadd.f32 %v2278, %v2382
        %v2397 = vadd.f32 %v2279, %v2385
        %v2398 = vld [vmem:[#allocation3 + $0xc] sm:$0xff]
        %v2399 = vld [vmem:[#allocation3 + $0x14] sm:$0xff]
        %v2400 = vld [vmem:[#allocation3 + $0x1c] sm:$0xff]
        %v2401 = vld [vmem:[#allocation3 + $0x24] sm:$0xff]
        %v2402 = vld [vmem:[#allocation3 + $0x2c] sm:$0xff]
        %v2403 = vld [vmem:[#allocation3 + $0x34] sm:$0xff]
        %v2404 = vld [vmem:[#allocation3 + $0x3c] sm:$0xff]
        %v2405 = vld [vmem:[#allocation3 + $0x44] sm:$0xff]
        %v2406 = vld [vmem:[#allocation3 + $0x4c] sm:$0xff]
        %v2407 = vld [vmem:[#allocation3 + $0x54] sm:$0xff]
        %v2408 = vpack.c.bf16 %v2399, %v2398
        %v2409 = vpack.c.bf16 %v2401, %v2400
        %v2410 = vpack.c.bf16 %v2403, %v2402
        %v2411 = vpack.c.bf16 %v2405, %v2404
        %v2412 = vpack.c.bf16 %v2407, %v2406
        %s2413 = scalar_lea.vmem [#allocation12], 20
        %v2414 = vld [vmem:[%s2413] sm:$0xf]
        %v2416 = vsel %vm1810, %v2408, 0
        %v2419 = vsel %vm1810, %v2409, 0
        %v2422 = vsel %vm1810, %v2410, 0
        %v2425 = vsel %vm1810, %v2411, 0
        %v2428 = vsel %vm1810, %v2412, 0
        %v2431 = vsel %vm1876, %v2414, 0
        %2433 = vmatprep.subr.bf16.mxu0 0
        %2434 = vmatpush1.bf16.msra.mxu0 %v2431
        %2435 = vmatprep.subr.bf16.mxu0 0
        %2436 = vmatpush1.bf16.msra.mxu0 0
        %2437 = vmatprep.subr.bf16.mxu0 0
        %2438 = vmatpush1.bf16.msra.mxu0 0
        %2439 = vmatprep.subr.bf16.mxu0 0
        %2440 = vmatpush1.bf16.msra.mxu0 0
        %2441 = vmatprep.subr.bf16.mxu0 0
        %2442 = vmatpush1.bf16.msra.mxu0 0
        %2443 = vmatprep.subr.bf16.mxu0 0
        %2444 = vmatpush1.bf16.msra.mxu0 0
        %2445 = vmatprep.subr.bf16.mxu0 0
        %2446 = vmatpush1.bf16.msra.mxu0 0
        %2447 = vmatprep.subr.bf16.mxu0 0
        %2448 = vmatpush1.bf16.msra.mxu0 0
        %2449 = vmatprep.subr.bf16.mxu0 0
        %2450 = vmatpush1.bf16.msra.mxu0 0
        %2451 = vmatprep.subr.bf16.mxu0 0
        %2452 = vmatpush1.bf16.msra.mxu0 0
        %2453 = vmatprep.subr.bf16.mxu0 0
        %2454 = vmatpush1.bf16.msra.mxu0 0
        %2455 = vmatprep.subr.bf16.mxu0 0
        %2456 = vmatpush1.bf16.msra.mxu0 0
        %2457 = vmatprep.subr.bf16.mxu0 0
        %2458 = vmatpush1.bf16.msra.mxu0 0
        %2459 = vmatprep.subr.bf16.mxu0 0
        %2460 = vmatpush1.bf16.msra.mxu0 0
        %2461 = vmatprep.subr.bf16.mxu0 0
        %2462 = vmatpush1.bf16.msra.mxu0 0
        %2463 = vmatprep.subr.bf16.mxu0 0
        %2464 = vmatpush1.bf16.msra.mxu0 0
        %2465 = vmatprep.mubr.bf16.mxu0 0
        %2466 = vmatmul.mubr.bf16.gmra.mrb[0].mxu0 %v2416
        %v2467 = vpop.f32.mrb[0].mxu0
        %v2468 = vadd.f32 0.0, %v2467
        %v2469 = vpop.f32.mrb[0].mxu0
        %v2470 = vpop.f32.mrb[0].mxu0
        %v2471 = vadd.f32 0.0, %v2470
        %v2472 = vpop.f32.mrb[0].mxu0
        %2473 = vmatprep.mubr.bf16.mxu0 0
        %2474 = vmatmul.mubr.bf16.gmra.mrb[0].mxu0 %v2419
        %v2475 = vpop.f32.mrb[0].mxu0
        %v2476 = vadd.f32 0.0, %v2475
        %v2477 = vpop.f32.mrb[0].mxu0
        %v2478 = vpop.f32.mrb[0].mxu0
        %v2479 = vadd.f32 0.0, %v2478
        %v2480 = vpop.f32.mrb[0].mxu0
        %2481 = vmatprep.mubr.bf16.mxu0 0
        %2482 = vmatmul.mubr.bf16.gmra.mrb[0].mxu0 %v2422
        %v2483 = vpop.f32.mrb[0].mxu0
        %v2484 = vadd.f32 0.0, %v2483
        %v2485 = vpop.f32.mrb[0].mxu0
        %v2486 = vpop.f32.mrb[0].mxu0
        %v2487 = vadd.f32 0.0, %v2486
        %v2488 = vpop.f32.mrb[0].mxu0
        %2489 = vmatprep.mubr.bf16.mxu0 0
        %2490 = vmatmul.mubr.bf16.gmra.mrb[0].mxu0 %v2425
        %v2491 = vpop.f32.mrb[0].mxu0
        %v2492 = vadd.f32 0.0, %v2491
        %v2493 = vpop.f32.mrb[0].mxu0
        %v2494 = vpop.f32.mrb[0].mxu0
        %v2495 = vadd.f32 0.0, %v2494
        %v2496 = vpop.f32.mrb[0].mxu0
        %2497 = vmatprep.mubr.bf16.mxu0 0
        %2498 = vmatmul.mubr.bf16.gmra.mrb[0].mxu0 %v2428
        %v2499 = vpop.f32.mrb[0].mxu0
        %v2500 = vadd.f32 0.0, %v2499
        %v2501 = vpop.f32.mrb[0].mxu0
        %v2502 = vpop.f32.mrb[0].mxu0
        %v2503 = vadd.f32 0.0, %v2502
        %v2504 = vpop.f32.mrb[0].mxu0
        %2505 = vdwg.mxu0
        %v2506 = vadd.f32 %v2388, %v2468
        %v2507 = vadd.f32 %v2389, %v2471
        %v2508 = vadd.f32 %v2390, %v2476
        %v2509 = vadd.f32 %v2391, %v2479
        %v2510 = vadd.f32 %v2392, %v2484
        %v2511 = vadd.f32 %v2393, %v2487
        %v2512 = vadd.f32 %v2394, %v2492
        %v2513 = vadd.f32 %v2395, %v2495
        %v2514 = vadd.f32 %v2396, %v2500
        %v2515 = vadd.f32 %v2397, %v2503
        %v2516 = vld [vmem:[#allocation3 + $0x14] sm:$0xff]
        %v2517 = vld [vmem:[#allocation3 + $0x1c] sm:$0xff]
        %v2518 = vld [vmem:[#allocation3 + $0x24] sm:$0xff]
        %v2519 = vld [vmem:[#allocation3 + $0x2c] sm:$0xff]
        %v2520 = vld [vmem:[#allocation3 + $0x34] sm:$0xff]
        %v2521 = vld [vmem:[#allocation3 + $0x3c] sm:$0xff]
        %v2522 = vld [vmem:[#allocation3 + $0x44] sm:$0xff]
        %v2523 = vld [vmem:[#allocation3 + $0x4c] sm:$0xff]
        %v2524 = vld [vmem:[#allocation3 + $0x54] sm:$0xff]
        %v2525 = vld [vmem:[#allocation3 + $0x5c] sm:$0xff]
        %v2526 = vpack.c.bf16 %v2517, %v2516
        %v2527 = vpack.c.bf16 %v2519, %v2518
        %v2528 = vpack.c.bf16 %v2521, %v2520
        %v2529 = vpack.c.bf16 %v2523, %v2522
        %v2530 = vpack.c.bf16 %v2525, %v2524
        %s2531 = scalar_lea.vmem [#allocation12], 24
        %v2532 = vld [vmem:[%s2531] sm:$0xf]
        %v2534 = vsel %vm1810, %v2526, 0
        %v2537 = vsel %vm1810, %v2527, 0
        %v2540 = vsel %vm1810, %v2528, 0
        %v2543 = vsel %vm1810, %v2529, 0
        %v2546 = vsel %vm1810, %v2530, 0
        %v2549 = vsel %vm1876, %v2532, 0
        %2551 = vmatprep.subr.bf16.mxu0 0
        %2552 = vmatpush1.bf16.msra.mxu0 %v2549
        %2553 = vmatprep.subr.bf16.mxu0 0
        %2554 = vmatpush1.bf16.msra.mxu0 0
        %2555 = vmatprep.subr.bf16.mxu0 0
        %2556 = vmatpush1.bf16.msra.mxu0 0
        %2557 = vmatprep.subr.bf16.mxu0 0
        %2558 = vmatpush1.bf16.msra.mxu0 0
        %2559 = vmatprep.subr.bf16.mxu0 0
        %2560 = vmatpush1.bf16.msra.mxu0 0
        %2561 = vmatprep.subr.bf16.mxu0 0
        %2562 = vmatpush1.bf16.msra.mxu0 0
        %2563 = vmatprep.subr.bf16.mxu0 0
        %2564 = vmatpush1.bf16.msra.mxu0 0
        %2565 = vmatprep.subr.bf16.mxu0 0
        %2566 = vmatpush1.bf16.msra.mxu0 0
        %2567 = vmatprep.subr.bf16.mxu0 0
        %2568 = vmatpush1.bf16.msra.mxu0 0
        %2569 = vmatprep.subr.bf16.mxu0 0
        %2570 = vmatpush1.bf16.msra.mxu0 0
        %2571 = vmatprep.subr.bf16.mxu0 0
        %2572 = vmatpush1.bf16.msra.mxu0 0
        %2573 = vmatprep.subr.bf16.mxu0 0
        %2574 = vmatpush1.bf16.msra.mxu0 0
        %2575 = vmatprep.subr.bf16.mxu0 0
        %2576 = vmatpush1.bf16.msra.mxu0 0
        %2577 = vmatprep.subr.bf16.mxu0 0
        %2578 = vmatpush1.bf16.msra.mxu0 0
        %2579 = vmatprep.subr.bf16.mxu0 0
        %2580 = vmatpush1.bf16.msra.mxu0 0
        %2581 = vmatprep.subr.bf16.mxu0 0
        %2582 = vmatpush1.bf16.msra.mxu0 0
        %2583 = vmatprep.mubr.bf16.mxu0 0
        %2584 = vmatmul.mubr.bf16.gmra.mrb[0].mxu0 %v2534
        %v2585 = vpop.f32.mrb[0].mxu0
        %v2586 = vadd.f32 0.0, %v2585
        %v2587 = vpop.f32.mrb[0].mxu0
        %v2588 = vpop.f32.mrb[0].mxu0
        %v2589 = vadd.f32 0.0, %v2588
        %v2590 = vpop.f32.mrb[0].mxu0
        %2591 = vmatprep.mubr.bf16.mxu0 0
        %2592 = vmatmul.mubr.bf16.gmra.mrb[0].mxu0 %v2537
        %v2593 = vpop.f32.mrb[0].mxu0
        %v2594 = vadd.f32 0.0, %v2593
        %v2595 = vpop.f32.mrb[0].mxu0
        %v2596 = vpop.f32.mrb[0].mxu0
        %v2597 = vadd.f32 0.0, %v2596
        %v2598 = vpop.f32.mrb[0].mxu0
        %2599 = vmatprep.mubr.bf16.mxu0 0
        %2600 = vmatmul.mubr.bf16.gmra.mrb[0].mxu0 %v2540
        %v2601 = vpop.f32.mrb[0].mxu0
        %v2602 = vadd.f32 0.0, %v2601
        %v2603 = vpop.f32.mrb[0].mxu0
        %v2604 = vpop.f32.mrb[0].mxu0
        %v2605 = vadd.f32 0.0, %v2604
        %v2606 = vpop.f32.mrb[0].mxu0
        %2607 = vmatprep.mubr.bf16.mxu0 0
        %2608 = vmatmul.mubr.bf16.gmra.mrb[0].mxu0 %v2543
        %v2609 = vpop.f32.mrb[0].mxu0
        %v2610 = vadd.f32 0.0, %v2609
        %v2611 = vpop.f32.mrb[0].mxu0
        %v2612 = vpop.f32.mrb[0].mxu0
        %v2613 = vadd.f32 0.0, %v2612
        %v2614 = vpop.f32.mrb[0].mxu0
        %2615 = vmatprep.mubr.bf16.mxu0 0
        %2616 = vmatmul.mubr.bf16.gmra.mrb[0].mxu0 %v2546
        %v2617 = vpop.f32.mrb[0].mxu0
        %v2618 = vadd.f32 0.0, %v2617
        %v2619 = vpop.f32.mrb[0].mxu0
        %v2620 = vpop.f32.mrb[0].mxu0
        %v2621 = vadd.f32 0.0, %v2620
        %v2622 = vpop.f32.mrb[0].mxu0
        %2623 = vdwg.mxu0
        %v2624 = vadd.f32 %v2506, %v2586
        %v2625 = vadd.f32 %v2507, %v2589
        %v2626 = vadd.f32 %v2508, %v2594
        %v2627 = vadd.f32 %v2509, %v2597
        %v2628 = vadd.f32 %v2510, %v2602
        %v2629 = vadd.f32 %v2511, %v2605
        %v2630 = vadd.f32 %v2512, %v2610
        %v2631 = vadd.f32 %v2513, %v2613
        %v2632 = vadd.f32 %v2514, %v2618
        %v2633 = vadd.f32 %v2515, %v2621
        %v2634 = vld [vmem:[#allocation3 + $0x15] sm:$0xff]
        %v2635 = vld [vmem:[#allocation3 + $0x1d] sm:$0xff]
        %v2636 = vld [vmem:[#allocation3 + $0x25] sm:$0xff]
        %v2637 = vld [vmem:[#allocation3 + $0x2d] sm:$0xff]
        %v2638 = vld [vmem:[#allocation3 + $0x35] sm:$0xff]
        %v2639 = vld [vmem:[#allocation3 + $0x3d] sm:$0xff]
        %v2640 = vld [vmem:[#allocation3 + $0x45] sm:$0xff]
        %v2641 = vld [vmem:[#allocation3 + $0x4d] sm:$0xff]
        %v2642 = vld [vmem:[#allocation3 + $0x55] sm:$0xff]
        %v2643 = vld [vmem:[#allocation3 + $0x5d] sm:$0xff]
        %v2644 = vpack.c.bf16 %v2635, %v2634
        %v2645 = vpack.c.bf16 %v2637, %v2636
        %v2646 = vpack.c.bf16 %v2639, %v2638
        %v2647 = vpack.c.bf16 %v2641, %v2640
        %v2648 = vpack.c.bf16 %v2643, %v2642
        %s2649 = scalar_lea.vmem [#allocation12], 28
        %v2650 = vld [vmem:[%s2649] sm:$0xf]
        %v2652 = vsel %vm1810, %v2644, 0
        %v2655 = vsel %vm1810, %v2645, 0
        %v2658 = vsel %vm1810, %v2646, 0
        %v2661 = vsel %vm1810, %v2647, 0
        %v2664 = vsel %vm1810, %v2648, 0
        %v2667 = vsel %vm1876, %v2650, 0
        %2669 = vmatprep.subr.bf16.mxu0 0
        %2670 = vmatpush1.bf16.msra.mxu0 %v2667
        %2671 = vmatprep.subr.bf16.mxu0 0
        %2672 = vmatpush1.bf16.msra.mxu0 0
        %2673 = vmatprep.subr.bf16.mxu0 0
        %2674 = vmatpush1.bf16.msra.mxu0 0
        %2675 = vmatprep.subr.bf16.mxu0 0
        %2676 = vmatpush1.bf16.msra.mxu0 0
        %2677 = vmatprep.subr.bf16.mxu0 0
        %2678 = vmatpush1.bf16.msra.mxu0 0
        %2679 = vmatprep.subr.bf16.mxu0 0
        %2680 = vmatpush1.bf16.msra.mxu0 0
        %2681 = vmatprep.subr.bf16.mxu0 0
        %2682 = vmatpush1.bf16.msra.mxu0 0
        %2683 = vmatprep.subr.bf16.mxu0 0
        %2684 = vmatpush1.bf16.msra.mxu0 0
        %2685 = vmatprep.subr.bf16.mxu0 0
        %2686 = vmatpush1.bf16.msra.mxu0 0
        %2687 = vmatprep.subr.bf16.mxu0 0
        %2688 = vmatpush1.bf16.msra.mxu0 0
        %2689 = vmatprep.subr.bf16.mxu0 0
        %2690 = vmatpush1.bf16.msra.mxu0 0
        %2691 = vmatprep.subr.bf16.mxu0 0
        %2692 = vmatpush1.bf16.msra.mxu0 0
        %2693 = vmatprep.subr.bf16.mxu0 0
        %2694 = vmatpush1.bf16.msra.mxu0 0
        %2695 = vmatprep.subr.bf16.mxu0 0
        %2696 = vmatpush1.bf16.msra.mxu0 0
        %2697 = vmatprep.subr.bf16.mxu0 0
        %2698 = vmatpush1.bf16.msra.mxu0 0
        %2699 = vmatprep.subr.bf16.mxu0 0
        %2700 = vmatpush1.bf16.msra.mxu0 0
        %2701 = vmatprep.mubr.bf16.mxu0 0
        %2702 = vmatmul.mubr.bf16.gmra.mrb[0].mxu0 %v2652
        %v2703 = vpop.f32.mrb[0].mxu0
        %v2704 = vadd.f32 0.0, %v2703
        %v2705 = vpop.f32.mrb[0].mxu0
        %v2706 = vpop.f32.mrb[0].mxu0
        %v2707 = vadd.f32 0.0, %v2706
        %v2708 = vpop.f32.mrb[0].mxu0
        %2709 = vmatprep.mubr.bf16.mxu0 0
        %2710 = vmatmul.mubr.bf16.gmra.mrb[0].mxu0 %v2655
        %v2711 = vpop.f32.mrb[0].mxu0
        %v2712 = vadd.f32 0.0, %v2711
        %v2713 = vpop.f32.mrb[0].mxu0
        %v2714 = vpop.f32.mrb[0].mxu0
        %v2715 = vadd.f32 0.0, %v2714
        %v2716 = vpop.f32.mrb[0].mxu0
        %2717 = vmatprep.mubr.bf16.mxu0 0
        %2718 = vmatmul.mubr.bf16.gmra.mrb[0].mxu0 %v2658
        %v2719 = vpop.f32.mrb[0].mxu0
        %v2720 = vadd.f32 0.0, %v2719
        %v2721 = vpop.f32.mrb[0].mxu0
        %v2722 = vpop.f32.mrb[0].mxu0
        %v2723 = vadd.f32 0.0, %v2722
        %v2724 = vpop.f32.mrb[0].mxu0
        %2725 = vmatprep.mubr.bf16.mxu0 0
        %2726 = vmatmul.mubr.bf16.gmra.mrb[0].mxu0 %v2661
        %v2727 = vpop.f32.mrb[0].mxu0
        %v2728 = vadd.f32 0.0, %v2727
        %v2729 = vpop.f32.mrb[0].mxu0
        %v2730 = vpop.f32.mrb[0].mxu0
        %v2731 = vadd.f32 0.0, %v2730
        %v2732 = vpop.f32.mrb[0].mxu0
        %2733 = vmatprep.mubr.bf16.mxu0 0
        %2734 = vmatmul.mubr.bf16.gmra.mrb[0].mxu0 %v2664
        %v2735 = vpop.f32.mrb[0].mxu0
        %v2736 = vadd.f32 0.0, %v2735
        %v2737 = vpop.f32.mrb[0].mxu0
        %v2738 = vpop.f32.mrb[0].mxu0
        %v2739 = vadd.f32 0.0, %v2738
        %v2740 = vpop.f32.mrb[0].mxu0
        %2741 = vdwg.mxu0
        %v2742 = vadd.f32 %v2624, %v2704
        %v2743 = vadd.f32 %v2625, %v2707
        %v2744 = vadd.f32 %v2626, %v2712
        %v2745 = vadd.f32 %v2627, %v2715
        %v2746 = vadd.f32 %v2628, %v2720
        %v2747 = vadd.f32 %v2629, %v2723
        %v2748 = vadd.f32 %v2630, %v2728
        %v2749 = vadd.f32 %v2631, %v2731
        %v2750 = vadd.f32 %v2632, %v2736
        %v2751 = vadd.f32 %v2633, %v2739
        %v2752 = vld [vmem:[#allocation3 + $0x16] sm:$0xff]
        %v2753 = vld [vmem:[#allocation3 + $0x1e] sm:$0xff]
        %v2754 = vld [vmem:[#allocation3 + $0x26] sm:$0xff]
        %v2755 = vld [vmem:[#allocation3 + $0x2e] sm:$0xff]
        %v2756 = vld [vmem:[#allocation3 + $0x36] sm:$0xff]
        %v2757 = vld [vmem:[#allocation3 + $0x3e] sm:$0xff]
        %v2758 = vld [vmem:[#allocation3 + $0x46] sm:$0xff]
        %v2759 = vld [vmem:[#allocation3 + $0x4e] sm:$0xff]
        %v2760 = vld [vmem:[#allocation3 + $0x56] sm:$0xff]
        %v2761 = vld [vmem:[#allocation3 + $0x5e] sm:$0xff]
        %v2762 = vpack.c.bf16 %v2753, %v2752
        %v2763 = vpack.c.bf16 %v2755, %v2754
        %v2764 = vpack.c.bf16 %v2757, %v2756
        %v2765 = vpack.c.bf16 %v2759, %v2758
        %v2766 = vpack.c.bf16 %v2761, %v2760
        %s2767 = scalar_lea.vmem [#allocation12], 32
        %v2768 = vld [vmem:[%s2767] sm:$0xf]
        %v2770 = vsel %vm1810, %v2762, 0
        %v2773 = vsel %vm1810, %v2763, 0
        %v2776 = vsel %vm1810, %v2764, 0
        %v2779 = vsel %vm1810, %v2765, 0
        %v2782 = vsel %vm1810, %v2766, 0
        %v2785 = vsel %vm1876, %v2768, 0
        %2787 = vmatprep.subr.bf16.mxu0 0
        %2788 = vmatpush1.bf16.msra.mxu0 %v2785
        %2789 = vmatprep.subr.bf16.mxu0 0
        %2790 = vmatpush1.bf16.msra.mxu0 0
        %2791 = vmatprep.subr.bf16.mxu0 0
        %2792 = vmatpush1.bf16.msra.mxu0 0
        %2793 = vmatprep.subr.bf16.mxu0 0
        %2794 = vmatpush1.bf16.msra.mxu0 0
        %2795 = vmatprep.subr.bf16.mxu0 0
        %2796 = vmatpush1.bf16.msra.mxu0 0
        %2797 = vmatprep.subr.bf16.mxu0 0
        %2798 = vmatpush1.bf16.msra.mxu0 0
        %2799 = vmatprep.subr.bf16.mxu0 0
        %2800 = vmatpush1.bf16.msra.mxu0 0
        %2801 = vmatprep.subr.bf16.mxu0 0
        %2802 = vmatpush1.bf16.msra.mxu0 0
        %2803 = vmatprep.subr.bf16.mxu0 0
        %2804 = vmatpush1.bf16.msra.mxu0 0
        %2805 = vmatprep.subr.bf16.mxu0 0
        %2806 = vmatpush1.bf16.msra.mxu0 0
        %2807 = vmatprep.subr.bf16.mxu0 0
        %2808 = vmatpush1.bf16.msra.mxu0 0
        %2809 = vmatprep.subr.bf16.mxu0 0
        %2810 = vmatpush1.bf16.msra.mxu0 0
        %2811 = vmatprep.subr.bf16.mxu0 0
        %2812 = vmatpush1.bf16.msra.mxu0 0
        %2813 = vmatprep.subr.bf16.mxu0 0
        %2814 = vmatpush1.bf16.msra.mxu0 0
        %2815 = vmatprep.subr.bf16.mxu0 0
        %2816 = vmatpush1.bf16.msra.mxu0 0
        %2817 = vmatprep.subr.bf16.mxu0 0
        %2818 = vmatpush1.bf16.msra.mxu0 0
        %2819 = vmatprep.mubr.bf16.mxu0 0
        %2820 = vmatmul.mubr.bf16.gmra.mrb[0].mxu0 %v2770
        %v2821 = vpop.f32.mrb[0].mxu0
        %v2822 = vadd.f32 0.0, %v2821
        %v2823 = vpop.f32.mrb[0].mxu0
        %v2824 = vpop.f32.mrb[0].mxu0
        %v2825 = vadd.f32 0.0, %v2824
        %v2826 = vpop.f32.mrb[0].mxu0
        %2827 = vmatprep.mubr.bf16.mxu0 0
        %2828 = vmatmul.mubr.bf16.gmra.mrb[0].mxu0 %v2773
        %v2829 = vpop.f32.mrb[0].mxu0
        %v2830 = vadd.f32 0.0, %v2829
        %v2831 = vpop.f32.mrb[0].mxu0
        %v2832 = vpop.f32.mrb[0].mxu0
        %v2833 = vadd.f32 0.0, %v2832
        %v2834 = vpop.f32.mrb[0].mxu0
        %2835 = vmatprep.mubr.bf16.mxu0 0
        %2836 = vmatmul.mubr.bf16.gmra.mrb[0].mxu0 %v2776
        %v2837 = vpop.f32.mrb[0].mxu0
        %v2838 = vadd.f32 0.0, %v2837
        %v2839 = vpop.f32.mrb[0].mxu0
        %v2840 = vpop.f32.mrb[0].mxu0
        %v2841 = vadd.f32 0.0, %v2840
        %v2842 = vpop.f32.mrb[0].mxu0
        %2843 = vmatprep.mubr.bf16.mxu0 0
        %2844 = vmatmul.mubr.bf16.gmra.mrb[0].mxu0 %v2779
        %v2845 = vpop.f32.mrb[0].mxu0
        %v2846 = vadd.f32 0.0, %v2845
        %v2847 = vpop.f32.mrb[0].mxu0
        %v2848 = vpop.f32.mrb[0].mxu0
        %v2849 = vadd.f32 0.0, %v2848
        %v2850 = vpop.f32.mrb[0].mxu0
        %2851 = vmatprep.mubr.bf16.mxu0 0
        %2852 = vmatmul.mubr.bf16.gmra.mrb[0].mxu0 %v2782
        %v2853 = vpop.f32.mrb[0].mxu0
        %v2854 = vadd.f32 0.0, %v2853
        %v2855 = vpop.f32.mrb[0].mxu0
        %v2856 = vpop.f32.mrb[0].mxu0
        %v2857 = vadd.f32 0.0, %v2856
        %v2858 = vpop.f32.mrb[0].mxu0
        %2859 = vdwg.mxu0
        %v2860 = vadd.f32 %v2742, %v2822
        %v2861 = vadd.f32 %v2743, %v2825
        %v2862 = vadd.f32 %v2744, %v2830
        %v2863 = vadd.f32 %v2745, %v2833
        %v2864 = vadd.f32 %v2746, %v2838
        %v2865 = vadd.f32 %v2747, %v2841
        %v2866 = vadd.f32 %v2748, %v2846
        %v2867 = vadd.f32 %v2749, %v2849
        %v2868 = vadd.f32 %v2750, %v2854
        %v2869 = vadd.f32 %v2751, %v2857
        %v2870 = vld [vmem:[#allocation13] sm:$0x1]
        %v2872 = vlaneseq
        %v2873 = vshrl.u32 %v2872, 7
        %v2874 = vsub.s32 0, %v2873
        %v2875 = vrot.slane %v2870, %v2874
        %v2877 = vmul.f32 %v2860, %v2875
        %v2878 = vmul.f32 %v2861, %v2875
        %v2879 = vmul.f32 %v2862, %v2875
        %v2880 = vmul.f32 %v2863, %v2875
        %v2881 = vmul.f32 %v2864, %v2875
        %v2882 = vmul.f32 %v2865, %v2875
        %v2883 = vmul.f32 %v2866, %v2875
        %v2884 = vmul.f32 %v2867, %v2875
        %v2885 = vmul.f32 %v2868, %v2875
        %v2886 = vmul.f32 %v2869, %v2875
        %v2887 = vld [vmem:[#allocation15] sm:$0x1]
        %v2889 = vlaneseq
        %v2890 = vshrl.u32 %v2889, 7
        %v2891 = vsub.s32 0, %v2890
        %v2892 = vrot.slane %v2887, %v2891
        %v2894 = vadd.f32 %v2877, %v2892
        %v2895 = vadd.f32 %v2878, %v2892
        %v2896 = vadd.f32 %v2879, %v2892
        %v2897 = vadd.f32 %v2880, %v2892
        %v2898 = vadd.f32 %v2881, %v2892
        %v2899 = vadd.f32 %v2882, %v2892
        %v2900 = vadd.f32 %v2883, %v2892
        %v2901 = vadd.f32 %v2884, %v2892
        %v2902 = vadd.f32 %v2885, %v2892
        %v2903 = vadd.f32 %v2886, %v2892
        %v2904 = vmax.f32 %v2894, 0.0
        %v2905 = vmax.f32 %v2895, 0.0
        %v2906 = vmax.f32 %v2896, 0.0
        %v2907 = vmax.f32 %v2897, 0.0
        %v2908 = vmax.f32 %v2898, 0.0
        %v2909 = vmax.f32 %v2899, 0.0
        %v2910 = vmax.f32 %v2900, 0.0
        %v2911 = vmax.f32 %v2901, 0.0
        %v2912 = vmax.f32 %v2902, 0.0
        %v2913 = vmax.f32 %v2903, 0.0
        %2914 = vst.msk [vmem:[%s375] sm:$0xff] %vm1810, %v2904
        %2915 = vst.msk [vmem:[%s375 + $0x8] sm:$0xff] %vm1810, %v2905
        %2916 = vst.msk [vmem:[%s375 + $0x10] sm:$0xff] %vm1810, %v2906
        %2917 = vst.msk [vmem:[%s375 + $0x18] sm:$0xff] %vm1810, %v2907
        %2918 = vst.msk [vmem:[%s375 + $0x20] sm:$0xff] %vm1810, %v2908
        %2919 = vst.msk [vmem:[%s375 + $0x28] sm:$0xff] %vm1810, %v2909
        %2920 = vst.msk [vmem:[%s375 + $0x30] sm:$0xff] %vm1810, %v2910
        %2921 = vst.msk [vmem:[%s375 + $0x38] sm:$0xff] %vm1810, %v2911
        %2922 = vst.msk [vmem:[%s375 + $0x40] sm:$0xff] %vm1810, %v2912
        %2923 = vst.msk [vmem:[%s375 + $0x48] sm:$0xff] %vm1810, %v2913
        %s2924 = sand.u32 %s187, 1
        %s2925 = scalar_lea.sflag [#allocation6], %s2924
        %s2926 = sand.u32 %s187, 1
        %s2927 = smul.addr %s2926, 80
        %s2928 = scalar_lea.vmem [#allocation16], %s2927
        // Predicated region
        $region77: #{down_pallas.1} parent=47 // pred_check
          %p2929 = pneg %p197
        $region78: #{down_pallas.1} parent=47 // pred_check_branch
          %2931 = sbr.rel (%p2929) target = $region80
        $region79: #{down_pallas.1} parent=47 // pred_region
          %s2933 = ssub.s32 1280, 1280
          %2934 = vsyncadd %s2925, %s2933
          %s2935 = smul.addr %s27, 10
          %s2936 = smul.addr %s2935, 128
          %s2937 = scalar_lea.hbm %s7, %s2936
          %s2938 = sshll.u32 %s2928, 4
          %s2939 = int_to_ptr.vmem [resolvable:$true] %s2938
          %2944 = dma.vmem_to_hbm [thread:$0]  %s2939, 1280, %s2937, %s2925, 128, 128, 8
        $region80: #{down_pallas.1} parent=47 // pred_fallthru
          _
      $region48: #{down_pallas.1} parent=5 // pred_fallthru
        _
      %p2945 = scmp.le.s32.totalorder 2, %s22
      // Predicated region
      $region81: #{down_pallas.1} parent=5 // pred_check
        %p2946 = pneg %p2945
      $region82: #{down_pallas.1} parent=5 // pred_check_branch
        %2948 = sbr.rel (%p2946) target = $region84
      $region83: #{down_pallas.1} parent=5 // pred_region
        %s2949 = ssub.s32 %s22, 2
        // Predicated region
        $region85: #{down_pallas.1} parent=83 // pred_check
          %p2950 = pneg %p203
        $region86: #{down_pallas.1} parent=83 // pred_check_branch
          %2952 = sbr.rel (%p2950) target = $region88
        $region87: #{down_pallas.1} parent=83 // pred_region
          %s2953 = sand.u32 %s188, 1
          %s2954 = scalar_lea.sflag [#allocation6], %s2953
          %s2955 = sand.u32 %s188, 1
          %s2956 = smul.addr %s2955, 80
          %s2957 = scalar_lea.vmem [#allocation16], %s2956
          %2958 = dma.done %s2954, 1280
        $region88: #{down_pallas.1} parent=83 // pred_fallthru
          _
      $region84: #{down_pallas.1} parent=5 // pred_fallthru
        _
    $region6: #{down_pallas.1} parent=1 // loop_footer
      %s26 = sadd.s32 1, %s22
    $region7: #{down_pallas.1} parent=1 // loop_footer_branch
      %21 = sbr.rel target = $region3
    $region8: #{down_pallas.1} parent=1 // loop_exit
      _
    %2959 = vsyncpa [#allocation5], 1
    %s2960 = scalar_lea.sflag [#allocation5], 1
    %2961 = vsyncpa %s2960, 1
    %2962 = vsyncpa [#allocation8], 1
    %2963 = vsyncpa [#allocation11], 1
    %2964 = vsyncpa [#allocation14], 1
    %2965 = vsyncpa [#allocation6], 1
    %s2966 = scalar_lea.sflag [#allocation6], 1
    %2967 = vsyncpa %s2966, 1

</llo_original>
